<compile_context>
chip_gen: v6e
topology: v6e:2x2x1
jax: 0.10.0
libtpu: 0.0.40
codegen_flags: <defaults>
</compile_context>

<pallas_src>
import functools

import jax
import jax.numpy as jnp
from jax.experimental import pallas as pl
from jax.experimental.pallas import tpu as pltpu


# ---------------------------------------------------------------------------
# Activations (match PyTorch defaults: leaky_relu slope = 0.01)
# ---------------------------------------------------------------------------
def _leaky_relu(x):
    return jnp.where(x >= 0, x, 0.01 * x)


def _relu(x):
    return jnp.maximum(x, 0.0)


def _sigmoid(x):
    return jax.nn.sigmoid(x)


_ACTS = {"leaky_relu": _leaky_relu, "relu": _relu, "sigmoid": _sigmoid}


# ---------------------------------------------------------------------------
# Small helpers
# ---------------------------------------------------------------------------
def _round_up(x, m):
    return (x + m - 1) // m * m


def _pick_m_tiling(M, Kp, pref=2048):
    """Pick (TM, Mp): lane-axis tile and padded M.

    Constraints:
      * TM % 128 == 0 and TM | Mp (or TM == M == full dim for tiny activations),
      * each (Kp, TM) bf16 patch buffer <= ~1 MiB (VMEM headroom on v5e),
      * TM <= Mp // 2 when possible so the parallel M axis has >= 2 steps
        (keeps both v7x TensorCores busy; harmless on v5e/v6e).
    """
    if M <= 128:
        return M, M  # single full-dim block (legal even if not 128-aligned)
    Mp = _round_up(M, 128)
    vmem_cap = max(128, (1024 * 1024 // (2 * max(Kp, 1))) // 128 * 128)
    tm_max = max(128, min(pref, vmem_cap, Mp // 2))
    tm = 128
    cand = 128
    while cand <= tm_max:
        if Mp % cand == 0:
            tm = cand
        cand += 128
    return tm, Mp


def _pick_row_tiling(R):
    """Row tile for the lane-dense (R, 128) pool layout (R is a multiple of 8)."""
    if R <= 512:
        return R
    for tr in (512, 256, 128, 64, 32, 16, 8):
        if R % tr == 0:
            return tr
    return R


# ---------------------------------------------------------------------------
# Pallas kernels
# ---------------------------------------------------------------------------
def _matmul_bias_act_kernel(w_ref, p_ref, b_ref, o_ref, *, act):
    # w_ref: (Coutp, Kp) bf16   p_ref: (Kp, TM) bf16
    # b_ref: (Coutp, 1)  f32    o_ref: (Coutp, TM) bf16/f32  (TM on the lane axis)
    #
    # Operands live in HBM/VMEM as bf16 (half the DMA bytes); cast to f32 in
    # VMEM just before the dot so the contraction is a plain f32 matmul
    # (bf16 x bf16 -> f32 dots are rejected by the CPU interpret path).
    w = w_ref[...].astype(jnp.float32)
    p = p_ref[...].astype(jnp.float32)
    acc = jnp.dot(w, p, preferred_element_type=jnp.float32)
    acc = acc + b_ref[...]
    o_ref[...] = _ACTS[act](acc).astype(o_ref.dtype)


def _max4_kernel(a_ref, b_ref, c_ref, d_ref, o_ref):
    o_ref[...] = jnp.maximum(
        jnp.maximum(a_ref[...], b_ref[...]),
        jnp.maximum(c_ref[...], d_ref[...]),
    )


# ---------------------------------------------------------------------------
# Layer wrappers (activations are kept in (C, N, H, W) layout, bf16 between layers)
# ---------------------------------------------------------------------------
def conv2d_act(x, w, b, *, padding, act, out_dtype=jnp.bfloat16):
    """'same'-style conv (explicit padding) with fused bias + activation.

    x: (Cin, N, H, W)   w: (KH, KW, Cin, Cout)   b: (Cout,)   -> (Cout, N, H, W)
    """
    Cin, N, H, W = x.shape
    KH, KW, _, Cout = w.shape
    K = KH * KW * Cin
    M = N * H * W
    p = padding

    x = x.astype(jnp.bfloat16)
    xp = jnp.pad(x, ((0, 0), (0, 0), (p, p), (p, p)))

    # Transposed im2col (XLA glue): rows ordered (kh, kw, cin),
    # columns = flattened (n, h, w).
    # TODO(synk): direct-conv halo tiles would avoid this KH*KW read amplification.
    cols = [xp[:, :, kh:kh + H, kw:kw + W] for kh in range(KH) for kw in range(KW)]
    patches_t = jnp.concatenate(cols, axis=0).reshape(K, M)

    Coutp = _round_up(Cout, 8)     # sublane-aligned output rows (dec4 has Cout=3)
    Kp = _round_up(K, 16)          # no ragged sublane tail on the contraction dim
    TM, Mp = _pick_m_tiling(M, Kp)

    # Weights -> (Coutp, Kp) bf16 (resident block), bias -> (Coutp, 1) f32.
    w2t = w.reshape(K, Cout).T                                     # (Cout, K)
    w2t = jnp.pad(w2t, ((0, Coutp - Cout), (0, Kp - K))).astype(jnp.bfloat16)
    b2 = jnp.pad(b, (0, Coutp - Cout)).reshape(Coutp, 1).astype(jnp.float32)
    patches_t = jnp.pad(patches_t, ((0, Kp - K), (0, Mp - M)))

    grid = (Mp // TM,)
    flops = 2 * Coutp * Kp * Mp
    transc = Coutp * Mp if act == "sigmoid" else 0
    out_bytes = 2 if out_dtype == jnp.bfloat16 else 4
    bytes_accessed = (patches_t.size * 2 + w2t.size * 2 + b2.size * 4
                      + Coutp * Mp * out_bytes)

    out = pl.pallas_call(
        functools.partial(_matmul_bias_act_kernel, act=act),
        out_shape=jax.ShapeDtypeStruct((Coutp, Mp), out_dtype),
        grid=grid,
        in_specs=[
            pl.BlockSpec((Coutp, Kp), lambda i: (0, 0)),   # weights: resident
            pl.BlockSpec((Kp, TM), lambda i: (0, i)),      # patches: tiled over M (lanes)
            pl.BlockSpec((Coutp, 1), lambda i: (0, 0)),    # bias: resident
        ],
        out_specs=pl.BlockSpec((Coutp, TM), lambda i: (0, i)),
        compiler_params=pltpu.CompilerParams(
            dimension_semantics=("parallel",),
            vmem_limit_bytes=32 * 1024 * 1024,
        ),
        cost_estimate=pl.CostEstimate(
            flops=flops, transcendentals=transc, bytes_accessed=bytes_accessed),
    )(w2t, patches_t, b2)

    return out[:Cout, :M].reshape(Cout, N, H, W)


def max_pool2x2(x):
    """F.max_pool2d(x, 2) -- kernel 2, stride 2, floor (drops odd tail), on (C,N,H,W)."""
    C, N, H, W = x.shape
    Ho, Wo = H // 2, W // 2
    x = x[:, :, :Ho * 2, :Wo * 2]
    views = (
        x[:, :, 0::2, 0::2],
        x[:, :, 0::2, 1::2],
        x[:, :, 1::2, 0::2],
        x[:, :, 1::2, 1::2],
    )
    T = C * N * Ho * Wo
    Tp = _round_up(T, 8 * 128)
    R = Tp // 128
    TR = _pick_row_tiling(R)

    # Lane-dense (R, 128) layout for the elementwise max (padding sliced off below).
    # TODO(synk): fuse the pool into the preceding conv's epilogue to drop the
    # extra HBM round trip and the strided de-interleave gathers.
    flat = [jnp.pad(v.reshape(-1), (0, Tp - T)).reshape(R, 128) for v in views]

    out = pl.pallas_call(
        _max4_kernel,
        out_shape=jax.ShapeDtypeStruct((R, 128), x.dtype),
        grid=(R // TR,),
        in_specs=[pl.BlockSpec((TR, 128), lambda i: (i, 0)) for _ in range(4)],
        out_specs=pl.BlockSpec((TR, 128), lambda i: (i, 0)),
        compiler_params=pltpu.CompilerParams(dimension_semantics=("parallel",)),
    )(*flat)
    return out.reshape(-1)[:T].reshape(C, N, Ho, Wo)


def upsample2x_nearest(x):
    # F.interpolate(scale_factor=2), default mode='nearest': pure duplication (glue).
    # TODO(synk): fold into the following conv's input indexing to avoid writing
    # the 4x-size tensor to HBM.
    x = jnp.repeat(x, 2, axis=2)
    x = jnp.repeat(x, 2, axis=3)
    return x


# ---------------------------------------------------------------------------
# Parameter init (deterministic, PyTorch-Conv2d-like uniform fan-in scaling).
# Layout is (KH, KW, Cin, Cout); real PyTorch (Cout, Cin, KH, KW) weights would
# need a (2, 3, 1, 0) transpose before use.
# ---------------------------------------------------------------------------
def _init_conv(key, kh, kw, cin, cout):
    kw_key, kb_key = jax.random.split(key)
    bound = 1.0 / float(cin * kh * kw) ** 0.5
    w = jax.random.uniform(kw_key, (kh, kw, cin, cout), jnp.float32, -bound, bound)
    b = jax.random.uniform(kb_key, (cout,), jnp.float32, -bound, bound)
    return w, b


def init_params(key):
    specs = {
        "enc1": (7, 7, 3, 32),
        "enc2": (5, 5, 32, 32),
        "enc3": (3, 3, 32, 16),
        "enc4": (3, 3, 16, 8),
        "dec1": (3, 3, 8, 8),
        "dec2": (3, 3, 8, 16),
        "dec3": (5, 5, 16, 32),
        "dec4": (7, 7, 32, 3),
    }
    keys = jax.random.split(key, len(specs))
    return {name: _init_conv(k, *spec) for k, (name, spec) in zip(keys, specs.items())}


# ---------------------------------------------------------------------------
# Full forward pass (matches AutoEncoder.forward)
# ---------------------------------------------------------------------------
def autoencoder_forward(params, images_nchw):
    x = jnp.transpose(images_nchw, (1, 0, 2, 3))  # NCHW -> CNHW (channels on sublanes)

    # encode (intermediate layers emit bf16 to halve inter-layer HBM traffic)
    x = conv2d_act(x, *params["enc1"], padding=3, act="leaky_relu")
    x = max_pool2x2(x)
    x = conv2d_act(x, *params["enc2"], padding=2, act="leaky_relu")
    x = max_pool2x2(x)
    x = conv2d_act(x, *params["enc3"], padding=1, act="leaky_relu")
    x = max_pool2x2(x)
    x = conv2d_act(x, *params["enc4"], padding=1, act="relu")

    # decode
    x = conv2d_act(x, *params["dec1"], padding=1, act="leaky_relu")
    x = upsample2x_nearest(x)
    x = conv2d_act(x, *params["dec2"], padding=1, act="leaky_relu")
    x = upsample2x_nearest(x)
    x = conv2d_act(x, *params["dec3"], padding=2, act="leaky_relu")
    x = upsample2x_nearest(x)
    x = conv2d_act(x, *params["dec4"], padding=3, act="sigmoid",
                   out_dtype=jnp.float32)  # final layer in f32

    return jnp.transpose(x, (1, 0, 2, 3))  # CNHW -> NCHW


if __name__ == "__main__":
    key = jax.random.PRNGKey(0)
    k_params, k_img = jax.random.split(key)

    params = init_params(k_params)
    images = jax.random.uniform(k_img, (2, 3, 16, 16), jnp.float32)  # NCHW

    fwd = jax.jit(autoencoder_forward)
    out = jax.block_until_ready(fwd(params, images))

    assert out.shape == (2, 3, 16, 16), out.shape
    assert out.dtype == jnp.float32
    assert bool(jnp.all(jnp.isfinite(out)))
    assert bool(jnp.all((out >= 0.0) & (out <= 1.0)))  # sigmoid range

    print("KERNEL_OK")
</pallas_src>

<mosaic_0001>
module attributes {stable_mosaic.version = 11 : i64} {
  func.func @_matmul_bias_act_kernel(%arg0: i32, %arg1: memref<32x160xbf16, #tpu.memory_space<vmem>>, %arg2: memref<160x256xbf16, #tpu.memory_space<vmem>>, %arg3: memref<32x1xf32, #tpu.memory_space<vmem>>, %arg4: memref<32x256xbf16, #tpu.memory_space<vmem>>) attributes {dimension_semantics = [#tpu.dimension_semantics<parallel>], iteration_bounds = array<i64: 2>, scalar_prefetch = 0 : i64, scratch_operands = 0 : i64, tpu.core_type = #tpu.core_type<tc>, window_params = [{pipeline_mode = #tpu.pipeline_mode<synchronous>, transform_indices = @transform_0, window_bounds = array<i64: 32, 160>}, {transform_indices = @transform_1, window_bounds = array<i64: 160, 256>}, {pipeline_mode = #tpu.pipeline_mode<synchronous>, transform_indices = @transform_2, window_bounds = array<i64: 32, 1>}, {transform_indices = @transform_3, window_bounds = array<i64: 32, 256>}]} {
    %c0 = arith.constant 0 : index
    %c0_0 = arith.constant 0 : index
    %0 = vector.load %arg1[%c0, %c0_0] : memref<32x160xbf16, #tpu.memory_space<vmem>>, vector<32x160xbf16>
    %1 = arith.extf %0 : vector<32x160xbf16> to vector<32x160xf32>
    %c0_1 = arith.constant 0 : index
    %c0_2 = arith.constant 0 : index
    %2 = vector.load %arg2[%c0_1, %c0_2] : memref<160x256xbf16, #tpu.memory_space<vmem>>, vector<160x256xbf16>
    %3 = arith.extf %2 : vector<160x256xbf16> to vector<160x256xf32>
    %cst = arith.constant dense<0.000000e+00> : vector<32x256xf32>
    %4 = tpu.matmul %1, %3, %cst {dimension_numbers = #tpu.dot_dimension_numbers<[1], [0], [0], [1], [0, 0, 1, 1], [], []>} : vector<32x160xf32>, vector<160x256xf32>, vector<32x256xf32> -> vector<32x256xf32>
    %c0_3 = arith.constant 0 : index
    %c0_4 = arith.constant 0 : index
    %5 = vector.load %arg3[%c0_3, %c0_4] : memref<32x1xf32, #tpu.memory_space<vmem>>, vector<32x1xf32>
    %6 = vector.broadcast %5 : vector<32x1xf32> to vector<32x256xf32>
    %7 = arith.addf %4, %6 : vector<32x256xf32>
    %cst_5 = arith.constant 0.000000e+00 : f32
    %8 = vector.broadcast %cst_5 : f32 to vector<32x256xf32>
    %9 = arith.cmpf oge, %7, %8 : vector<32x256xf32>
    %cst_6 = arith.constant 0.00999999977 : f32
    %10 = vector.broadcast %cst_6 : f32 to vector<32x256xf32>
    %11 = arith.mulf %10, %7 : vector<32x256xf32>
    %12 = arith.select %9, %7, %11 : vector<32x256xi1>, vector<32x256xf32>
    %13 = arith.truncf %12 : vector<32x256xf32> to vector<32x256xbf16>
    %c0_7 = arith.constant 0 : index
    %c0_8 = arith.constant 0 : index
    %14 = vector.load %arg4[%c0_7, %c0_8] : memref<32x256xbf16, #tpu.memory_space<vmem>>, vector<32x256xbf16>
    tpu.vector_store %arg4[%c0_7, %c0_8], %13 {strides = array<i32>} : memref<32x256xbf16, #tpu.memory_space<vmem>>, vector<32x256xbf16>,
    return
  }
  func.func @transform_0(%arg0: i32) -> (i32, i32) {
    %c0_i32 = arith.constant 0 : i32
    %c0_i32_0 = arith.constant 0 : i32
    %c0_i32_1 = arith.constant 0 : i32
    return %c0_i32, %c0_i32_0 : i32, i32
  }
  func.func @transform_1(%arg0: i32) -> (i32, i32) {
    %c0_i32 = arith.constant 0 : i32
    %c0_i32_0 = arith.constant 0 : i32
    return %c0_i32, %arg0 : i32, i32
  }
  func.func @transform_2(%arg0: i32) -> (i32, i32) {
    %c0_i32 = arith.constant 0 : i32
    %c0_i32_0 = arith.constant 0 : i32
    %c0_i32_1 = arith.constant 0 : i32
    return %c0_i32, %c0_i32_0 : i32, i32
  }
  func.func @transform_3(%arg0: i32) -> (i32, i32) {
    %c0_i32 = arith.constant 0 : i32
    %c0_i32_0 = arith.constant 0 : i32
    return %c0_i32, %arg0 : i32, i32
  }
}

module attributes {stable_mosaic.version = 11 : i64} {
  func.func @_max4_kernel(%arg0: i32, %arg1: memref<32x128xbf16, #tpu.memory_space<vmem>>, %arg2: memref<32x128xbf16, #tpu.memory_space<vmem>>, %arg3: memref<32x128xbf16, #tpu.memory_space<vmem>>, %arg4: memref<32x128xbf16, #tpu.memory_space<vmem>>, %arg5: memref<32x128xbf16, #tpu.memory_space<vmem>>) attributes {dimension_semantics = [#tpu.dimension_semantics<parallel>], iteration_bounds = array<i64: 1>, scalar_prefetch = 0 : i64, scratch_operands = 0 : i64, tpu.core_type = #tpu.core_type<tc>, window_params = [{transform_indices = @transform_0, window_bounds = array<i64: 32, 128>}, {transform_indices = @transform_1, window_bounds = array<i64: 32, 128>}, {transform_indices = @transform_2, window_bounds = array<i64: 32, 128>}, {transform_indices = @transform_3, window_bounds = array<i64: 32, 128>}, {transform_indices = @transform_4, window_bounds = array<i64: 32, 128>}]} {
    %c0 = arith.constant 0 : index
    %c0_0 = arith.constant 0 : index
    %0 = vector.load %arg1[%c0, %c0_0] : memref<32x128xbf16, #tpu.memory_space<vmem>>, vector<32x128xbf16>
    %c0_1 = arith.constant 0 : index
    %c0_2 = arith.constant 0 : index
    %1 = vector.load %arg2[%c0_1, %c0_2] : memref<32x128xbf16, #tpu.memory_space<vmem>>, vector<32x128xbf16>
    %2 = arith.maximumf %0, %1 : vector<32x128xbf16>
    %c0_3 = arith.constant 0 : index
    %c0_4 = arith.constant 0 : index
    %3 = vector.load %arg3[%c0_3, %c0_4] : memref<32x128xbf16, #tpu.memory_space<vmem>>, vector<32x128xbf16>
    %c0_5 = arith.constant 0 : index
    %c0_6 = arith.constant 0 : index
    %4 = vector.load %arg4[%c0_5, %c0_6] : memref<32x128xbf16, #tpu.memory_space<vmem>>, vector<32x128xbf16>
    %5 = arith.maximumf %3, %4 : vector<32x128xbf16>
    %6 = arith.maximumf %2, %5 : vector<32x128xbf16>
    %c0_7 = arith.constant 0 : index
    %c0_8 = arith.constant 0 : index
    %7 = vector.load %arg5[%c0_7, %c0_8] : memref<32x128xbf16, #tpu.memory_space<vmem>>, vector<32x128xbf16>
    tpu.vector_store %arg5[%c0_7, %c0_8], %6 {strides = array<i32>} : memref<32x128xbf16, #tpu.memory_space<vmem>>, vector<32x128xbf16>,
    return
  }
  func.func @transform_0(%arg0: i32) -> (i32, i32) {
    %c0_i32 = arith.constant 0 : i32
    %c0_i32_0 = arith.constant 0 : i32
    return %arg0, %c0_i32 : i32, i32
  }
  func.func @transform_1(%arg0: i32) -> (i32, i32) {
    %c0_i32 = arith.constant 0 : i32
    %c0_i32_0 = arith.constant 0 : i32
    return %arg0, %c0_i32 : i32, i32
  }
  func.func @transform_2(%arg0: i32) -> (i32, i32) {
    %c0_i32 = arith.constant 0 : i32
    %c0_i32_0 = arith.constant 0 : i32
    return %arg0, %c0_i32 : i32, i32
  }
  func.func @transform_3(%arg0: i32) -> (i32, i32) {
    %c0_i32 = arith.constant 0 : i32
    %c0_i32_0 = arith.constant 0 : i32
    return %arg0, %c0_i32 : i32, i32
  }
  func.func @transform_4(%arg0: i32) -> (i32, i32) {
    %c0_i32 = arith.constant 0 : i32
    %c0_i32_0 = arith.constant 0 : i32
    return %arg0, %c0_i32 : i32, i32
  }
}

module attributes {stable_mosaic.version = 11 : i64} {
  func.func @_matmul_bias_act_kernel(%arg0: i32, %arg1: memref<32x800xbf16, #tpu.memory_space<vmem>>, %arg2: memref<800x128xbf16, #tpu.memory_space<vmem>>, %arg3: memref<32x1xf32, #tpu.memory_space<vmem>>, %arg4: memref<32x128xbf16, #tpu.memory_space<vmem>>) attributes {dimension_semantics = [#tpu.dimension_semantics<parallel>], iteration_bounds = array<i64: 1>, scalar_prefetch = 0 : i64, scratch_operands = 0 : i64, tpu.core_type = #tpu.core_type<tc>, window_params = [{pipeline_mode = #tpu.pipeline_mode<synchronous>, transform_indices = @transform_0, window_bounds = array<i64: 32, 800>}, {transform_indices = @transform_1, window_bounds = array<i64: 800, 128>}, {pipeline_mode = #tpu.pipeline_mode<synchronous>, transform_indices = @transform_2, window_bounds = array<i64: 32, 1>}, {transform_indices = @transform_3, window_bounds = array<i64: 32, 128>}]} {
    %c0 = arith.constant 0 : index
    %c0_0 = arith.constant 0 : index
    %0 = vector.load %arg1[%c0, %c0_0] : memref<32x800xbf16, #tpu.memory_space<vmem>>, vector<32x800xbf16>
    %1 = arith.extf %0 : vector<32x800xbf16> to vector<32x800xf32>
    %c0_1 = arith.constant 0 : index
    %c0_2 = arith.constant 0 : index
    %2 = vector.load %arg2[%c0_1, %c0_2] : memref<800x128xbf16, #tpu.memory_space<vmem>>, vector<800x128xbf16>
    %3 = arith.extf %2 : vector<800x128xbf16> to vector<800x128xf32>
    %cst = arith.constant dense<0.000000e+00> : vector<32x128xf32>
    %4 = tpu.matmul %1, %3, %cst {dimension_numbers = #tpu.dot_dimension_numbers<[1], [0], [0], [1], [0, 0, 1, 1], [], []>} : vector<32x800xf32>, vector<800x128xf32>, vector<32x128xf32> -> vector<32x128xf32>
    %c0_3 = arith.constant 0 : index
    %c0_4 = arith.constant 0 : index
    %5 = vector.load %arg3[%c0_3, %c0_4] : memref<32x1xf32, #tpu.memory_space<vmem>>, vector<32x1xf32>
    %6 = vector.broadcast %5 : vector<32x1xf32> to vector<32x128xf32>
    %7 = arith.addf %4, %6 : vector<32x128xf32>
    %cst_5 = arith.constant 0.000000e+00 : f32
    %8 = vector.broadcast %cst_5 : f32 to vector<32x128xf32>
    %9 = arith.cmpf oge, %7, %8 : vector<32x128xf32>
    %cst_6 = arith.constant 0.00999999977 : f32
    %10 = vector.broadcast %cst_6 : f32 to vector<32x128xf32>
    %11 = arith.mulf %10, %7 : vector<32x128xf32>
    %12 = arith.select %9, %7, %11 : vector<32x128xi1>, vector<32x128xf32>
    %13 = arith.truncf %12 : vector<32x128xf32> to vector<32x128xbf16>
    %c0_7 = arith.constant 0 : index
    %c0_8 = arith.constant 0 : index
    %14 = vector.load %arg4[%c0_7, %c0_8] : memref<32x128xbf16, #tpu.memory_space<vmem>>, vector<32x128xbf16>
    tpu.vector_store %arg4[%c0_7, %c0_8], %13 {strides = array<i32>} : memref<32x128xbf16, #tpu.memory_space<vmem>>, vector<32x128xbf16>,
    return
  }
  func.func @transform_0(%arg0: i32) -> (i32, i32) {
    %c0_i32 = arith.constant 0 : i32
    %c0_i32_0 = arith.constant 0 : i32
    %c0_i32_1 = arith.constant 0 : i32
    return %c0_i32, %c0_i32_0 : i32, i32
  }
  func.func @transform_1(%arg0: i32) -> (i32, i32) {
    %c0_i32 = arith.constant 0 : i32
    %c0_i32_0 = arith.constant 0 : i32
    return %c0_i32, %arg0 : i32, i32
  }
  func.func @transform_2(%arg0: i32) -> (i32, i32) {
    %c0_i32 = arith.constant 0 : i32
    %c0_i32_0 = arith.constant 0 : i32
    %c0_i32_1 = arith.constant 0 : i32
    return %c0_i32, %c0_i32_0 : i32, i32
  }
  func.func @transform_3(%arg0: i32) -> (i32, i32) {
    %c0_i32 = arith.constant 0 : i32
    %c0_i32_0 = arith.constant 0 : i32
    return %c0_i32, %arg0 : i32, i32
  }
}

module attributes {stable_mosaic.version = 11 : i64} {
  func.func @_max4_kernel(%arg0: i32, %arg1: memref<8x128xbf16, #tpu.memory_space<vmem>>, %arg2: memref<8x128xbf16, #tpu.memory_space<vmem>>, %arg3: memref<8x128xbf16, #tpu.memory_space<vmem>>, %arg4: memref<8x128xbf16, #tpu.memory_space<vmem>>, %arg5: memref<8x128xbf16, #tpu.memory_space<vmem>>) attributes {dimension_semantics = [#tpu.dimension_semantics<parallel>], iteration_bounds = array<i64: 1>, scalar_prefetch = 0 : i64, scratch_operands = 0 : i64, tpu.core_type = #tpu.core_type<tc>, window_params = [{transform_indices = @transform_0, window_bounds = array<i64: 8, 128>}, {transform_indices = @transform_1, window_bounds = array<i64: 8, 128>}, {transform_indices = @transform_2, window_bounds = array<i64: 8, 128>}, {transform_indices = @transform_3, window_bounds = array<i64: 8, 128>}, {transform_indices = @transform_4, window_bounds = array<i64: 8, 128>}]} {
    %c0 = arith.constant 0 : index
    %c0_0 = arith.constant 0 : index
    %0 = vector.load %arg1[%c0, %c0_0] : memref<8x128xbf16, #tpu.memory_space<vmem>>, vector<8x128xbf16>
    %c0_1 = arith.constant 0 : index
    %c0_2 = arith.constant 0 : index
    %1 = vector.load %arg2[%c0_1, %c0_2] : memref<8x128xbf16, #tpu.memory_space<vmem>>, vector<8x128xbf16>
    %2 = arith.maximumf %0, %1 : vector<8x128xbf16>
    %c0_3 = arith.constant 0 : index
    %c0_4 = arith.constant 0 : index
    %3 = vector.load %arg3[%c0_3, %c0_4] : memref<8x128xbf16, #tpu.memory_space<vmem>>, vector<8x128xbf16>
    %c0_5 = arith.constant 0 : index
    %c0_6 = arith.constant 0 : index
    %4 = vector.load %arg4[%c0_5, %c0_6] : memref<8x128xbf16, #tpu.memory_space<vmem>>, vector<8x128xbf16>
    %5 = arith.maximumf %3, %4 : vector<8x128xbf16>
    %6 = arith.maximumf %2, %5 : vector<8x128xbf16>
    %c0_7 = arith.constant 0 : index
    %c0_8 = arith.constant 0 : index
    %7 = vector.load %arg5[%c0_7, %c0_8] : memref<8x128xbf16, #tpu.memory_space<vmem>>, vector<8x128xbf16>
    tpu.vector_store %arg5[%c0_7, %c0_8], %6 {strides = array<i32>} : memref<8x128xbf16, #tpu.memory_space<vmem>>, vector<8x128xbf16>,
    return
  }
  func.func @transform_0(%arg0: i32) -> (i32, i32) {
    %c0_i32 = arith.constant 0 : i32
    %c0_i32_0 = arith.constant 0 : i32
    return %arg0, %c0_i32 : i32, i32
  }
  func.func @transform_1(%arg0: i32) -> (i32, i32) {
    %c0_i32 = arith.constant 0 : i32
    %c0_i32_0 = arith.constant 0 : i32
    return %arg0, %c0_i32 : i32, i32
  }
  func.func @transform_2(%arg0: i32) -> (i32, i32) {
    %c0_i32 = arith.constant 0 : i32
    %c0_i32_0 = arith.constant 0 : i32
    return %arg0, %c0_i32 : i32, i32
  }
  func.func @transform_3(%arg0: i32) -> (i32, i32) {
    %c0_i32 = arith.constant 0 : i32
    %c0_i32_0 = arith.constant 0 : i32
    return %arg0, %c0_i32 : i32, i32
  }
  func.func @transform_4(%arg0: i32) -> (i32, i32) {
    %c0_i32 = arith.constant 0 : i32
    %c0_i32_0 = arith.constant 0 : i32
    return %arg0, %c0_i32 : i32, i32
  }
}

module attributes {stable_mosaic.version = 11 : i64} {
  func.func @_matmul_bias_act_kernel(%arg0: i32, %arg1: memref<16x288xbf16, #tpu.memory_space<vmem>>, %arg2: memref<288x32xbf16, #tpu.memory_space<vmem>>, %arg3: memref<16x1xf32, #tpu.memory_space<vmem>>, %arg4: memref<16x32xbf16, #tpu.memory_space<vmem>>) attributes {dimension_semantics = [#tpu.dimension_semantics<parallel>], iteration_bounds = array<i64: 1>, scalar_prefetch = 0 : i64, scratch_operands = 0 : i64, tpu.core_type = #tpu.core_type<tc>, window_params = [{pipeline_mode = #tpu.pipeline_mode<synchronous>, transform_indices = @transform_0, window_bounds = array<i64: 16, 288>}, {transform_indices = @transform_1, window_bounds = array<i64: 288, 32>}, {pipeline_mode = #tpu.pipeline_mode<synchronous>, transform_indices = @transform_2, window_bounds = array<i64: 16, 1>}, {transform_indices = @transform_3, window_bounds = array<i64: 16, 32>}]} {
    %c0 = arith.constant 0 : index
    %c0_0 = arith.constant 0 : index
    %0 = vector.load %arg1[%c0, %c0_0] : memref<16x288xbf16, #tpu.memory_space<vmem>>, vector<16x288xbf16>
    %1 = arith.extf %0 : vector<16x288xbf16> to vector<16x288xf32>
    %c0_1 = arith.constant 0 : index
    %c0_2 = arith.constant 0 : index
    %2 = vector.load %arg2[%c0_1, %c0_2] : memref<288x32xbf16, #tpu.memory_space<vmem>>, vector<288x32xbf16>
    %3 = arith.extf %2 : vector<288x32xbf16> to vector<288x32xf32>
    %cst = arith.constant dense<0.000000e+00> : vector<16x32xf32>
    %4 = tpu.matmul %1, %3, %cst {dimension_numbers = #tpu.dot_dimension_numbers<[1], [0], [0], [1], [0, 0, 1, 1], [], []>} : vector<16x288xf32>, vector<288x32xf32>, vector<16x32xf32> -> vector<16x32xf32>
    %c0_3 = arith.constant 0 : index
    %c0_4 = arith.constant 0 : index
    %5 = vector.load %arg3[%c0_3, %c0_4] : memref<16x1xf32, #tpu.memory_space<vmem>>, vector<16x1xf32>
    %6 = vector.broadcast %5 : vector<16x1xf32> to vector<16x32xf32>
    %7 = arith.addf %4, %6 : vector<16x32xf32>
    %cst_5 = arith.constant 0.000000e+00 : f32
    %8 = vector.broadcast %cst_5 : f32 to vector<16x32xf32>
    %9 = arith.cmpf oge, %7, %8 : vector<16x32xf32>
    %cst_6 = arith.constant 0.00999999977 : f32
    %10 = vector.broadcast %cst_6 : f32 to vector<16x32xf32>
    %11 = arith.mulf %10, %7 : vector<16x32xf32>
    %12 = arith.select %9, %7, %11 : vector<16x32xi1>, vector<16x32xf32>
    %13 = arith.truncf %12 : vector<16x32xf32> to vector<16x32xbf16>
    %c0_7 = arith.constant 0 : index
    %c0_8 = arith.constant 0 : index
    %14 = vector.load %arg4[%c0_7, %c0_8] : memref<16x32xbf16, #tpu.memory_space<vmem>>, vector<16x32xbf16>
    tpu.vector_store %arg4[%c0_7, %c0_8], %13 {strides = array<i32>} : memref<16x32xbf16, #tpu.memory_space<vmem>>, vector<16x32xbf16>,
    return
  }
  func.func @transform_0(%arg0: i32) -> (i32, i32) {
    %c0_i32 = arith.constant 0 : i32
    %c0_i32_0 = arith.constant 0 : i32
    %c0_i32_1 = arith.constant 0 : i32
    return %c0_i32, %c0_i32_0 : i32, i32
  }
  func.func @transform_1(%arg0: i32) -> (i32, i32) {
    %c0_i32 = arith.constant 0 : i32
    %c0_i32_0 = arith.constant 0 : i32
    return %c0_i32, %arg0 : i32, i32
  }
  func.func @transform_2(%arg0: i32) -> (i32, i32) {
    %c0_i32 = arith.constant 0 : i32
    %c0_i32_0 = arith.constant 0 : i32
    %c0_i32_1 = arith.constant 0 : i32
    return %c0_i32, %c0_i32_0 : i32, i32
  }
  func.func @transform_3(%arg0: i32) -> (i32, i32) {
    %c0_i32 = arith.constant 0 : i32
    %c0_i32_0 = arith.constant 0 : i32
    return %c0_i32, %arg0 : i32, i32
  }
}

module attributes {stable_mosaic.version = 11 : i64} {
  func.func @_matmul_bias_act_kernel(%arg0: i32, %arg1: memref<8x144xbf16, #tpu.memory_space<vmem>>, %arg2: memref<144x8xbf16, #tpu.memory_space<vmem>>, %arg3: memref<8x1xf32, #tpu.memory_space<vmem>>, %arg4: memref<8x8xbf16, #tpu.memory_space<vmem>>) attributes {dimension_semantics = [#tpu.dimension_semantics<parallel>], iteration_bounds = array<i64: 1>, scalar_prefetch = 0 : i64, scratch_operands = 0 : i64, tpu.core_type = #tpu.core_type<tc>, window_params = [{pipeline_mode = #tpu.pipeline_mode<synchronous>, transform_indices = @transform_0, window_bounds = array<i64: 8, 144>}, {transform_indices = @transform_1, window_bounds = array<i64: 144, 8>}, {pipeline_mode = #tpu.pipeline_mode<synchronous>, transform_indices = @transform_2, window_bounds = array<i64: 8, 1>}, {transform_indices = @transform_3, window_bounds = array<i64: 8, 8>}]} {
    %c0 = arith.constant 0 : index
    %c0_0 = arith.constant 0 : index
    %0 = vector.load %arg1[%c0, %c0_0] : memref<8x144xbf16, #tpu.memory_space<vmem>>, vector<8x144xbf16>
    %1 = arith.extf %0 : vector<8x144xbf16> to vector<8x144xf32>
    %c0_1 = arith.constant 0 : index
    %c0_2 = arith.constant 0 : index
    %2 = vector.load %arg2[%c0_1, %c0_2] : memref<144x8xbf16, #tpu.memory_space<vmem>>, vector<144x8xbf16>
    %3 = arith.extf %2 : vector<144x8xbf16> to vector<144x8xf32>
    %cst = arith.constant dense<0.000000e+00> : vector<8x8xf32>
    %4 = tpu.matmul %1, %3, %cst {dimension_numbers = #tpu.dot_dimension_numbers<[1], [0], [0], [1], [0, 0, 1, 1], [], []>} : vector<8x144xf32>, vector<144x8xf32>, vector<8x8xf32> -> vector<8x8xf32>
    %c0_3 = arith.constant 0 : index
    %c0_4 = arith.constant 0 : index
    %5 = vector.load %arg3[%c0_3, %c0_4] : memref<8x1xf32, #tpu.memory_space<vmem>>, vector<8x1xf32>
    %6 = vector.broadcast %5 : vector<8x1xf32> to vector<8x8xf32>
    %7 = arith.addf %4, %6 : vector<8x8xf32>
    %cst_5 = arith.constant 0.000000e+00 : f32
    %8 = vector.broadcast %cst_5 : f32 to vector<8x8xf32>
    %9 = arith.maximumf %7, %8 : vector<8x8xf32>
    %10 = arith.truncf %9 : vector<8x8xf32> to vector<8x8xbf16>
    %c0_6 = arith.constant 0 : index
    %c0_7 = arith.constant 0 : index
    %11 = vector.load %arg4[%c0_6, %c0_7] : memref<8x8xbf16, #tpu.memory_space<vmem>>, vector<8x8xbf16>
    tpu.vector_store %arg4[%c0_6, %c0_7], %10 {strides = array<i32>} : memref<8x8xbf16, #tpu.memory_space<vmem>>, vector<8x8xbf16>,
    return
  }
  func.func @transform_0(%arg0: i32) -> (i32, i32) {
    %c0_i32 = arith.constant 0 : i32
    %c0_i32_0 = arith.constant 0 : i32
    %c0_i32_1 = arith.constant 0 : i32
    return %c0_i32, %c0_i32_0 : i32, i32
  }
  func.func @transform_1(%arg0: i32) -> (i32, i32) {
    %c0_i32 = arith.constant 0 : i32
    %c0_i32_0 = arith.constant 0 : i32
    return %c0_i32, %arg0 : i32, i32
  }
  func.func @transform_2(%arg0: i32) -> (i32, i32) {
    %c0_i32 = arith.constant 0 : i32
    %c0_i32_0 = arith.constant 0 : i32
    %c0_i32_1 = arith.constant 0 : i32
    return %c0_i32, %c0_i32_0 : i32, i32
  }
  func.func @transform_3(%arg0: i32) -> (i32, i32) {
    %c0_i32 = arith.constant 0 : i32
    %c0_i32_0 = arith.constant 0 : i32
    return %c0_i32, %arg0 : i32, i32
  }
}

module attributes {stable_mosaic.version = 11 : i64} {
  func.func @_matmul_bias_act_kernel(%arg0: i32, %arg1: memref<8x80xbf16, #tpu.memory_space<vmem>>, %arg2: memref<80x8xbf16, #tpu.memory_space<vmem>>, %arg3: memref<8x1xf32, #tpu.memory_space<vmem>>, %arg4: memref<8x8xbf16, #tpu.memory_space<vmem>>) attributes {dimension_semantics = [#tpu.dimension_semantics<parallel>], iteration_bounds = array<i64: 1>, scalar_prefetch = 0 : i64, scratch_operands = 0 : i64, tpu.core_type = #tpu.core_type<tc>, window_params = [{pipeline_mode = #tpu.pipeline_mode<synchronous>, transform_indices = @transform_0, window_bounds = array<i64: 8, 80>}, {transform_indices = @transform_1, window_bounds = array<i64: 80, 8>}, {pipeline_mode = #tpu.pipeline_mode<synchronous>, transform_indices = @transform_2, window_bounds = array<i64: 8, 1>}, {transform_indices = @transform_3, window_bounds = array<i64: 8, 8>}]} {
    %c0 = arith.constant 0 : index
    %c0_0 = arith.constant 0 : index
    %0 = vector.load %arg1[%c0, %c0_0] : memref<8x80xbf16, #tpu.memory_space<vmem>>, vector<8x80xbf16>
    %1 = arith.extf %0 : vector<8x80xbf16> to vector<8x80xf32>
    %c0_1 = arith.constant 0 : index
    %c0_2 = arith.constant 0 : index
    %2 = vector.load %arg2[%c0_1, %c0_2] : memref<80x8xbf16, #tpu.memory_space<vmem>>, vector<80x8xbf16>
    %3 = arith.extf %2 : vector<80x8xbf16> to vector<80x8xf32>
    %cst = arith.constant dense<0.000000e+00> : vector<8x8xf32>
    %4 = tpu.matmul %1, %3, %cst {dimension_numbers = #tpu.dot_dimension_numbers<[1], [0], [0], [1], [0, 0, 1, 1], [], []>} : vector<8x80xf32>, vector<80x8xf32>, vector<8x8xf32> -> vector<8x8xf32>
    %c0_3 = arith.constant 0 : index
    %c0_4 = arith.constant 0 : index
    %5 = vector.load %arg3[%c0_3, %c0_4] : memref<8x1xf32, #tpu.memory_space<vmem>>, vector<8x1xf32>
    %6 = vector.broadcast %5 : vector<8x1xf32> to vector<8x8xf32>
    %7 = arith.addf %4, %6 : vector<8x8xf32>
    %cst_5 = arith.constant 0.000000e+00 : f32
    %8 = vector.broadcast %cst_5 : f32 to vector<8x8xf32>
    %9 = arith.cmpf oge, %7, %8 : vector<8x8xf32>
    %cst_6 = arith.constant 0.00999999977 : f32
    %10 = vector.broadcast %cst_6 : f32 to vector<8x8xf32>
    %11 = arith.mulf %10, %7 : vector<8x8xf32>
    %12 = arith.select %9, %7, %11 : vector<8x8xi1>, vector<8x8xf32>
    %13 = arith.truncf %12 : vector<8x8xf32> to vector<8x8xbf16>
    %c0_7 = arith.constant 0 : index
    %c0_8 = arith.constant 0 : index
    %14 = vector.load %arg4[%c0_7, %c0_8] : memref<8x8xbf16, #tpu.memory_space<vmem>>, vector<8x8xbf16>
    tpu.vector_store %arg4[%c0_7, %c0_8], %13 {strides = array<i32>} : memref<8x8xbf16, #tpu.memory_space<vmem>>, vector<8x8xbf16>,
    return
  }
  func.func @transform_0(%arg0: i32) -> (i32, i32) {
    %c0_i32 = arith.constant 0 : i32
    %c0_i32_0 = arith.constant 0 : i32
    %c0_i32_1 = arith.constant 0 : i32
    return %c0_i32, %c0_i32_0 : i32, i32
  }
  func.func @transform_1(%arg0: i32) -> (i32, i32) {
    %c0_i32 = arith.constant 0 : i32
    %c0_i32_0 = arith.constant 0 : i32
    return %c0_i32, %arg0 : i32, i32
  }
  func.func @transform_2(%arg0: i32) -> (i32, i32) {
    %c0_i32 = arith.constant 0 : i32
    %c0_i32_0 = arith.constant 0 : i32
    %c0_i32_1 = arith.constant 0 : i32
    return %c0_i32, %c0_i32_0 : i32, i32
  }
  func.func @transform_3(%arg0: i32) -> (i32, i32) {
    %c0_i32 = arith.constant 0 : i32
    %c0_i32_0 = arith.constant 0 : i32
    return %c0_i32, %arg0 : i32, i32
  }
}

module attributes {stable_mosaic.version = 11 : i64} {
  func.func @_matmul_bias_act_kernel(%arg0: i32, %arg1: memref<16x80xbf16, #tpu.memory_space<vmem>>, %arg2: memref<80x32xbf16, #tpu.memory_space<vmem>>, %arg3: memref<16x1xf32, #tpu.memory_space<vmem>>, %arg4: memref<16x32xbf16, #tpu.memory_space<vmem>>) attributes {dimension_semantics = [#tpu.dimension_semantics<parallel>], iteration_bounds = array<i64: 1>, scalar_prefetch = 0 : i64, scratch_operands = 0 : i64, tpu.core_type = #tpu.core_type<tc>, window_params = [{pipeline_mode = #tpu.pipeline_mode<synchronous>, transform_indices = @transform_0, window_bounds = array<i64: 16, 80>}, {transform_indices = @transform_1, window_bounds = array<i64: 80, 32>}, {pipeline_mode = #tpu.pipeline_mode<synchronous>, transform_indices = @transform_2, window_bounds = array<i64: 16, 1>}, {transform_indices = @transform_3, window_bounds = array<i64: 16, 32>}]} {
    %c0 = arith.constant 0 : index
    %c0_0 = arith.constant 0 : index
    %0 = vector.load %arg1[%c0, %c0_0] : memref<16x80xbf16, #tpu.memory_space<vmem>>, vector<16x80xbf16>
    %1 = arith.extf %0 : vector<16x80xbf16> to vector<16x80xf32>
    %c0_1 = arith.constant 0 : index
    %c0_2 = arith.constant 0 : index
    %2 = vector.load %arg2[%c0_1, %c0_2] : memref<80x32xbf16, #tpu.memory_space<vmem>>, vector<80x32xbf16>
    %3 = arith.extf %2 : vector<80x32xbf16> to vector<80x32xf32>
    %cst = arith.constant dense<0.000000e+00> : vector<16x32xf32>
    %4 = tpu.matmul %1, %3, %cst {dimension_numbers = #tpu.dot_dimension_numbers<[1], [0], [0], [1], [0, 0, 1, 1], [], []>} : vector<16x80xf32>, vector<80x32xf32>, vector<16x32xf32> -> vector<16x32xf32>
    %c0_3 = arith.constant 0 : index
    %c0_4 = arith.constant 0 : index
    %5 = vector.load %arg3[%c0_3, %c0_4] : memref<16x1xf32, #tpu.memory_space<vmem>>, vector<16x1xf32>
    %6 = vector.broadcast %5 : vector<16x1xf32> to vector<16x32xf32>
    %7 = arith.addf %4, %6 : vector<16x32xf32>
    %cst_5 = arith.constant 0.000000e+00 : f32
    %8 = vector.broadcast %cst_5 : f32 to vector<16x32xf32>
    %9 = arith.cmpf oge, %7, %8 : vector<16x32xf32>
    %cst_6 = arith.constant 0.00999999977 : f32
    %10 = vector.broadcast %cst_6 : f32 to vector<16x32xf32>
    %11 = arith.mulf %10, %7 : vector<16x32xf32>
    %12 = arith.select %9, %7, %11 : vector<16x32xi1>, vector<16x32xf32>
    %13 = arith.truncf %12 : vector<16x32xf32> to vector<16x32xbf16>
    %c0_7 = arith.constant 0 : index
    %c0_8 = arith.constant 0 : index
    %14 = vector.load %arg4[%c0_7, %c0_8] : memref<16x32xbf16, #tpu.memory_space<vmem>>, vector<16x32xbf16>
    tpu.vector_store %arg4[%c0_7, %c0_8], %13 {strides = array<i32>} : memref<16x32xbf16, #tpu.memory_space<vmem>>, vector<16x32xbf16>,
    return
  }
  func.func @transform_0(%arg0: i32) -> (i32, i32) {
    %c0_i32 = arith.constant 0 : i32
    %c0_i32_0 = arith.constant 0 : i32
    %c0_i32_1 = arith.constant 0 : i32
    return %c0_i32, %c0_i32_0 : i32, i32
  }
  func.func @transform_1(%arg0: i32) -> (i32, i32) {
    %c0_i32 = arith.constant 0 : i32
    %c0_i32_0 = arith.constant 0 : i32
    return %c0_i32, %arg0 : i32, i32
  }
  func.func @transform_2(%arg0: i32) -> (i32, i32) {
    %c0_i32 = arith.constant 0 : i32
    %c0_i32_0 = arith.constant 0 : i32
    %c0_i32_1 = arith.constant 0 : i32
    return %c0_i32, %c0_i32_0 : i32, i32
  }
  func.func @transform_3(%arg0: i32) -> (i32, i32) {
    %c0_i32 = arith.constant 0 : i32
    %c0_i32_0 = arith.constant 0 : i32
    return %c0_i32, %arg0 : i32, i32
  }
}

module attributes {stable_mosaic.version = 11 : i64} {
  func.func @_matmul_bias_act_kernel(%arg0: i32, %arg1: memref<32x400xbf16, #tpu.memory_space<vmem>>, %arg2: memref<400x128xbf16, #tpu.memory_space<vmem>>, %arg3: memref<32x1xf32, #tpu.memory_space<vmem>>, %arg4: memref<32x128xbf16, #tpu.memory_space<vmem>>) attributes {dimension_semantics = [#tpu.dimension_semantics<parallel>], iteration_bounds = array<i64: 1>, scalar_prefetch = 0 : i64, scratch_operands = 0 : i64, tpu.core_type = #tpu.core_type<tc>, window_params = [{pipeline_mode = #tpu.pipeline_mode<synchronous>, transform_indices = @transform_0, window_bounds = array<i64: 32, 400>}, {transform_indices = @transform_1, window_bounds = array<i64: 400, 128>}, {pipeline_mode = #tpu.pipeline_mode<synchronous>, transform_indices = @transform_2, window_bounds = array<i64: 32, 1>}, {transform_indices = @transform_3, window_bounds = array<i64: 32, 128>}]} {
    %c0 = arith.constant 0 : index
    %c0_0 = arith.constant 0 : index
    %0 = vector.load %arg1[%c0, %c0_0] : memref<32x400xbf16, #tpu.memory_space<vmem>>, vector<32x400xbf16>
    %1 = arith.extf %0 : vector<32x400xbf16> to vector<32x400xf32>
    %c0_1 = arith.constant 0 : index
    %c0_2 = arith.constant 0 : index
    %2 = vector.load %arg2[%c0_1, %c0_2] : memref<400x128xbf16, #tpu.memory_space<vmem>>, vector<400x128xbf16>
    %3 = arith.extf %2 : vector<400x128xbf16> to vector<400x128xf32>
    %cst = arith.constant dense<0.000000e+00> : vector<32x128xf32>
    %4 = tpu.matmul %1, %3, %cst {dimension_numbers = #tpu.dot_dimension_numbers<[1], [0], [0], [1], [0, 0, 1, 1], [], []>} : vector<32x400xf32>, vector<400x128xf32>, vector<32x128xf32> -> vector<32x128xf32>
    %c0_3 = arith.constant 0 : index
    %c0_4 = arith.constant 0 : index
    %5 = vector.load %arg3[%c0_3, %c0_4] : memref<32x1xf32, #tpu.memory_space<vmem>>, vector<32x1xf32>
    %6 = vector.broadcast %5 : vector<32x1xf32> to vector<32x128xf32>
    %7 = arith.addf %4, %6 : vector<32x128xf32>
    %cst_5 = arith.constant 0.000000e+00 : f32
    %8 = vector.broadcast %cst_5 : f32 to vector<32x128xf32>
    %9 = arith.cmpf oge, %7, %8 : vector<32x128xf32>
    %cst_6 = arith.constant 0.00999999977 : f32
    %10 = vector.broadcast %cst_6 : f32 to vector<32x128xf32>
    %11 = arith.mulf %10, %7 : vector<32x128xf32>
    %12 = arith.select %9, %7, %11 : vector<32x128xi1>, vector<32x128xf32>
    %13 = arith.truncf %12 : vector<32x128xf32> to vector<32x128xbf16>
    %c0_7 = arith.constant 0 : index
    %c0_8 = arith.constant 0 : index
    %14 = vector.load %arg4[%c0_7, %c0_8] : memref<32x128xbf16, #tpu.memory_space<vmem>>, vector<32x128xbf16>
    tpu.vector_store %arg4[%c0_7, %c0_8], %13 {strides = array<i32>} : memref<32x128xbf16, #tpu.memory_space<vmem>>, vector<32x128xbf16>,
    return
  }
  func.func @transform_0(%arg0: i32) -> (i32, i32) {
    %c0_i32 = arith.constant 0 : i32
    %c0_i32_0 = arith.constant 0 : i32
    %c0_i32_1 = arith.constant 0 : i32
    return %c0_i32, %c0_i32_0 : i32, i32
  }
  func.func @transform_1(%arg0: i32) -> (i32, i32) {
    %c0_i32 = arith.constant 0 : i32
    %c0_i32_0 = arith.constant 0 : i32
    return %c0_i32, %arg0 : i32, i32
  }
  func.func @transform_2(%arg0: i32) -> (i32, i32) {
    %c0_i32 = arith.constant 0 : i32
    %c0_i32_0 = arith.constant 0 : i32
    %c0_i32_1 = arith.constant 0 : i32
    return %c0_i32, %c0_i32_0 : i32, i32
  }
  func.func @transform_3(%arg0: i32) -> (i32, i32) {
    %c0_i32 = arith.constant 0 : i32
    %c0_i32_0 = arith.constant 0 : i32
    return %c0_i32, %arg0 : i32, i32
  }
}

module attributes {stable_mosaic.version = 11 : i64} {
  func.func @_matmul_bias_act_kernel(%arg0: i32, %arg1: memref<8x1568xbf16, #tpu.memory_space<vmem>>, %arg2: memref<1568x256xbf16, #tpu.memory_space<vmem>>, %arg3: memref<8x1xf32, #tpu.memory_space<vmem>>, %arg4: memref<8x256xf32, #tpu.memory_space<vmem>>) attributes {dimension_semantics = [#tpu.dimension_semantics<parallel>], iteration_bounds = array<i64: 2>, scalar_prefetch = 0 : i64, scratch_operands = 0 : i64, tpu.core_type = #tpu.core_type<tc>, window_params = [{pipeline_mode = #tpu.pipeline_mode<synchronous>, transform_indices = @transform_0, window_bounds = array<i64: 8, 1568>}, {transform_indices = @transform_1, window_bounds = array<i64: 1568, 256>}, {pipeline_mode = #tpu.pipeline_mode<synchronous>, transform_indices = @transform_2, window_bounds = array<i64: 8, 1>}, {transform_indices = @transform_3, window_bounds = array<i64: 8, 256>}]} {
    %c0 = arith.constant 0 : index
    %c0_0 = arith.constant 0 : index
    %0 = vector.load %arg1[%c0, %c0_0] : memref<8x1568xbf16, #tpu.memory_space<vmem>>, vector<8x1568xbf16>
    %1 = arith.extf %0 : vector<8x1568xbf16> to vector<8x1568xf32>
    %c0_1 = arith.constant 0 : index
    %c0_2 = arith.constant 0 : index
    %2 = vector.load %arg2[%c0_1, %c0_2] : memref<1568x256xbf16, #tpu.memory_space<vmem>>, vector<1568x256xbf16>
    %3 = arith.extf %2 : vector<1568x256xbf16> to vector<1568x256xf32>
    %cst = arith.constant dense<0.000000e+00> : vector<8x256xf32>
    %4 = tpu.matmul %1, %3, %cst {dimension_numbers = #tpu.dot_dimension_numbers<[1], [0], [0], [1], [0, 0, 1, 1], [], []>} : vector<8x1568xf32>, vector<1568x256xf32>, vector<8x256xf32> -> vector<8x256xf32>
    %c0_3 = arith.constant 0 : index
    %c0_4 = arith.constant 0 : index
    %5 = vector.load %arg3[%c0_3, %c0_4] : memref<8x1xf32, #tpu.memory_space<vmem>>, vector<8x1xf32>
    %6 = vector.broadcast %5 : vector<8x1xf32> to vector<8x256xf32>
    %7 = arith.addf %4, %6 : vector<8x256xf32>
    %8 = arith.negf %7 : vector<8x256xf32>
    %9 = math.exp %8 : vector<8x256xf32>
    %cst_5 = arith.constant 1.000000e+00 : f32
    %10 = vector.broadcast %cst_5 : f32 to vector<8x256xf32>
    %11 = arith.addf %10, %9 : vector<8x256xf32>
    %12 = arith.divf %10, %11 : vector<8x256xf32>
    %c0_6 = arith.constant 0 : index
    %c0_7 = arith.constant 0 : index
    %13 = vector.load %arg4[%c0_6, %c0_7] : memref<8x256xf32, #tpu.memory_space<vmem>>, vector<8x256xf32>
    tpu.vector_store %arg4[%c0_6, %c0_7], %12 {strides = array<i32>} : memref<8x256xf32, #tpu.memory_space<vmem>>, vector<8x256xf32>,
    return
  }
  func.func @transform_0(%arg0: i32) -> (i32, i32) {
    %c0_i32 = arith.constant 0 : i32
    %c0_i32_0 = arith.constant 0 : i32
    %c0_i32_1 = arith.constant 0 : i32
    return %c0_i32, %c0_i32_0 : i32, i32
  }
  func.func @transform_1(%arg0: i32) -> (i32, i32) {
    %c0_i32 = arith.constant 0 : i32
    %c0_i32_0 = arith.constant 0 : i32
    return %c0_i32, %arg0 : i32, i32
  }
  func.func @transform_2(%arg0: i32) -> (i32, i32) {
    %c0_i32 = arith.constant 0 : i32
    %c0_i32_0 = arith.constant 0 : i32
    %c0_i32_1 = arith.constant 0 : i32
    return %c0_i32, %c0_i32_0 : i32, i32
  }
  func.func @transform_3(%arg0: i32) -> (i32, i32) {
    %c0_i32 = arith.constant 0 : i32
    %c0_i32_0 = arith.constant 0 : i32
    return %c0_i32, %arg0 : i32, i32
  }
}

</mosaic_0001>

<llo_original>
// kernel: autoencoder_forward.12
$region0: #{autoencoder_forward.12}
  #allocation0 [shape = 'u32[]', space=smem, size = 0x4, offset = 0x4, fixed_abs, tag = 'smem constant byte address 0x4 - core index']
  #allocation1 [shape = 'u32[144,128]{1,0:T(1,128)}', space=vmem, size = 0x12000, scoped, tag = 'internal scratch']
  %s0 = inlined_call_operand.vmem [shape: bf16[32,128], index: 0, kind: input, shape index: {}]
  %s1 = inlined_call_operand.vmem [shape: bf16[32,128], index: 1, kind: input, shape index: {}]
  %s2 = inlined_call_operand.vmem [shape: bf16[32,128], index: 2, kind: input, shape index: {}]
  %s3 = inlined_call_operand.vmem [shape: bf16[32,128], index: 3, kind: input, shape index: {}]
  %s4 = inlined_call_operand.vmem [shape: bf16[32,128], index: 4, kind: output, shape index: {}]
  %s5 = sld [smem:[#allocation0]]
  $region26: #{autoencoder_forward.12} parent=0
    _
  %s7 = ssub.s32 1, %s5
  %s8 = scalar_select 0, %s7, %s5
  // Predicated region
  $region2: #{autoencoder_forward.12} parent=0 // pred_check
    _
  $region3: #{autoencoder_forward.12} parent=0 // pred_check_branch
    %10 = sbr.rel (0) target = $region5
  $region4: #{autoencoder_forward.12} parent=0 // pred_region
    _
  $region5: #{autoencoder_forward.12} parent=0 // pred_fallthru
    _
  // Predicated region
  $region6: #{autoencoder_forward.12} parent=0 // pred_check
    _
  $region7: #{autoencoder_forward.12} parent=0 // pred_check_branch
    %12 = sbr.rel (0) target = $region9
  $region8: #{autoencoder_forward.12} parent=0 // pred_region
    _
  $region9: #{autoencoder_forward.12} parent=0 // pred_fallthru
    _
  // Predicated region
  $region10: #{autoencoder_forward.12} parent=0 // pred_check
    _
  $region11: #{autoencoder_forward.12} parent=0 // pred_check_branch
    %14 = sbr.rel (0) target = $region13
  $region12: #{autoencoder_forward.12} parent=0 // pred_region
    _
  $region13: #{autoencoder_forward.12} parent=0 // pred_fallthru
    _
  // Predicated region
  $region14: #{autoencoder_forward.12} parent=0 // pred_check
    _
  $region15: #{autoencoder_forward.12} parent=0 // pred_check_branch
    %16 = sbr.rel (0) target = $region17
  $region16: #{autoencoder_forward.12} parent=0 // pred_region
    _
  $region17: #{autoencoder_forward.12} parent=0 // pred_fallthru
    _
  %v17 = vld [vmem:[%s0] sm:$0xf]
  %v18 = vld [vmem:[%s0 + $0x4] sm:$0xf]
  %v19 = vld [vmem:[%s0 + $0x8] sm:$0xf]
  %v20 = vld [vmem:[%s0 + $0xc] sm:$0xf]
  %v21 = vld [vmem:[%s1] sm:$0xf]
  %v22 = vld [vmem:[%s1 + $0x4] sm:$0xf]
  %v23 = vld [vmem:[%s1 + $0x8] sm:$0xf]
  %v24 = vld [vmem:[%s1 + $0xc] sm:$0xf]
  %v25 = vmax.bf16 %v17, %v21
  %v26 = vmax.bf16 %v18, %v22
  %v27 = vmax.bf16 %v19, %v23
  %v28 = vmax.bf16 %v20, %v24
  %v29 = vld [vmem:[%s2] sm:$0xf]
  %v30 = vld [vmem:[%s2 + $0x4] sm:$0xf]
  %v31 = vld [vmem:[%s2 + $0x8] sm:$0xf]
  %v32 = vld [vmem:[%s2 + $0xc] sm:$0xf]
  %v33 = vld [vmem:[%s3] sm:$0xf]
  %v34 = vld [vmem:[%s3 + $0x4] sm:$0xf]
  %v35 = vld [vmem:[%s3 + $0x8] sm:$0xf]
  %v36 = vld [vmem:[%s3 + $0xc] sm:$0xf]
  %v37 = vmax.bf16 %v29, %v33
  %v38 = vmax.bf16 %v30, %v34
  %v39 = vmax.bf16 %v31, %v35
  %v40 = vmax.bf16 %v32, %v36
  %v41 = vmax.bf16 %v25, %v37
  %v42 = vmax.bf16 %v26, %v38
  %v43 = vmax.bf16 %v27, %v39
  %v44 = vmax.bf16 %v28, %v40
  %45 = vst [vmem:[%s4] sm:$0xf] %v41
  %46 = vst [vmem:[%s4 + $0x4] sm:$0xf] %v42
  %47 = vst [vmem:[%s4 + $0x8] sm:$0xf] %v43
  %48 = vst [vmem:[%s4 + $0xc] sm:$0xf] %v44
  // Predicated region
  $region18: #{autoencoder_forward.12} parent=0 // pred_check
    _
  $region19: #{autoencoder_forward.12} parent=0 // pred_check_branch
    %50 = sbr.rel (0) target = $region21
  $region20: #{autoencoder_forward.12} parent=0 // pred_region
    _
  $region21: #{autoencoder_forward.12} parent=0 // pred_fallthru
    _
  // Predicated region
  $region22: #{autoencoder_forward.12} parent=0 // pred_check
    _
  $region23: #{autoencoder_forward.12} parent=0 // pred_check_branch
    %52 = sbr.rel (0) target = $region25
  $region24: #{autoencoder_forward.12} parent=0 // pred_region
    _
  $region25: #{autoencoder_forward.12} parent=0 // pred_fallthru
    _

// kernel: autoencoder_forward.11
$region0: #{autoencoder_forward.11}
  #allocation0 [shape = 'u32[]', space=smem, size = 0x4, offset = 0x4, fixed_abs, tag = 'smem constant byte address 0x4 - core index']
  #allocation1 [shape = 'u32[144,128]{1,0:T(1,128)}', space=vmem, size = 0x12000, scoped, tag = 'internal scratch']
  %s0 = inlined_call_operand.vmem [shape: bf16[32,160], index: 0, kind: input, shape index: {}]
  %s1 = inlined_call_operand.vmem [shape: bf16[160,512], index: 1, kind: input, shape index: {}]
  %s2 = inlined_call_operand.vmem [shape: f32[32,1], index: 2, kind: input, shape index: {}]
  %s3 = inlined_call_operand.vmem [shape: bf16[32,512], index: 3, kind: output, shape index: {}]
  %s4 = sld [smem:[#allocation0]]
  $region117: #{autoencoder_forward.11} parent=0
    _
  %s6 = ssub.s32 1, %s4
  %s7 = scalar_select 0, %s6, %s4
  $region1: #{autoencoder_forward.11} parent=0
    #allocation2 [shape = 'u8[163840]{0}', space=vmem, size = 0x28000, scoped, tag = 'input window, operand 1']
    #allocation3 [shape = 'u8[32768]{0}', space=vmem, size = 0x8000, scoped, tag = 'output window, operand 0']
    loop: start=0, step=1, limit=4
    $region2: #{autoencoder_forward.11} parent=1 // loop_pre_header
      _
    $region3: #{autoencoder_forward.11} parent=1 // loop_header
      %s9 = sphi 0, %s13
      %p10 = scmp.ge.s32.totalorder %s9, 4
      %s17 = sphi 0, %s17
      %s19 = sphi 0, %s17
      %s20 = sphi 0, %s19
      %s34 = sphi 0, %s20
      %s40 = sphi 0, %s42
      %s43 = sphi 0, %s40
      %s44 = sphi 0, %s43
      %s60 = sphi 0, %s44
      %s64 = sphi 0, %s64
      %s66 = sphi 0, %s64
      %s67 = sphi 0, %s66
      %s81 = sphi 0, %s67
      %s87 = sphi 0, %s89
      %s90 = sphi 0, %s87
      %s91 = sphi 0, %s90
      %s107 = sphi 0, %s91
    $region4: #{autoencoder_forward.11} parent=1 // loop_header_branch
      %12 = sbr.rel (%p10) target = $region8
    $region5: #{autoencoder_forward.11} parent=1 // loop_body
      %s14 = ssub.s32 %s9, 1
      %s15 = ssub.s32 %s9, 2
      %s16 = sadd.s32 %s9, 1
      %s18 = sadd.s32 %s17, 1
      %p21 = scmp.eq.s32.totalorder %s9, 1
      %p22 = scmp.ne.s32.totalorder %s17, %s19
      %p23 = scmp.eq.s32.totalorder %s9, 0
      %p24 = por %p22, %p23
      %p25 = scmp.ne.s32.totalorder %s17, %s19
      %p26 = scmp.eq.s32.totalorder %s14, 1
      %p27 = por %p25, %p26
      %p28 = scmp.ne.s32.totalorder %s19, %s20
      %p29 = scmp.eq.s32.totalorder %s14, 0
      %p30 = por %p28, %p29
      %p31 = scmp.ne.s32.totalorder %s19, %s20
      %p32 = scmp.eq.s32.totalorder %s15, 1
      %p33 = por %p31, %p32
      %p35 = scmp.ne.s32.totalorder %s20, %s34
      %p36 = scmp.eq.s32.totalorder %s15, 0
      %p37 = por %p35, %p36
      %s38 = ssub.s32 %s9, %s16
      %p39 = scmp.eq.s32.totalorder %s38, 0
      %s41 = sadd.s32 %s40, 1
      %s42 = scalar_select %p39, %s40, %s41
      %p45 = pneg %p39
      %p46 = scmp.eq.s32.totalorder %s9, 1
      %p47 = por %p45, %p46
      %p48 = scmp.ne.s32.totalorder %s40, %s43
      %p49 = scmp.eq.s32.totalorder %s9, 0
      %p50 = por %p48, %p49
      %p51 = scmp.ne.s32.totalorder %s40, %s43
      %p52 = scmp.eq.s32.totalorder %s14, 1
      %p53 = por %p51, %p52
      %p54 = scmp.ne.s32.totalorder %s43, %s44
      %p55 = scmp.eq.s32.totalorder %s14, 0
      %p56 = por %p54, %p55
      %p57 = scmp.ne.s32.totalorder %s43, %s44
      %p58 = scmp.eq.s32.totalorder %s15, 1
      %p59 = por %p57, %p58
      %p61 = scmp.ne.s32.totalorder %s44, %s60
      %p62 = scmp.eq.s32.totalorder %s15, 0
      %p63 = por %p61, %p62
      %s65 = sadd.s32 %s64, 1
      %p68 = scmp.eq.s32.totalorder %s9, 1
      %p69 = scmp.ne.s32.totalorder %s64, %s66
      %p70 = scmp.eq.s32.totalorder %s9, 0
      %p71 = por %p69, %p70
      %p72 = scmp.ne.s32.totalorder %s64, %s66
      %p73 = scmp.eq.s32.totalorder %s14, 1
      %p74 = por %p72, %p73
      %p75 = scmp.ne.s32.totalorder %s66, %s67
      %p76 = scmp.eq.s32.totalorder %s14, 0
      %p77 = por %p75, %p76
      %p78 = scmp.ne.s32.totalorder %s66, %s67
      %p79 = scmp.eq.s32.totalorder %s15, 1
      %p80 = por %p78, %p79
      %p82 = scmp.ne.s32.totalorder %s67, %s81
      %p83 = scmp.eq.s32.totalorder %s15, 0
      %p84 = por %p82, %p83
      %s85 = ssub.s32 %s9, %s16
      %p86 = scmp.eq.s32.totalorder %s85, 0
      %s88 = sadd.s32 %s87, 1
      %s89 = scalar_select %p86, %s87, %s88
      %p92 = pneg %p86
      %p93 = scmp.eq.s32.totalorder %s9, 1
      %p94 = por %p92, %p93
      %p95 = scmp.ne.s32.totalorder %s87, %s90
      %p96 = scmp.eq.s32.totalorder %s9, 0
      %p97 = por %p95, %p96
      %p98 = scmp.ne.s32.totalorder %s87, %s90
      %p99 = scmp.eq.s32.totalorder %s14, 1
      %p100 = por %p98, %p99
      %p101 = scmp.ne.s32.totalorder %s90, %s91
      %p102 = scmp.eq.s32.totalorder %s14, 0
      %p103 = por %p101, %p102
      %p104 = scmp.ne.s32.totalorder %s90, %s91
      %p105 = scmp.eq.s32.totalorder %s15, 1
      %p106 = por %p104, %p105
      %p108 = scmp.ne.s32.totalorder %s91, %s107
      %p109 = scmp.eq.s32.totalorder %s15, 0
      %p110 = por %p108, %p109
      %p111 = scmp.le.s32.totalorder 1, %s9
      %p112 = scmp.lt.s32.totalorder %s9, 3
      %p113 = pnand %p111, %p112
      %p114 = pneg %p113
      // Predicated region
      $region9: #{autoencoder_forward.11} parent=5 // pred_check
        _
      $region10: #{autoencoder_forward.11} parent=5 // pred_check_branch
        %116 = sbr.rel (%p113) target = $region12
      $region11: #{autoencoder_forward.11} parent=5 // pred_region
        %s117 = ssub.s32 %s9, 1
        // Predicated region
        $region13: #{autoencoder_forward.11} parent=11 // pred_check
          %p118 = pneg %p30
        $region14: #{autoencoder_forward.11} parent=11 // pred_check_branch
          %120 = sbr.rel (%p118) target = $region16
        $region15: #{autoencoder_forward.11} parent=11 // pred_region
          _
        $region16: #{autoencoder_forward.11} parent=11 // pred_fallthru
          _
        // Predicated region
        $region17: #{autoencoder_forward.11} parent=11 // pred_check
          %p121 = pneg %p77
        $region18: #{autoencoder_forward.11} parent=11 // pred_check_branch
          %123 = sbr.rel (%p121) target = $region20
        $region19: #{autoencoder_forward.11} parent=11 // pred_region
          _
        $region20: #{autoencoder_forward.11} parent=11 // pred_fallthru
          _
      $region12: #{autoencoder_forward.11} parent=5 // pred_fallthru
        _
      %p124 = scmp.lt.s32.totalorder %s9, 2
      // Predicated region
      $region21: #{autoencoder_forward.11} parent=5 // pred_check
        %p125 = pneg %p124
      $region22: #{autoencoder_forward.11} parent=5 // pred_check_branch
        %127 = sbr.rel (%p125) target = $region24
      $region23: #{autoencoder_forward.11} parent=5 // pred_region
        // Predicated region
        $region25: #{autoencoder_forward.11} parent=23 // pred_check
          %p128 = pneg %p50
        $region26: #{autoencoder_forward.11} parent=23 // pred_check_branch
          %130 = sbr.rel (%p128) target = $region28
        $region27: #{autoencoder_forward.11} parent=23 // pred_region
          %s131 = sand.u32 %s40, 1
          %s132 = sand.u32 %s40, 1
          %s133 = smul.addr %s132, 160
          %s134 = scalar_lea.vmem [#allocation2], %s133
          %s135 = smul.u32 2, %s9
          %s136 = smul.addr %s135, 4
          %s137 = scalar_lea.vmem %s1, %s136
          // Predicated region
          $region29: #{autoencoder_forward.11} parent=27 // pred_check
            _
          $region30: #{autoencoder_forward.11} parent=27 // pred_check_branch
            %139 = sbr.rel (0) target = $region32
          $region31: #{autoencoder_forward.11} parent=27 // pred_region
            // Predicated region
            $region33: #{autoencoder_forward.11} parent=31 // pred_check
              _
            $region34: #{autoencoder_forward.11} parent=31 // pred_check_branch
              %141 = sbr.rel (0) target = $region36
            $region35: #{autoencoder_forward.11} parent=31 // pred_region
              // Predicated region
              $region48: #{autoencoder_forward.11} parent=35 // pred_check
                _
              $region49: #{autoencoder_forward.11} parent=35 // pred_check_branch
                %195 = sbr.rel (0) target = $region51
              $region50: #{autoencoder_forward.11} parent=35 // pred_region
                loop: start=0, step=1, limit=1
                $region52: #{autoencoder_forward.11} parent=50 // loop_pre_header
                  _
                $region53: #{autoencoder_forward.11} parent=50 // loop_header
                  %s197 = sphi 0, %s201
                  %p198 = scmp.ge.s32.totalorder %s197, 1
                  %s202 = sphi %s137, %s137
                  %s203 = sphi %s134, %s134
                $region54: #{autoencoder_forward.11} parent=50 // loop_header_branch
                  %200 = sbr.rel (%p198) target = $region58
                $region55: #{autoencoder_forward.11} parent=50 // loop_body
                  %v204 = vld [vmem:[%s202] sm:$0xff]
                  %205 = vst [vmem:[%s203] sm:$0xff] %v204
                  %v206 = vld [vmem:[%s202 + $0x10] sm:$0xff]
                  %207 = vst [vmem:[%s203 + $0x8] sm:$0xff] %v206
                  %v208 = vld [vmem:[%s202 + $0x20] sm:$0xff]
                  %209 = vst [vmem:[%s203 + $0x10] sm:$0xff] %v208
                  %v210 = vld [vmem:[%s202 + $0x30] sm:$0xff]
                  %211 = vst [vmem:[%s203 + $0x18] sm:$0xff] %v210
                  %v212 = vld [vmem:[%s202 + $0x40] sm:$0xff]
                  %213 = vst [vmem:[%s203 + $0x20] sm:$0xff] %v212
                  %v214 = vld [vmem:[%s202 + $0x50] sm:$0xff]
                  %215 = vst [vmem:[%s203 + $0x28] sm:$0xff] %v214
                  %v216 = vld [vmem:[%s202 + $0x60] sm:$0xff]
                  %217 = vst [vmem:[%s203 + $0x30] sm:$0xff] %v216
                  %v218 = vld [vmem:[%s202 + $0x70] sm:$0xff]
                  %219 = vst [vmem:[%s203 + $0x38] sm:$0xff] %v218
                  %v220 = vld [vmem:[%s202 + $0x80] sm:$0xff]
                  %221 = vst [vmem:[%s203 + $0x40] sm:$0xff] %v220
                  %v222 = vld [vmem:[%s202 + $0x90] sm:$0xff]
                  %223 = vst [vmem:[%s203 + $0x48] sm:$0xff] %v222
                  %v224 = vld [vmem:[%s202 + $0xa0] sm:$0xff]
                  %225 = vst [vmem:[%s203 + $0x50] sm:$0xff] %v224
                  %v226 = vld [vmem:[%s202 + $0xb0] sm:$0xff]
                  %227 = vst [vmem:[%s203 + $0x58] sm:$0xff] %v226
                  %v228 = vld [vmem:[%s202 + $0xc0] sm:$0xff]
                  %229 = vst [vmem:[%s203 + $0x60] sm:$0xff] %v228
                  %v230 = vld [vmem:[%s202 + $0xd0] sm:$0xff]
                  %231 = vst [vmem:[%s203 + $0x68] sm:$0xff] %v230
                  %v232 = vld [vmem:[%s202 + $0xe0] sm:$0xff]
                  %233 = vst [vmem:[%s203 + $0x70] sm:$0xff] %v232
                  %v234 = vld [vmem:[%s202 + $0xf0] sm:$0xff]
                  %235 = vst [vmem:[%s203 + $0x78] sm:$0xff] %v234
                  %v236 = vld [vmem:[%s202 + $0x100] sm:$0xff]
                  %237 = vst [vmem:[%s203 + $0x80] sm:$0xff] %v236
                  %v238 = vld [vmem:[%s202 + $0x110] sm:$0xff]
                  %239 = vst [vmem:[%s203 + $0x88] sm:$0xff] %v238
                  %v240 = vld [vmem:[%s202 + $0x120] sm:$0xff]
                  %241 = vst [vmem:[%s203 + $0x90] sm:$0xff] %v240
                  %v242 = vld [vmem:[%s202 + $0x130] sm:$0xff]
                  %243 = vst [vmem:[%s203 + $0x98] sm:$0xff] %v242
                $region56: #{autoencoder_forward.11} parent=50 // loop_footer
                  %s201 = sadd.s32 1, %s197
                $region57: #{autoencoder_forward.11} parent=50 // loop_footer_branch
                  %196 = sbr.rel target = $region53
                $region58: #{autoencoder_forward.11} parent=50 // loop_exit
                  _
              $region51: #{autoencoder_forward.11} parent=35 // pred_fallthru
                _
              // Predicated region
              $region59: #{autoencoder_forward.11} parent=35 // pred_check
                _
              $region60: #{autoencoder_forward.11} parent=35 // pred_check_branch
                %245 = sbr.rel target = $region62
              $region61: #{autoencoder_forward.11} parent=35 // pred_region
                _
              $region62: #{autoencoder_forward.11} parent=35 // pred_fallthru
                _
            $region36: #{autoencoder_forward.11} parent=31 // pred_fallthru
              _
            // Predicated region
            $region37: #{autoencoder_forward.11} parent=31 // pred_check
              _
            $region38: #{autoencoder_forward.11} parent=31 // pred_check_branch
              %143 = sbr.rel target = $region40
            $region39: #{autoencoder_forward.11} parent=31 // pred_region
              %s145 = ssub.s32 256, 1
              loop: start=0, step=1, limit=1
              $region41: #{autoencoder_forward.11} parent=39 // loop_pre_header
                _
              $region42: #{autoencoder_forward.11} parent=39 // loop_header
                %s147 = sphi 0, %s151
                %p148 = scmp.ge.s32.totalorder %s147, 1
                %s152 = sphi %s137, %s137
                %s153 = sphi %s134, %s134
              $region43: #{autoencoder_forward.11} parent=39 // loop_header_branch
                %150 = sbr.rel (%p148) target = $region47
              $region44: #{autoencoder_forward.11} parent=39 // loop_body
                %v154 = vld [vmem:[%s152] sm:%s145]
                %155 = vst [vmem:[%s153] sm:%s145] %v154
                %v156 = vld [vmem:[%s152 + $0x10] sm:%s145]
                %157 = vst [vmem:[%s153 + $0x8] sm:%s145] %v156
                %v158 = vld [vmem:[%s152 + $0x20] sm:%s145]
                %159 = vst [vmem:[%s153 + $0x10] sm:%s145] %v158
                %v160 = vld [vmem:[%s152 + $0x30] sm:%s145]
                %161 = vst [vmem:[%s153 + $0x18] sm:%s145] %v160
                %v162 = vld [vmem:[%s152 + $0x40] sm:%s145]
                %163 = vst [vmem:[%s153 + $0x20] sm:%s145] %v162
                %v164 = vld [vmem:[%s152 + $0x50] sm:%s145]
                %165 = vst [vmem:[%s153 + $0x28] sm:%s145] %v164
                %v166 = vld [vmem:[%s152 + $0x60] sm:%s145]
                %167 = vst [vmem:[%s153 + $0x30] sm:%s145] %v166
                %v168 = vld [vmem:[%s152 + $0x70] sm:%s145]
                %169 = vst [vmem:[%s153 + $0x38] sm:%s145] %v168
                %v170 = vld [vmem:[%s152 + $0x80] sm:%s145]
                %171 = vst [vmem:[%s153 + $0x40] sm:%s145] %v170
                %v172 = vld [vmem:[%s152 + $0x90] sm:%s145]
                %173 = vst [vmem:[%s153 + $0x48] sm:%s145] %v172
                %v174 = vld [vmem:[%s152 + $0xa0] sm:%s145]
                %175 = vst [vmem:[%s153 + $0x50] sm:%s145] %v174
                %v176 = vld [vmem:[%s152 + $0xb0] sm:%s145]
                %177 = vst [vmem:[%s153 + $0x58] sm:%s145] %v176
                %v178 = vld [vmem:[%s152 + $0xc0] sm:%s145]
                %179 = vst [vmem:[%s153 + $0x60] sm:%s145] %v178
                %v180 = vld [vmem:[%s152 + $0xd0] sm:%s145]
                %181 = vst [vmem:[%s153 + $0x68] sm:%s145] %v180
                %v182 = vld [vmem:[%s152 + $0xe0] sm:%s145]
                %183 = vst [vmem:[%s153 + $0x70] sm:%s145] %v182
                %v184 = vld [vmem:[%s152 + $0xf0] sm:%s145]
                %185 = vst [vmem:[%s153 + $0x78] sm:%s145] %v184
                %v186 = vld [vmem:[%s152 + $0x100] sm:%s145]
                %187 = vst [vmem:[%s153 + $0x80] sm:%s145] %v186
                %v188 = vld [vmem:[%s152 + $0x110] sm:%s145]
                %189 = vst [vmem:[%s153 + $0x88] sm:%s145] %v188
                %v190 = vld [vmem:[%s152 + $0x120] sm:%s145]
                %191 = vst [vmem:[%s153 + $0x90] sm:%s145] %v190
                %v192 = vld [vmem:[%s152 + $0x130] sm:%s145]
                %193 = vst [vmem:[%s153 + $0x98] sm:%s145] %v192
              $region45: #{autoencoder_forward.11} parent=39 // loop_footer
                %s151 = sadd.s32 1, %s147
              $region46: #{autoencoder_forward.11} parent=39 // loop_footer_branch
                %146 = sbr.rel target = $region42
              $region47: #{autoencoder_forward.11} parent=39 // loop_exit
                _
            $region40: #{autoencoder_forward.11} parent=31 // pred_fallthru
              _
          $region32: #{autoencoder_forward.11} parent=27 // pred_fallthru
            _
          %246 = vnop
        $region28: #{autoencoder_forward.11} parent=23 // pred_fallthru
          _
      $region24: #{autoencoder_forward.11} parent=5 // pred_fallthru
        _
      %p247 = scmp.le.s32.totalorder 1, %s9
      %p248 = scmp.lt.s32.totalorder %s9, 3
      %p249 = pnand %p247, %p248
      %p250 = pneg %p249
      // Predicated region
      $region63: #{autoencoder_forward.11} parent=5 // pred_check
        _
      $region64: #{autoencoder_forward.11} parent=5 // pred_check_branch
        %252 = sbr.rel (%p249) target = $region66
      $region65: #{autoencoder_forward.11} parent=5 // pred_region
        %s253 = ssub.s32 %s9, 1
        %s254 = sand.u32 %s43, 1
        %s255 = sand.u32 %s43, 1
        %s256 = smul.addr %s255, 160
        %s257 = scalar_lea.vmem [#allocation2], %s256
        // Predicated region
        $region67: #{autoencoder_forward.11} parent=65 // pred_check
          %p258 = pneg %p56
        $region68: #{autoencoder_forward.11} parent=65 // pred_check_branch
          %260 = sbr.rel (%p258) target = $region70
        $region69: #{autoencoder_forward.11} parent=65 // pred_region
          _
        $region70: #{autoencoder_forward.11} parent=65 // pred_fallthru
          _
        %p261 = pneg %p30
        %p262 = pneg %p27
        %s263 = sand.u32 %s43, 1
        %s264 = sand.u32 %s43, 1
        %s265 = smul.addr %s264, 160
        %s266 = scalar_lea.vmem [#allocation2], %s265
        %p267 = pneg %p56
        %p268 = pneg %p53
        %p269 = pneg %p77
        %p270 = pneg %p74
        %p271 = pneg %p103
        %p272 = pneg %p100
        %s273 = sand.u32 %s90, 1
        %s274 = sand.u32 %s90, 1
        %s275 = smul.addr %s274, 32
        %s276 = scalar_lea.vmem [#allocation3], %s275
        %s277 = smul.u32 2, %s14
        %s278 = smul.u32 2, %s14
        %v279 = vld [vmem:[%s0] sm:$0xff]
        %v280 = vld [vmem:[%s0 + $0x8] sm:$0xff]
        %v281 = vld [vmem:[%s0 + $0x10] sm:$0xff]
        %v282 = vld [vmem:[%s0 + $0x18] sm:$0xff]
        %v283 = vunpack.c.l.bf16 %v279
        %v284 = vunpack.c.h.bf16 %v279
        %v285 = vunpack.c.l.bf16 %v280
        %v286 = vunpack.c.h.bf16 %v280
        %v287 = vunpack.c.l.bf16 %v281
        %v288 = vunpack.c.h.bf16 %v281
        %v289 = vunpack.c.l.bf16 %v282
        %v290 = vunpack.c.h.bf16 %v282
        %v291 = vld [vmem:[%s257] sm:$0xff]
        %v292 = vld [vmem:[%s257 + $0x8] sm:$0xff]
        %v293 = vld [vmem:[%s257 + $0x10] sm:$0xff]
        %v294 = vld [vmem:[%s257 + $0x18] sm:$0xff]
        %v295 = vld [vmem:[%s257 + $0x20] sm:$0xff]
        %v296 = vld [vmem:[%s257 + $0x28] sm:$0xff]
        %v297 = vld [vmem:[%s257 + $0x30] sm:$0xff]
        %v298 = vld [vmem:[%s257 + $0x38] sm:$0xff]
        %v299 = vld [vmem:[%s257 + $0x40] sm:$0xff]
        %v300 = vld [vmem:[%s257 + $0x48] sm:$0xff]
        %v301 = vld [vmem:[%s257 + $0x50] sm:$0xff]
        %v302 = vld [vmem:[%s257 + $0x58] sm:$0xff]
        %v303 = vld [vmem:[%s257 + $0x60] sm:$0xff]
        %v304 = vld [vmem:[%s257 + $0x68] sm:$0xff]
        %v305 = vld [vmem:[%s257 + $0x70] sm:$0xff]
        %v306 = vld [vmem:[%s257 + $0x78] sm:$0xff]
        %v307 = vld [vmem:[%s257 + $0x80] sm:$0xff]
        %v308 = vld [vmem:[%s257 + $0x88] sm:$0xff]
        %v309 = vld [vmem:[%s257 + $0x90] sm:$0xff]
        %v310 = vld [vmem:[%s257 + $0x98] sm:$0xff]
        %v311 = vunpack.c.l.bf16 %v291
        %v312 = vunpack.c.h.bf16 %v291
        %v313 = vunpack.c.l.bf16 %v292
        %v314 = vunpack.c.h.bf16 %v292
        %v315 = vunpack.c.l.bf16 %v293
        %v316 = vunpack.c.h.bf16 %v293
        %v317 = vunpack.c.l.bf16 %v294
        %v318 = vunpack.c.h.bf16 %v294
        %v319 = vunpack.c.l.bf16 %v295
        %v320 = vunpack.c.h.bf16 %v295
        %v321 = vunpack.c.l.bf16 %v296
        %v322 = vunpack.c.h.bf16 %v296
        %v323 = vunpack.c.l.bf16 %v297
        %v324 = vunpack.c.h.bf16 %v297
        %v325 = vunpack.c.l.bf16 %v298
        %v326 = vunpack.c.h.bf16 %v298
        %v327 = vunpack.c.l.bf16 %v299
        %v328 = vunpack.c.h.bf16 %v299
        %v329 = vunpack.c.l.bf16 %v300
        %v330 = vunpack.c.h.bf16 %v300
        %v331 = vunpack.c.l.bf16 %v301
        %v332 = vunpack.c.h.bf16 %v301
        %v333 = vunpack.c.l.bf16 %v302
        %v334 = vunpack.c.h.bf16 %v302
        %v335 = vunpack.c.l.bf16 %v303
        %v336 = vunpack.c.h.bf16 %v303
        %v337 = vunpack.c.l.bf16 %v304
        %v338 = vunpack.c.h.bf16 %v304
        %v339 = vunpack.c.l.bf16 %v305
        %v340 = vunpack.c.h.bf16 %v305
        %v341 = vunpack.c.l.bf16 %v306
        %v342 = vunpack.c.h.bf16 %v306
        %v343 = vunpack.c.l.bf16 %v307
        %v344 = vunpack.c.h.bf16 %v307
        %v345 = vunpack.c.l.bf16 %v308
        %v346 = vunpack.c.h.bf16 %v308
        %v347 = vunpack.c.l.bf16 %v309
        %v348 = vunpack.c.h.bf16 %v309
        %v349 = vunpack.c.l.bf16 %v310
        %v350 = vunpack.c.h.bf16 %v310
        %v351 = vld [vmem:[%s2] sm:$0xff]
        %v352 = vld [vmem:[%s2 + $0x8] sm:$0xff]
        %v353 = vld [vmem:[%s2 + $0x10] sm:$0xff]
        %v354 = vld [vmem:[%s2 + $0x18] sm:$0xff]
        %356 = vset.pattern.permute.xlu0 0
        %357 = vperm.xlu0 %356, %v351
        %v358 = vpop.permute.xlu0 %357
        %361 = vset.pattern.permute.xlu0 0
        %362 = vperm.xlu0 %361, %v352
        %v363 = vpop.permute.xlu0 %362
        %366 = vset.pattern.permute.xlu0 0
        %367 = vperm.xlu0 %366, %v353
        %v368 = vpop.permute.xlu0 %367
        %371 = vset.pattern.permute.xlu0 0
        %372 = vperm.xlu0 %371, %v354
        %v373 = vpop.permute.xlu0 %372
        %vm375 = vcmask 261120
        %v377 = vsel %vm375, %v284, 0
        %v380 = vsel %vm375, %v286, 0
        %v383 = vsel %vm375, %v288, 0
        %v386 = vsel %vm375, %v290, 0
        %388 = vmatprep.subr.mxu0 %v342
        %389 = vmatpush1.msra.mxu0 %v341
        %390 = vmatprep.subr.mxu0 %v340
        %391 = vmatpush1.msra.mxu0 %v339
        %392 = vmatprep.subr.mxu0 %v338
        %393 = vmatpush1.msra.mxu0 %v337
        %394 = vmatprep.subr.mxu0 %v336
        %395 = vmatpush1.msra.mxu0 %v335
        %396 = vmatprep.subr.mxu0 %v334
        %397 = vmatpush1.msra.mxu0 %v333
        %398 = vmatprep.subr.mxu0 %v332
        %399 = vmatpush1.msra.mxu0 %v331
        %400 = vmatprep.subr.mxu0 %v330
        %401 = vmatpush1.msra.mxu0 %v329
        %402 = vmatprep.subr.mxu0 %v328
        %403 = vmatpush1.msra.mxu0 %v327
        %404 = vmatprep.subr.mxu0 %v326
        %405 = vmatpush1.msra.mxu0 %v325
        %406 = vmatprep.subr.mxu0 %v324
        %407 = vmatpush1.msra.mxu0 %v323
        %408 = vmatprep.subr.mxu0 %v322
        %409 = vmatpush1.msra.mxu0 %v321
        %410 = vmatprep.subr.mxu0 %v320
        %411 = vmatpush1.msra.mxu0 %v319
        %412 = vmatprep.subr.mxu0 %v318
        %413 = vmatpush1.msra.mxu0 %v317
        %414 = vmatprep.subr.mxu0 %v316
        %415 = vmatpush1.msra.mxu0 %v315
        %416 = vmatprep.subr.mxu0 %v314
        %417 = vmatpush1.msra.mxu0 %v313
        %418 = vmatprep.subr.mxu0 %v312
        %419 = vmatpush1.msra.mxu0 %v311
        %420 = vmatprep.subr.mxu0 0.0
        %421 = vmatpush2.msra.mxu0 0.0
        %422 = vmatprep.subr.mxu0 0.0
        %423 = vmatpush2.msra.mxu0 0.0
        %424 = vmatprep.subr.mxu0 0.0
        %425 = vmatpush2.msra.mxu0 0.0
        %426 = vmatprep.subr.mxu0 0.0
        %427 = vmatpush2.msra.mxu0 0.0
        %428 = vmatprep.subr.mxu0 0.0
        %429 = vmatpush2.msra.mxu0 0.0
        %430 = vmatprep.subr.mxu0 0.0
        %431 = vmatpush2.msra.mxu0 0.0
        %432 = vmatprep.subr.mxu0 0.0
        %433 = vmatpush2.msra.mxu0 0.0
        %434 = vmatprep.subr.mxu0 0.0
        %435 = vmatpush2.msra.mxu0 0.0
        %436 = vmatprep.subr.mxu0 0.0
        %437 = vmatpush2.msra.mxu0 0.0
        %438 = vmatprep.subr.mxu0 0.0
        %439 = vmatpush2.msra.mxu0 0.0
        %440 = vmatprep.subr.mxu0 0.0
        %441 = vmatpush2.msra.mxu0 0.0
        %442 = vmatprep.subr.mxu0 0.0
        %443 = vmatpush2.msra.mxu0 0.0
        %444 = vmatprep.subr.mxu0 %v350
        %445 = vmatpush2.msra.mxu0 %v349
        %446 = vmatprep.subr.mxu0 %v348
        %447 = vmatpush2.msra.mxu0 %v347
        %448 = vmatprep.subr.mxu0 %v346
        %449 = vmatpush2.msra.mxu0 %v345
        %450 = vmatprep.subr.mxu0 %v344
        %451 = vmatpush2.msra.mxu0 %v343
        %452 = vmatprep.mubr.f32.mxu0 %v377
        %453 = vmatmul.mubr.f32.gmra.mxu0 %v283
        %v454 = vpop.f32.mrf.mxu0
        %v455 = vadd.f32 %v358, %v454
        %v456 = vpop.f32.mrf.mxu0
        %v457 = vadd.f32 %v358, %v456
        %458 = vmatprep.mubr.f32.mxu0 %v380
        %459 = vmatmul.mubr.f32.gmra.mxu0 %v285
        %v460 = vpop.f32.mrf.mxu0
        %v461 = vadd.f32 %v363, %v460
        %v462 = vpop.f32.mrf.mxu0
        %v463 = vadd.f32 %v363, %v462
        %464 = vmatprep.mubr.f32.mxu0 %v383
        %465 = vmatmul.mubr.f32.gmra.mxu0 %v287
        %v466 = vpop.f32.mrf.mxu0
        %v467 = vadd.f32 %v368, %v466
        %v468 = vpop.f32.mrf.mxu0
        %v469 = vadd.f32 %v368, %v468
        %470 = vmatprep.mubr.f32.mxu0 %v386
        %471 = vmatmul.mubr.f32.gmra.mxu0 %v289
        %v472 = vpop.f32.mrf.mxu0
        %v473 = vadd.f32 %v373, %v472
        %v474 = vpop.f32.mrf.mxu0
        %v475 = vadd.f32 %v373, %v474
        %476 = vdwg.mxu0
        %vm477 = vcmp.ge.f32.partialorder %v455, 0.0
        %vm478 = vcmp.ge.f32.partialorder %v457, 0.0
        %vm479 = vcmp.ge.f32.partialorder %v461, 0.0
        %vm480 = vcmp.ge.f32.partialorder %v463, 0.0
        %vm481 = vcmp.ge.f32.partialorder %v467, 0.0
        %vm482 = vcmp.ge.f32.partialorder %v469, 0.0
        %vm483 = vcmp.ge.f32.partialorder %v473, 0.0
        %vm484 = vcmp.ge.f32.partialorder %v475, 0.0
        %v485 = vmul.f32 %v455, 0.01
        %v486 = vmul.f32 %v457, 0.01
        %v487 = vmul.f32 %v461, 0.01
        %v488 = vmul.f32 %v463, 0.01
        %v489 = vmul.f32 %v467, 0.01
        %v490 = vmul.f32 %v469, 0.01
        %v491 = vmul.f32 %v473, 0.01
        %v492 = vmul.f32 %v475, 0.01
        %v493 = vsel %vm477, %v455, %v485
        %v494 = vsel %vm478, %v457, %v486
        %v495 = vsel %vm479, %v461, %v487
        %v496 = vsel %vm480, %v463, %v488
        %v497 = vsel %vm481, %v467, %v489
        %v498 = vsel %vm482, %v469, %v490
        %v499 = vsel %vm483, %v473, %v491
        %v500 = vsel %vm484, %v475, %v492
        %v501 = vpack.c.bf16 %v495, %v493
        %v502 = vpack.c.bf16 %v496, %v494
        %v503 = vpack.c.bf16 %v499, %v497
        %v504 = vpack.c.bf16 %v500, %v498
        %v509 = vunpack.c.l.b16 %v501
        %v510 = vunpack.c.l.b16 %v502
        %v511 = vunpack.c.h.b16 %v501
        %v512 = vunpack.c.h.b16 %v502
        %v513 = vunpack.c.l.b16 %v503
        %v514 = vunpack.c.l.b16 %v504
        %v515 = vunpack.c.h.b16 %v503
        %v516 = vunpack.c.h.b16 %v504
        %v517 = vpack.c.b16 %v510, %v509
        %v518 = vpack.c.b16 %v512, %v511
        %v519 = vpack.c.b16 %v514, %v513
        %v520 = vpack.c.b16 %v516, %v515
        %525 = vst [vmem:[%s276] sm:$0xff] %v517
        %526 = vst [vmem:[%s276 + $0x8] sm:$0xff] %v518
        %527 = vst [vmem:[%s276 + $0x10] sm:$0xff] %v519
        %528 = vst [vmem:[%s276 + $0x18] sm:$0xff] %v520
        %s529 = sand.u32 %s90, 1
        %s530 = sand.u32 %s90, 1
        %s531 = smul.addr %s530, 32
        %s532 = scalar_lea.vmem [#allocation3], %s531
        // Predicated region
        $region71: #{autoencoder_forward.11} parent=65 // pred_check
          %p533 = pneg %p100
        $region72: #{autoencoder_forward.11} parent=65 // pred_check_branch
          %535 = sbr.rel (%p533) target = $region74
        $region73: #{autoencoder_forward.11} parent=65 // pred_region
          %s536 = smul.u32 2, %s14
          %s537 = smul.addr %s536, 4
          %s538 = scalar_lea.vmem %s3, %s537
          // Predicated region
          $region75: #{autoencoder_forward.11} parent=73 // pred_check
            _
          $region76: #{autoencoder_forward.11} parent=73 // pred_check_branch
            %540 = sbr.rel (0) target = $region78
          $region77: #{autoencoder_forward.11} parent=73 // pred_region
            // Predicated region
            $region79: #{autoencoder_forward.11} parent=77 // pred_check
              _
            $region80: #{autoencoder_forward.11} parent=77 // pred_check_branch
              %542 = sbr.rel (0) target = $region82
            $region81: #{autoencoder_forward.11} parent=77 // pred_region
              // Predicated region
              $region94: #{autoencoder_forward.11} parent=81 // pred_check
                _
              $region95: #{autoencoder_forward.11} parent=81 // pred_check_branch
                %564 = sbr.rel (0) target = $region97
              $region96: #{autoencoder_forward.11} parent=81 // pred_region
                loop: start=0, step=1, limit=1
                $region98: #{autoencoder_forward.11} parent=96 // loop_pre_header
                  _
                $region99: #{autoencoder_forward.11} parent=96 // loop_header
                  %s566 = sphi 0, %s570
                  %p567 = scmp.ge.s32.totalorder %s566, 1
                  %s571 = sphi %s532, %s532
                  %s572 = sphi %s538, %s538
                $region100: #{autoencoder_forward.11} parent=96 // loop_header_branch
                  %569 = sbr.rel (%p567) target = $region104
                $region101: #{autoencoder_forward.11} parent=96 // loop_body
                  %v573 = vld [vmem:[%s571] sm:$0xff]
                  %574 = vst [vmem:[%s572] sm:$0xff] %v573
                  %v575 = vld [vmem:[%s571 + $0x8] sm:$0xff]
                  %576 = vst [vmem:[%s572 + $0x10] sm:$0xff] %v575
                  %v577 = vld [vmem:[%s571 + $0x10] sm:$0xff]
                  %578 = vst [vmem:[%s572 + $0x20] sm:$0xff] %v577
                  %v579 = vld [vmem:[%s571 + $0x18] sm:$0xff]
                  %580 = vst [vmem:[%s572 + $0x30] sm:$0xff] %v579
                $region102: #{autoencoder_forward.11} parent=96 // loop_footer
                  %s570 = sadd.s32 1, %s566
                $region103: #{autoencoder_forward.11} parent=96 // loop_footer_branch
                  %565 = sbr.rel target = $region99
                $region104: #{autoencoder_forward.11} parent=96 // loop_exit
                  _
              $region97: #{autoencoder_forward.11} parent=81 // pred_fallthru
                _
              // Predicated region
              $region105: #{autoencoder_forward.11} parent=81 // pred_check
                _
              $region106: #{autoencoder_forward.11} parent=81 // pred_check_branch
                %582 = sbr.rel target = $region108
              $region107: #{autoencoder_forward.11} parent=81 // pred_region
                _
              $region108: #{autoencoder_forward.11} parent=81 // pred_fallthru
                _
            $region82: #{autoencoder_forward.11} parent=77 // pred_fallthru
              _
            // Predicated region
            $region83: #{autoencoder_forward.11} parent=77 // pred_check
              _
            $region84: #{autoencoder_forward.11} parent=77 // pred_check_branch
              %544 = sbr.rel target = $region86
            $region85: #{autoencoder_forward.11} parent=77 // pred_region
              %s546 = ssub.s32 256, 1
              loop: start=0, step=1, limit=1
              $region87: #{autoencoder_forward.11} parent=85 // loop_pre_header
                _
              $region88: #{autoencoder_forward.11} parent=85 // loop_header
                %s548 = sphi 0, %s552
                %p549 = scmp.ge.s32.totalorder %s548, 1
                %s553 = sphi %s532, %s532
                %s554 = sphi %s538, %s538
              $region89: #{autoencoder_forward.11} parent=85 // loop_header_branch
                %551 = sbr.rel (%p549) target = $region93
              $region90: #{autoencoder_forward.11} parent=85 // loop_body
                %v555 = vld [vmem:[%s553] sm:%s546]
                %556 = vst [vmem:[%s554] sm:%s546] %v555
                %v557 = vld [vmem:[%s553 + $0x8] sm:%s546]
                %558 = vst [vmem:[%s554 + $0x10] sm:%s546] %v557
                %v559 = vld [vmem:[%s553 + $0x10] sm:%s546]
                %560 = vst [vmem:[%s554 + $0x20] sm:%s546] %v559
                %v561 = vld [vmem:[%s553 + $0x18] sm:%s546]
                %562 = vst [vmem:[%s554 + $0x30] sm:%s546] %v561
              $region91: #{autoencoder_forward.11} parent=85 // loop_footer
                %s552 = sadd.s32 1, %s548
              $region92: #{autoencoder_forward.11} parent=85 // loop_footer_branch
                %547 = sbr.rel target = $region88
              $region93: #{autoencoder_forward.11} parent=85 // loop_exit
                _
            $region86: #{autoencoder_forward.11} parent=77 // pred_fallthru
              _
          $region78: #{autoencoder_forward.11} parent=73 // pred_fallthru
            _
          %583 = vnop
        $region74: #{autoencoder_forward.11} parent=65 // pred_fallthru
          _
      $region66: #{autoencoder_forward.11} parent=5 // pred_fallthru
        _
      %p584 = scmp.le.s32.totalorder 2, %s9
      // Predicated region
      $region109: #{autoencoder_forward.11} parent=5 // pred_check
        %p585 = pneg %p584
      $region110: #{autoencoder_forward.11} parent=5 // pred_check_branch
        %587 = sbr.rel (%p585) target = $region112
      $region111: #{autoencoder_forward.11} parent=5 // pred_region
        %s588 = ssub.s32 %s9, 2
        // Predicated region
        $region113: #{autoencoder_forward.11} parent=111 // pred_check
          %p589 = pneg %p106
        $region114: #{autoencoder_forward.11} parent=111 // pred_check_branch
          %591 = sbr.rel (%p589) target = $region116
        $region115: #{autoencoder_forward.11} parent=111 // pred_region
          %s592 = sand.u32 %s91, 1
          %s593 = sand.u32 %s91, 1
          %s594 = smul.addr %s593, 32
          %s595 = scalar_lea.vmem [#allocation3], %s594
        $region116: #{autoencoder_forward.11} parent=111 // pred_fallthru
          _
      $region112: #{autoencoder_forward.11} parent=5 // pred_fallthru
        _
    $region6: #{autoencoder_forward.11} parent=1 // loop_footer
      %s13 = sadd.s32 1, %s9
    $region7: #{autoencoder_forward.11} parent=1 // loop_footer_branch
      %8 = sbr.rel target = $region3
    $region8: #{autoencoder_forward.11} parent=1 // loop_exit
      _

// kernel: autoencoder_forward.14
$region0: #{autoencoder_forward.14}
  #allocation0 [shape = 'u32[]', space=smem, size = 0x4, offset = 0x4, fixed_abs, tag = 'smem constant byte address 0x4 - core index']
  #allocation1 [shape = 'u32[144,128]{1,0:T(1,128)}', space=vmem, size = 0x12000, scoped, tag = 'internal scratch']
  %s0 = inlined_call_operand.vmem [shape: bf16[8,128], index: 0, kind: input, shape index: {}]
  %s1 = inlined_call_operand.vmem [shape: bf16[8,128], index: 1, kind: input, shape index: {}]
  %s2 = inlined_call_operand.vmem [shape: bf16[8,128], index: 2, kind: input, shape index: {}]
  %s3 = inlined_call_operand.vmem [shape: bf16[8,128], index: 3, kind: input, shape index: {}]
  %s4 = inlined_call_operand.vmem [shape: bf16[8,128], index: 4, kind: output, shape index: {}]
  %s5 = sld [smem:[#allocation0]]
  $region26: #{autoencoder_forward.14} parent=0
    _
  %s7 = ssub.s32 1, %s5
  %s8 = scalar_select 0, %s7, %s5
  // Predicated region
  $region2: #{autoencoder_forward.14} parent=0 // pred_check
    _
  $region3: #{autoencoder_forward.14} parent=0 // pred_check_branch
    %10 = sbr.rel (0) target = $region5
  $region4: #{autoencoder_forward.14} parent=0 // pred_region
    _
  $region5: #{autoencoder_forward.14} parent=0 // pred_fallthru
    _
  // Predicated region
  $region6: #{autoencoder_forward.14} parent=0 // pred_check
    _
  $region7: #{autoencoder_forward.14} parent=0 // pred_check_branch
    %12 = sbr.rel (0) target = $region9
  $region8: #{autoencoder_forward.14} parent=0 // pred_region
    _
  $region9: #{autoencoder_forward.14} parent=0 // pred_fallthru
    _
  // Predicated region
  $region10: #{autoencoder_forward.14} parent=0 // pred_check
    _
  $region11: #{autoencoder_forward.14} parent=0 // pred_check_branch
    %14 = sbr.rel (0) target = $region13
  $region12: #{autoencoder_forward.14} parent=0 // pred_region
    _
  $region13: #{autoencoder_forward.14} parent=0 // pred_fallthru
    _
  // Predicated region
  $region14: #{autoencoder_forward.14} parent=0 // pred_check
    _
  $region15: #{autoencoder_forward.14} parent=0 // pred_check_branch
    %16 = sbr.rel (0) target = $region17
  $region16: #{autoencoder_forward.14} parent=0 // pred_region
    _
  $region17: #{autoencoder_forward.14} parent=0 // pred_fallthru
    _
  %v17 = vld [vmem:[%s0] sm:$0xf]
  %v18 = vld [vmem:[%s1] sm:$0xf]
  %v19 = vmax.bf16 %v17, %v18
  %v20 = vld [vmem:[%s2] sm:$0xf]
  %v21 = vld [vmem:[%s3] sm:$0xf]
  %v22 = vmax.bf16 %v20, %v21
  %v23 = vmax.bf16 %v19, %v22
  %24 = vst [vmem:[%s4] sm:$0xf] %v23
  // Predicated region
  $region18: #{autoencoder_forward.14} parent=0 // pred_check
    _
  $region19: #{autoencoder_forward.14} parent=0 // pred_check_branch
    %26 = sbr.rel (0) target = $region21
  $region20: #{autoencoder_forward.14} parent=0 // pred_region
    _
  $region21: #{autoencoder_forward.14} parent=0 // pred_fallthru
    _
  // Predicated region
  $region22: #{autoencoder_forward.14} parent=0 // pred_check
    _
  $region23: #{autoencoder_forward.14} parent=0 // pred_check_branch
    %28 = sbr.rel (0) target = $region25
  $region24: #{autoencoder_forward.14} parent=0 // pred_region
    _
  $region25: #{autoencoder_forward.14} parent=0 // pred_fallthru
    _

// kernel: autoencoder_forward.13
$region0: #{autoencoder_forward.13}
  #allocation0 [shape = 'u32[]', space=smem, size = 0x4, offset = 0x4, fixed_abs, tag = 'smem constant byte address 0x4 - core index']
  #allocation1 [shape = 'u32[144,128]{1,0:T(1,128)}', space=vmem, size = 0x12000, scoped, tag = 'internal scratch']
  %s0 = inlined_call_operand.vmem [shape: bf16[32,800], index: 0, kind: input, shape index: {}]
  %s1 = inlined_call_operand.vmem [shape: bf16[800,128], index: 1, kind: input, shape index: {}]
  %s2 = inlined_call_operand.vmem [shape: f32[32,1], index: 2, kind: input, shape index: {}]
  %s3 = inlined_call_operand.vmem [shape: bf16[32,128], index: 3, kind: output, shape index: {}]
  %s4 = sld [smem:[#allocation0]]
  $region22: #{autoencoder_forward.13} parent=0
    _
  %s6 = ssub.s32 1, %s4
  %s7 = scalar_select 0, %s6, %s4
  // Predicated region
  $region2: #{autoencoder_forward.13} parent=0 // pred_check
    _
  $region3: #{autoencoder_forward.13} parent=0 // pred_check_branch
    %9 = sbr.rel (0) target = $region5
  $region4: #{autoencoder_forward.13} parent=0 // pred_region
    _
  $region5: #{autoencoder_forward.13} parent=0 // pred_fallthru
    _
  // Predicated region
  $region6: #{autoencoder_forward.13} parent=0 // pred_check
    _
  $region7: #{autoencoder_forward.13} parent=0 // pred_check_branch
    %11 = sbr.rel (0) target = $region9
  $region8: #{autoencoder_forward.13} parent=0 // pred_region
    _
  $region9: #{autoencoder_forward.13} parent=0 // pred_fallthru
    _
  // Predicated region
  $region10: #{autoencoder_forward.13} parent=0 // pred_check
    _
  $region11: #{autoencoder_forward.13} parent=0 // pred_check_branch
    %13 = sbr.rel (0) target = $region13
  $region12: #{autoencoder_forward.13} parent=0 // pred_region
    _
  $region13: #{autoencoder_forward.13} parent=0 // pred_fallthru
    _
  %v14 = vld [vmem:[%s0] sm:$0xff]
  %v15 = vld [vmem:[%s0 + $0x8] sm:$0xff]
  %v16 = vld [vmem:[%s0 + $0x10] sm:$0xff]
  %v17 = vld [vmem:[%s0 + $0x18] sm:$0xf]
  %v18 = vld [vmem:[%s0 + $0x1c] sm:$0xff]
  %v19 = vld [vmem:[%s0 + $0x24] sm:$0xff]
  %v20 = vld [vmem:[%s0 + $0x2c] sm:$0xff]
  %v21 = vld [vmem:[%s0 + $0x34] sm:$0xf]
  %v22 = vld [vmem:[%s0 + $0x38] sm:$0xff]
  %v23 = vld [vmem:[%s0 + $0x40] sm:$0xff]
  %v24 = vld [vmem:[%s0 + $0x48] sm:$0xff]
  %v25 = vld [vmem:[%s0 + $0x50] sm:$0xf]
  %v26 = vld [vmem:[%s0 + $0x54] sm:$0xff]
  %v27 = vld [vmem:[%s0 + $0x5c] sm:$0xff]
  %v28 = vld [vmem:[%s0 + $0x64] sm:$0xff]
  %v29 = vld [vmem:[%s0 + $0x6c] sm:$0xf]
  %v30 = vunpack.c.l.bf16 %v14
  %v31 = vunpack.c.h.bf16 %v14
  %v32 = vunpack.c.l.bf16 %v15
  %v33 = vunpack.c.h.bf16 %v15
  %v34 = vunpack.c.l.bf16 %v16
  %v35 = vunpack.c.h.bf16 %v16
  %v36 = vunpack.c.l.bf16 %v17
  %v37 = vunpack.c.l.bf16 %v18
  %v38 = vunpack.c.h.bf16 %v18
  %v39 = vunpack.c.l.bf16 %v19
  %v40 = vunpack.c.h.bf16 %v19
  %v41 = vunpack.c.l.bf16 %v20
  %v42 = vunpack.c.h.bf16 %v20
  %v43 = vunpack.c.l.bf16 %v21
  %v44 = vunpack.c.l.bf16 %v22
  %v45 = vunpack.c.h.bf16 %v22
  %v46 = vunpack.c.l.bf16 %v23
  %v47 = vunpack.c.h.bf16 %v23
  %v48 = vunpack.c.l.bf16 %v24
  %v49 = vunpack.c.h.bf16 %v24
  %v50 = vunpack.c.l.bf16 %v25
  %v51 = vunpack.c.l.bf16 %v26
  %v52 = vunpack.c.h.bf16 %v26
  %v53 = vunpack.c.l.bf16 %v27
  %v54 = vunpack.c.h.bf16 %v27
  %v55 = vunpack.c.l.bf16 %v28
  %v56 = vunpack.c.h.bf16 %v28
  %v57 = vunpack.c.l.bf16 %v29
  %v58 = vld [vmem:[%s1] sm:$0xf]
  %v59 = vld [vmem:[%s1 + $0x4] sm:$0xf]
  %v60 = vld [vmem:[%s1 + $0x8] sm:$0xf]
  %v61 = vld [vmem:[%s1 + $0xc] sm:$0xf]
  %v62 = vld [vmem:[%s1 + $0x10] sm:$0xf]
  %v63 = vld [vmem:[%s1 + $0x14] sm:$0xf]
  %v64 = vld [vmem:[%s1 + $0x18] sm:$0xf]
  %v65 = vld [vmem:[%s1 + $0x1c] sm:$0xf]
  %v66 = vld [vmem:[%s1 + $0x20] sm:$0xf]
  %v67 = vld [vmem:[%s1 + $0x24] sm:$0xf]
  %v68 = vld [vmem:[%s1 + $0x28] sm:$0xf]
  %v69 = vld [vmem:[%s1 + $0x2c] sm:$0xf]
  %v70 = vld [vmem:[%s1 + $0x30] sm:$0xf]
  %v71 = vld [vmem:[%s1 + $0x34] sm:$0xf]
  %v72 = vld [vmem:[%s1 + $0x38] sm:$0xf]
  %v73 = vld [vmem:[%s1 + $0x3c] sm:$0xf]
  %v74 = vld [vmem:[%s1 + $0x40] sm:$0xf]
  %v75 = vld [vmem:[%s1 + $0x44] sm:$0xf]
  %v76 = vld [vmem:[%s1 + $0x48] sm:$0xf]
  %v77 = vld [vmem:[%s1 + $0x4c] sm:$0xf]
  %v78 = vld [vmem:[%s1 + $0x50] sm:$0xf]
  %v79 = vld [vmem:[%s1 + $0x54] sm:$0xf]
  %v80 = vld [vmem:[%s1 + $0x58] sm:$0xf]
  %v81 = vld [vmem:[%s1 + $0x5c] sm:$0xf]
  %v82 = vld [vmem:[%s1 + $0x60] sm:$0xf]
  %v83 = vld [vmem:[%s1 + $0x64] sm:$0xf]
  %v84 = vld [vmem:[%s1 + $0x68] sm:$0xf]
  %v85 = vld [vmem:[%s1 + $0x6c] sm:$0xf]
  %v86 = vld [vmem:[%s1 + $0x70] sm:$0xf]
  %v87 = vld [vmem:[%s1 + $0x74] sm:$0xf]
  %v88 = vld [vmem:[%s1 + $0x78] sm:$0xf]
  %v89 = vld [vmem:[%s1 + $0x7c] sm:$0xf]
  %v90 = vld [vmem:[%s1 + $0x80] sm:$0xf]
  %v91 = vld [vmem:[%s1 + $0x84] sm:$0xf]
  %v92 = vld [vmem:[%s1 + $0x88] sm:$0xf]
  %v93 = vld [vmem:[%s1 + $0x8c] sm:$0xf]
  %v94 = vld [vmem:[%s1 + $0x90] sm:$0xf]
  %v95 = vld [vmem:[%s1 + $0x94] sm:$0xf]
  %v96 = vld [vmem:[%s1 + $0x98] sm:$0xf]
  %v97 = vld [vmem:[%s1 + $0x9c] sm:$0xf]
  %v98 = vld [vmem:[%s1 + $0xa0] sm:$0xf]
  %v99 = vld [vmem:[%s1 + $0xa4] sm:$0xf]
  %v100 = vld [vmem:[%s1 + $0xa8] sm:$0xf]
  %v101 = vld [vmem:[%s1 + $0xac] sm:$0xf]
  %v102 = vld [vmem:[%s1 + $0xb0] sm:$0xf]
  %v103 = vld [vmem:[%s1 + $0xb4] sm:$0xf]
  %v104 = vld [vmem:[%s1 + $0xb8] sm:$0xf]
  %v105 = vld [vmem:[%s1 + $0xbc] sm:$0xf]
  %v106 = vld [vmem:[%s1 + $0xc0] sm:$0xf]
  %v107 = vld [vmem:[%s1 + $0xc4] sm:$0xf]
  %v108 = vld [vmem:[%s1 + $0xc8] sm:$0xf]
  %v109 = vld [vmem:[%s1 + $0xcc] sm:$0xf]
  %v110 = vld [vmem:[%s1 + $0xd0] sm:$0xf]
  %v111 = vld [vmem:[%s1 + $0xd4] sm:$0xf]
  %v112 = vld [vmem:[%s1 + $0xd8] sm:$0xf]
  %v113 = vld [vmem:[%s1 + $0xdc] sm:$0xf]
  %v114 = vld [vmem:[%s1 + $0xe0] sm:$0xf]
  %v115 = vld [vmem:[%s1 + $0xe4] sm:$0xf]
  %v116 = vld [vmem:[%s1 + $0xe8] sm:$0xf]
  %v117 = vld [vmem:[%s1 + $0xec] sm:$0xf]
  %v118 = vld [vmem:[%s1 + $0xf0] sm:$0xf]
  %v119 = vld [vmem:[%s1 + $0xf4] sm:$0xf]
  %v120 = vld [vmem:[%s1 + $0xf8] sm:$0xf]
  %v121 = vld [vmem:[%s1 + $0xfc] sm:$0xf]
  %v122 = vld [vmem:[%s1 + $0x100] sm:$0xf]
  %v123 = vld [vmem:[%s1 + $0x104] sm:$0xf]
  %v124 = vld [vmem:[%s1 + $0x108] sm:$0xf]
  %v125 = vld [vmem:[%s1 + $0x10c] sm:$0xf]
  %v126 = vld [vmem:[%s1 + $0x110] sm:$0xf]
  %v127 = vld [vmem:[%s1 + $0x114] sm:$0xf]
  %v128 = vld [vmem:[%s1 + $0x118] sm:$0xf]
  %v129 = vld [vmem:[%s1 + $0x11c] sm:$0xf]
  %v130 = vld [vmem:[%s1 + $0x120] sm:$0xf]
  %v131 = vld [vmem:[%s1 + $0x124] sm:$0xf]
  %v132 = vld [vmem:[%s1 + $0x128] sm:$0xf]
  %v133 = vld [vmem:[%s1 + $0x12c] sm:$0xf]
  %v134 = vld [vmem:[%s1 + $0x130] sm:$0xf]
  %v135 = vld [vmem:[%s1 + $0x134] sm:$0xf]
  %v136 = vld [vmem:[%s1 + $0x138] sm:$0xf]
  %v137 = vld [vmem:[%s1 + $0x13c] sm:$0xf]
  %v138 = vld [vmem:[%s1 + $0x140] sm:$0xf]
  %v139 = vld [vmem:[%s1 + $0x144] sm:$0xf]
  %v140 = vld [vmem:[%s1 + $0x148] sm:$0xf]
  %v141 = vld [vmem:[%s1 + $0x14c] sm:$0xf]
  %v142 = vld [vmem:[%s1 + $0x150] sm:$0xf]
  %v143 = vld [vmem:[%s1 + $0x154] sm:$0xf]
  %v144 = vld [vmem:[%s1 + $0x158] sm:$0xf]
  %v145 = vld [vmem:[%s1 + $0x15c] sm:$0xf]
  %v146 = vld [vmem:[%s1 + $0x160] sm:$0xf]
  %v147 = vld [vmem:[%s1 + $0x164] sm:$0xf]
  %v148 = vld [vmem:[%s1 + $0x168] sm:$0xf]
  %v149 = vld [vmem:[%s1 + $0x16c] sm:$0xf]
  %v150 = vld [vmem:[%s1 + $0x170] sm:$0xf]
  %v151 = vld [vmem:[%s1 + $0x174] sm:$0xf]
  %v152 = vld [vmem:[%s1 + $0x178] sm:$0xf]
  %v153 = vld [vmem:[%s1 + $0x17c] sm:$0xf]
  %v154 = vld [vmem:[%s1 + $0x180] sm:$0xf]
  %v155 = vld [vmem:[%s1 + $0x184] sm:$0xf]
  %v156 = vld [vmem:[%s1 + $0x188] sm:$0xf]
  %v157 = vld [vmem:[%s1 + $0x18c] sm:$0xf]
  %v158 = vunpack.c.l.bf16 %v58
  %v159 = vunpack.c.l.bf16 %v59
  %v160 = vunpack.c.l.bf16 %v60
  %v161 = vunpack.c.l.bf16 %v61
  %v162 = vunpack.c.l.bf16 %v62
  %v163 = vunpack.c.l.bf16 %v63
  %v164 = vunpack.c.l.bf16 %v64
  %v165 = vunpack.c.l.bf16 %v65
  %v166 = vunpack.c.l.bf16 %v66
  %v167 = vunpack.c.l.bf16 %v67
  %v168 = vunpack.c.l.bf16 %v68
  %v169 = vunpack.c.l.bf16 %v69
  %v170 = vunpack.c.l.bf16 %v70
  %v171 = vunpack.c.l.bf16 %v71
  %v172 = vunpack.c.l.bf16 %v72
  %v173 = vunpack.c.l.bf16 %v73
  %v174 = vunpack.c.l.bf16 %v74
  %v175 = vunpack.c.l.bf16 %v75
  %v176 = vunpack.c.l.bf16 %v76
  %v177 = vunpack.c.l.bf16 %v77
  %v178 = vunpack.c.l.bf16 %v78
  %v179 = vunpack.c.l.bf16 %v79
  %v180 = vunpack.c.l.bf16 %v80
  %v181 = vunpack.c.l.bf16 %v81
  %v182 = vunpack.c.l.bf16 %v82
  %v183 = vunpack.c.l.bf16 %v83
  %v184 = vunpack.c.l.bf16 %v84
  %v185 = vunpack.c.l.bf16 %v85
  %v186 = vunpack.c.l.bf16 %v86
  %v187 = vunpack.c.l.bf16 %v87
  %v188 = vunpack.c.l.bf16 %v88
  %v189 = vunpack.c.l.bf16 %v89
  %v190 = vunpack.c.l.bf16 %v90
  %v191 = vunpack.c.l.bf16 %v91
  %v192 = vunpack.c.l.bf16 %v92
  %v193 = vunpack.c.l.bf16 %v93
  %v194 = vunpack.c.l.bf16 %v94
  %v195 = vunpack.c.l.bf16 %v95
  %v196 = vunpack.c.l.bf16 %v96
  %v197 = vunpack.c.l.bf16 %v97
  %v198 = vunpack.c.l.bf16 %v98
  %v199 = vunpack.c.l.bf16 %v99
  %v200 = vunpack.c.l.bf16 %v100
  %v201 = vunpack.c.l.bf16 %v101
  %v202 = vunpack.c.l.bf16 %v102
  %v203 = vunpack.c.l.bf16 %v103
  %v204 = vunpack.c.l.bf16 %v104
  %v205 = vunpack.c.l.bf16 %v105
  %v206 = vunpack.c.l.bf16 %v106
  %v207 = vunpack.c.l.bf16 %v107
  %v208 = vunpack.c.l.bf16 %v108
  %v209 = vunpack.c.l.bf16 %v109
  %v210 = vunpack.c.l.bf16 %v110
  %v211 = vunpack.c.l.bf16 %v111
  %v212 = vunpack.c.l.bf16 %v112
  %v213 = vunpack.c.l.bf16 %v113
  %v214 = vunpack.c.l.bf16 %v114
  %v215 = vunpack.c.l.bf16 %v115
  %v216 = vunpack.c.l.bf16 %v116
  %v217 = vunpack.c.l.bf16 %v117
  %v218 = vunpack.c.l.bf16 %v118
  %v219 = vunpack.c.l.bf16 %v119
  %v220 = vunpack.c.l.bf16 %v120
  %v221 = vunpack.c.l.bf16 %v121
  %v222 = vunpack.c.l.bf16 %v122
  %v223 = vunpack.c.l.bf16 %v123
  %v224 = vunpack.c.l.bf16 %v124
  %v225 = vunpack.c.l.bf16 %v125
  %v226 = vunpack.c.l.bf16 %v126
  %v227 = vunpack.c.l.bf16 %v127
  %v228 = vunpack.c.l.bf16 %v128
  %v229 = vunpack.c.l.bf16 %v129
  %v230 = vunpack.c.l.bf16 %v130
  %v231 = vunpack.c.l.bf16 %v131
  %v232 = vunpack.c.l.bf16 %v132
  %v233 = vunpack.c.l.bf16 %v133
  %v234 = vunpack.c.l.bf16 %v134
  %v235 = vunpack.c.l.bf16 %v135
  %v236 = vunpack.c.l.bf16 %v136
  %v237 = vunpack.c.l.bf16 %v137
  %v238 = vunpack.c.l.bf16 %v138
  %v239 = vunpack.c.l.bf16 %v139
  %v240 = vunpack.c.l.bf16 %v140
  %v241 = vunpack.c.l.bf16 %v141
  %v242 = vunpack.c.l.bf16 %v142
  %v243 = vunpack.c.l.bf16 %v143
  %v244 = vunpack.c.l.bf16 %v144
  %v245 = vunpack.c.l.bf16 %v145
  %v246 = vunpack.c.l.bf16 %v146
  %v247 = vunpack.c.l.bf16 %v147
  %v248 = vunpack.c.l.bf16 %v148
  %v249 = vunpack.c.l.bf16 %v149
  %v250 = vunpack.c.l.bf16 %v150
  %v251 = vunpack.c.l.bf16 %v151
  %v252 = vunpack.c.l.bf16 %v152
  %v253 = vunpack.c.l.bf16 %v153
  %v254 = vunpack.c.l.bf16 %v154
  %v255 = vunpack.c.l.bf16 %v155
  %v256 = vunpack.c.l.bf16 %v156
  %v257 = vunpack.c.l.bf16 %v157
  %v258 = vld [vmem:[%s2] sm:$0xff]
  %v259 = vld [vmem:[%s2 + $0x8] sm:$0xff]
  %v260 = vld [vmem:[%s2 + $0x10] sm:$0xff]
  %v261 = vld [vmem:[%s2 + $0x18] sm:$0xff]
  %263 = vset.pattern.permute.xlu0 0
  %264 = vperm.xlu0 %263, %v258
  %v265 = vpop.permute.xlu0 %264
  %268 = vset.pattern.permute.xlu0 0
  %269 = vperm.xlu0 %268, %v259
  %v270 = vpop.permute.xlu0 %269
  %273 = vset.pattern.permute.xlu0 0
  %274 = vperm.xlu0 %273, %v260
  %v275 = vpop.permute.xlu0 %274
  %278 = vset.pattern.permute.xlu0 0
  %279 = vperm.xlu0 %278, %v261
  %v280 = vpop.permute.xlu0 %279
  %vm282 = vcmask 261120
  %v284 = vsel %vm282, %v36, 0
  %v287 = vsel %vm282, %v43, 0
  %v290 = vsel %vm282, %v50, 0
  %v293 = vsel %vm282, %v57, 0
  %295 = vmatprep.subr.mxu0 0.0
  %296 = vmatpush1.msra.mxu0 %v173
  %297 = vmatprep.subr.mxu0 0.0
  %298 = vmatpush1.msra.mxu0 %v172
  %299 = vmatprep.subr.mxu0 0.0
  %300 = vmatpush1.msra.mxu0 %v171
  %301 = vmatprep.subr.mxu0 0.0
  %302 = vmatpush1.msra.mxu0 %v170
  %303 = vmatprep.subr.mxu0 0.0
  %304 = vmatpush1.msra.mxu0 %v169
  %305 = vmatprep.subr.mxu0 0.0
  %306 = vmatpush1.msra.mxu0 %v168
  %307 = vmatprep.subr.mxu0 0.0
  %308 = vmatpush1.msra.mxu0 %v167
  %309 = vmatprep.subr.mxu0 0.0
  %310 = vmatpush1.msra.mxu0 %v166
  %311 = vmatprep.subr.mxu0 0.0
  %312 = vmatpush1.msra.mxu0 %v165
  %313 = vmatprep.subr.mxu0 0.0
  %314 = vmatpush1.msra.mxu0 %v164
  %315 = vmatprep.subr.mxu0 0.0
  %316 = vmatpush1.msra.mxu0 %v163
  %317 = vmatprep.subr.mxu0 0.0
  %318 = vmatpush1.msra.mxu0 %v162
  %319 = vmatprep.subr.mxu0 0.0
  %320 = vmatpush1.msra.mxu0 %v161
  %321 = vmatprep.subr.mxu0 0.0
  %322 = vmatpush1.msra.mxu0 %v160
  %323 = vmatprep.subr.mxu0 0.0
  %324 = vmatpush1.msra.mxu0 %v159
  %325 = vmatprep.subr.mxu0 0.0
  %326 = vmatpush1.msra.mxu0 %v158
  %327 = vmatprep.subr.mxu0 0.0
  %328 = vmatpush2.msra.mxu0 %v189
  %329 = vmatprep.subr.mxu0 0.0
  %330 = vmatpush2.msra.mxu0 %v188
  %331 = vmatprep.subr.mxu0 0.0
  %332 = vmatpush2.msra.mxu0 %v187
  %333 = vmatprep.subr.mxu0 0.0
  %334 = vmatpush2.msra.mxu0 %v186
  %335 = vmatprep.subr.mxu0 0.0
  %336 = vmatpush2.msra.mxu0 %v185
  %337 = vmatprep.subr.mxu0 0.0
  %338 = vmatpush2.msra.mxu0 %v184
  %339 = vmatprep.subr.mxu0 0.0
  %340 = vmatpush2.msra.mxu0 %v183
  %341 = vmatprep.subr.mxu0 0.0
  %342 = vmatpush2.msra.mxu0 %v182
  %343 = vmatprep.subr.mxu0 0.0
  %344 = vmatpush2.msra.mxu0 %v181
  %345 = vmatprep.subr.mxu0 0.0
  %346 = vmatpush2.msra.mxu0 %v180
  %347 = vmatprep.subr.mxu0 0.0
  %348 = vmatpush2.msra.mxu0 %v179
  %349 = vmatprep.subr.mxu0 0.0
  %350 = vmatpush2.msra.mxu0 %v178
  %351 = vmatprep.subr.mxu0 0.0
  %352 = vmatpush2.msra.mxu0 %v177
  %353 = vmatprep.subr.mxu0 0.0
  %354 = vmatpush2.msra.mxu0 %v176
  %355 = vmatprep.subr.mxu0 0.0
  %356 = vmatpush2.msra.mxu0 %v175
  %357 = vmatprep.subr.mxu0 0.0
  %358 = vmatpush2.msra.mxu0 %v174
  %359 = vmatprep.mubr.f32.mxu0 %v31
  %360 = vmatmul.mubr.f32.gmra.mxu0 %v30
  %v361 = vpop.f32.mrf.mxu0
  %v362 = vadd.f32 %v265, %v361
  %v363 = vpop.f32.mrf.mxu0
  %364 = vmatprep.mubr.f32.mxu0 %v38
  %365 = vmatmul.mubr.f32.gmra.mxu0 %v37
  %v366 = vpop.f32.mrf.mxu0
  %v367 = vadd.f32 %v270, %v366
  %v368 = vpop.f32.mrf.mxu0
  %369 = vmatprep.mubr.f32.mxu0 %v45
  %370 = vmatmul.mubr.f32.gmra.mxu0 %v44
  %v371 = vpop.f32.mrf.mxu0
  %v372 = vadd.f32 %v275, %v371
  %v373 = vpop.f32.mrf.mxu0
  %374 = vmatprep.mubr.f32.mxu0 %v52
  %375 = vmatmul.mubr.f32.gmra.mxu0 %v51
  %v376 = vpop.f32.mrf.mxu0
  %v377 = vadd.f32 %v280, %v376
  %v378 = vpop.f32.mrf.mxu0
  %379 = vdwg.mxu0
  %380 = vmatprep.subr.mxu0 0.0
  %381 = vmatpush1.msra.mxu0 %v205
  %382 = vmatprep.subr.mxu0 0.0
  %383 = vmatpush1.msra.mxu0 %v204
  %384 = vmatprep.subr.mxu0 0.0
  %385 = vmatpush1.msra.mxu0 %v203
  %386 = vmatprep.subr.mxu0 0.0
  %387 = vmatpush1.msra.mxu0 %v202
  %388 = vmatprep.subr.mxu0 0.0
  %389 = vmatpush1.msra.mxu0 %v201
  %390 = vmatprep.subr.mxu0 0.0
  %391 = vmatpush1.msra.mxu0 %v200
  %392 = vmatprep.subr.mxu0 0.0
  %393 = vmatpush1.msra.mxu0 %v199
  %394 = vmatprep.subr.mxu0 0.0
  %395 = vmatpush1.msra.mxu0 %v198
  %396 = vmatprep.subr.mxu0 0.0
  %397 = vmatpush1.msra.mxu0 %v197
  %398 = vmatprep.subr.mxu0 0.0
  %399 = vmatpush1.msra.mxu0 %v196
  %400 = vmatprep.subr.mxu0 0.0
  %401 = vmatpush1.msra.mxu0 %v195
  %402 = vmatprep.subr.mxu0 0.0
  %403 = vmatpush1.msra.mxu0 %v194
  %404 = vmatprep.subr.mxu0 0.0
  %405 = vmatpush1.msra.mxu0 %v193
  %406 = vmatprep.subr.mxu0 0.0
  %407 = vmatpush1.msra.mxu0 %v192
  %408 = vmatprep.subr.mxu0 0.0
  %409 = vmatpush1.msra.mxu0 %v191
  %410 = vmatprep.subr.mxu0 0.0
  %411 = vmatpush1.msra.mxu0 %v190
  %412 = vmatprep.subr.mxu0 0.0
  %413 = vmatpush2.msra.mxu0 %v221
  %414 = vmatprep.subr.mxu0 0.0
  %415 = vmatpush2.msra.mxu0 %v220
  %416 = vmatprep.subr.mxu0 0.0
  %417 = vmatpush2.msra.mxu0 %v219
  %418 = vmatprep.subr.mxu0 0.0
  %419 = vmatpush2.msra.mxu0 %v218
  %420 = vmatprep.subr.mxu0 0.0
  %421 = vmatpush2.msra.mxu0 %v217
  %422 = vmatprep.subr.mxu0 0.0
  %423 = vmatpush2.msra.mxu0 %v216
  %424 = vmatprep.subr.mxu0 0.0
  %425 = vmatpush2.msra.mxu0 %v215
  %426 = vmatprep.subr.mxu0 0.0
  %427 = vmatpush2.msra.mxu0 %v214
  %428 = vmatprep.subr.mxu0 0.0
  %429 = vmatpush2.msra.mxu0 %v213
  %430 = vmatprep.subr.mxu0 0.0
  %431 = vmatpush2.msra.mxu0 %v212
  %432 = vmatprep.subr.mxu0 0.0
  %433 = vmatpush2.msra.mxu0 %v211
  %434 = vmatprep.subr.mxu0 0.0
  %435 = vmatpush2.msra.mxu0 %v210
  %436 = vmatprep.subr.mxu0 0.0
  %437 = vmatpush2.msra.mxu0 %v209
  %438 = vmatprep.subr.mxu0 0.0
  %439 = vmatpush2.msra.mxu0 %v208
  %440 = vmatprep.subr.mxu0 0.0
  %441 = vmatpush2.msra.mxu0 %v207
  %442 = vmatprep.subr.mxu0 0.0
  %443 = vmatpush2.msra.mxu0 %v206
  %444 = vmatprep.mubr.f32.mxu0 %v33
  %445 = vmatmul.mubr.f32.gmra.mxu0 %v32
  %v446 = vpop.f32.mrf.mxu0
  %v447 = vadd.f32 %v362, %v446
  %v448 = vpop.f32.mrf.mxu0
  %449 = vmatprep.mubr.f32.mxu0 %v40
  %450 = vmatmul.mubr.f32.gmra.mxu0 %v39
  %v451 = vpop.f32.mrf.mxu0
  %v452 = vadd.f32 %v367, %v451
  %v453 = vpop.f32.mrf.mxu0
  %454 = vmatprep.mubr.f32.mxu0 %v47
  %455 = vmatmul.mubr.f32.gmra.mxu0 %v46
  %v456 = vpop.f32.mrf.mxu0
  %v457 = vadd.f32 %v372, %v456
  %v458 = vpop.f32.mrf.mxu0
  %459 = vmatprep.mubr.f32.mxu0 %v54
  %460 = vmatmul.mubr.f32.gmra.mxu0 %v53
  %v461 = vpop.f32.mrf.mxu0
  %v462 = vadd.f32 %v377, %v461
  %v463 = vpop.f32.mrf.mxu0
  %464 = vdwg.mxu0
  %465 = vmatprep.subr.mxu0 0.0
  %466 = vmatpush1.msra.mxu0 %v237
  %467 = vmatprep.subr.mxu0 0.0
  %468 = vmatpush1.msra.mxu0 %v236
  %469 = vmatprep.subr.mxu0 0.0
  %470 = vmatpush1.msra.mxu0 %v235
  %471 = vmatprep.subr.mxu0 0.0
  %472 = vmatpush1.msra.mxu0 %v234
  %473 = vmatprep.subr.mxu0 0.0
  %474 = vmatpush1.msra.mxu0 %v233
  %475 = vmatprep.subr.mxu0 0.0
  %476 = vmatpush1.msra.mxu0 %v232
  %477 = vmatprep.subr.mxu0 0.0
  %478 = vmatpush1.msra.mxu0 %v231
  %479 = vmatprep.subr.mxu0 0.0
  %480 = vmatpush1.msra.mxu0 %v230
  %481 = vmatprep.subr.mxu0 0.0
  %482 = vmatpush1.msra.mxu0 %v229
  %483 = vmatprep.subr.mxu0 0.0
  %484 = vmatpush1.msra.mxu0 %v228
  %485 = vmatprep.subr.mxu0 0.0
  %486 = vmatpush1.msra.mxu0 %v227
  %487 = vmatprep.subr.mxu0 0.0
  %488 = vmatpush1.msra.mxu0 %v226
  %489 = vmatprep.subr.mxu0 0.0
  %490 = vmatpush1.msra.mxu0 %v225
  %491 = vmatprep.subr.mxu0 0.0
  %492 = vmatpush1.msra.mxu0 %v224
  %493 = vmatprep.subr.mxu0 0.0
  %494 = vmatpush1.msra.mxu0 %v223
  %495 = vmatprep.subr.mxu0 0.0
  %496 = vmatpush1.msra.mxu0 %v222
  %497 = vmatprep.subr.mxu0 0.0
  %498 = vmatpush2.msra.mxu0 %v253
  %499 = vmatprep.subr.mxu0 0.0
  %500 = vmatpush2.msra.mxu0 %v252
  %501 = vmatprep.subr.mxu0 0.0
  %502 = vmatpush2.msra.mxu0 %v251
  %503 = vmatprep.subr.mxu0 0.0
  %504 = vmatpush2.msra.mxu0 %v250
  %505 = vmatprep.subr.mxu0 0.0
  %506 = vmatpush2.msra.mxu0 %v249
  %507 = vmatprep.subr.mxu0 0.0
  %508 = vmatpush2.msra.mxu0 %v248
  %509 = vmatprep.subr.mxu0 0.0
  %510 = vmatpush2.msra.mxu0 %v247
  %511 = vmatprep.subr.mxu0 0.0
  %512 = vmatpush2.msra.mxu0 %v246
  %513 = vmatprep.subr.mxu0 0.0
  %514 = vmatpush2.msra.mxu0 %v245
  %515 = vmatprep.subr.mxu0 0.0
  %516 = vmatpush2.msra.mxu0 %v244
  %517 = vmatprep.subr.mxu0 0.0
  %518 = vmatpush2.msra.mxu0 %v243
  %519 = vmatprep.subr.mxu0 0.0
  %520 = vmatpush2.msra.mxu0 %v242
  %521 = vmatprep.subr.mxu0 0.0
  %522 = vmatpush2.msra.mxu0 %v241
  %523 = vmatprep.subr.mxu0 0.0
  %524 = vmatpush2.msra.mxu0 %v240
  %525 = vmatprep.subr.mxu0 0.0
  %526 = vmatpush2.msra.mxu0 %v239
  %527 = vmatprep.subr.mxu0 0.0
  %528 = vmatpush2.msra.mxu0 %v238
  %529 = vmatprep.mubr.f32.mxu0 %v35
  %530 = vmatmul.mubr.f32.gmra.mxu0 %v34
  %v531 = vpop.f32.mrf.mxu0
  %v532 = vadd.f32 %v447, %v531
  %v533 = vpop.f32.mrf.mxu0
  %534 = vmatprep.mubr.f32.mxu0 %v42
  %535 = vmatmul.mubr.f32.gmra.mxu0 %v41
  %v536 = vpop.f32.mrf.mxu0
  %v537 = vadd.f32 %v452, %v536
  %v538 = vpop.f32.mrf.mxu0
  %539 = vmatprep.mubr.f32.mxu0 %v49
  %540 = vmatmul.mubr.f32.gmra.mxu0 %v48
  %v541 = vpop.f32.mrf.mxu0
  %v542 = vadd.f32 %v457, %v541
  %v543 = vpop.f32.mrf.mxu0
  %544 = vmatprep.mubr.f32.mxu0 %v56
  %545 = vmatmul.mubr.f32.gmra.mxu0 %v55
  %v546 = vpop.f32.mrf.mxu0
  %v547 = vadd.f32 %v462, %v546
  %v548 = vpop.f32.mrf.mxu0
  %549 = vdwg.mxu0
  %550 = vmatprep.subr.mxu0 0.0
  %551 = vmatpush1.msra.mxu0 0.0
  %552 = vmatprep.subr.mxu0 0.0
  %553 = vmatpush1.msra.mxu0 0.0
  %554 = vmatprep.subr.mxu0 0.0
  %555 = vmatpush1.msra.mxu0 0.0
  %556 = vmatprep.subr.mxu0 0.0
  %557 = vmatpush1.msra.mxu0 0.0
  %558 = vmatprep.subr.mxu0 0.0
  %559 = vmatpush1.msra.mxu0 0.0
  %560 = vmatprep.subr.mxu0 0.0
  %561 = vmatpush1.msra.mxu0 0.0
  %562 = vmatprep.subr.mxu0 0.0
  %563 = vmatpush1.msra.mxu0 0.0
  %564 = vmatprep.subr.mxu0 0.0
  %565 = vmatpush1.msra.mxu0 0.0
  %566 = vmatprep.subr.mxu0 0.0
  %567 = vmatpush1.msra.mxu0 0.0
  %568 = vmatprep.subr.mxu0 0.0
  %569 = vmatpush1.msra.mxu0 0.0
  %570 = vmatprep.subr.mxu0 0.0
  %571 = vmatpush1.msra.mxu0 0.0
  %572 = vmatprep.subr.mxu0 0.0
  %573 = vmatpush1.msra.mxu0 0.0
  %574 = vmatprep.subr.mxu0 0.0
  %575 = vmatpush1.msra.mxu0 %v257
  %576 = vmatprep.subr.mxu0 0.0
  %577 = vmatpush1.msra.mxu0 %v256
  %578 = vmatprep.subr.mxu0 0.0
  %579 = vmatpush1.msra.mxu0 %v255
  %580 = vmatprep.subr.mxu0 0.0
  %581 = vmatpush1.msra.mxu0 %v254
  %582 = vmatprep.subr.mxu0 0.0
  %583 = vmatpush2.msra.mxu0 0.0
  %584 = vmatprep.subr.mxu0 0.0
  %585 = vmatpush2.msra.mxu0 0.0
  %586 = vmatprep.subr.mxu0 0.0
  %587 = vmatpush2.msra.mxu0 0.0
  %588 = vmatprep.subr.mxu0 0.0
  %589 = vmatpush2.msra.mxu0 0.0
  %590 = vmatprep.subr.mxu0 0.0
  %591 = vmatpush2.msra.mxu0 0.0
  %592 = vmatprep.subr.mxu0 0.0
  %593 = vmatpush2.msra.mxu0 0.0
  %594 = vmatprep.subr.mxu0 0.0
  %595 = vmatpush2.msra.mxu0 0.0
  %596 = vmatprep.subr.mxu0 0.0
  %597 = vmatpush2.msra.mxu0 0.0
  %598 = vmatprep.subr.mxu0 0.0
  %599 = vmatpush2.msra.mxu0 0.0
  %600 = vmatprep.subr.mxu0 0.0
  %601 = vmatpush2.msra.mxu0 0.0
  %602 = vmatprep.subr.mxu0 0.0
  %603 = vmatpush2.msra.mxu0 0.0
  %604 = vmatprep.subr.mxu0 0.0
  %605 = vmatpush2.msra.mxu0 0.0
  %606 = vmatprep.subr.mxu0 0.0
  %607 = vmatpush2.msra.mxu0 0.0
  %608 = vmatprep.subr.mxu0 0.0
  %609 = vmatpush2.msra.mxu0 0.0
  %610 = vmatprep.subr.mxu0 0.0
  %611 = vmatpush2.msra.mxu0 0.0
  %612 = vmatprep.subr.mxu0 0.0
  %613 = vmatpush2.msra.mxu0 0.0
  %614 = vmatprep.mubr.f32.mxu0 0.0
  %615 = vmatmul.mubr.f32.gmra.mxu0 %v284
  %v616 = vpop.f32.mrf.mxu0
  %v617 = vadd.f32 %v532, %v616
  %v618 = vpop.f32.mrf.mxu0
  %619 = vmatprep.mubr.f32.mxu0 0.0
  %620 = vmatmul.mubr.f32.gmra.mxu0 %v287
  %v621 = vpop.f32.mrf.mxu0
  %v622 = vadd.f32 %v537, %v621
  %v623 = vpop.f32.mrf.mxu0
  %624 = vmatprep.mubr.f32.mxu0 0.0
  %625 = vmatmul.mubr.f32.gmra.mxu0 %v290
  %v626 = vpop.f32.mrf.mxu0
  %v627 = vadd.f32 %v542, %v626
  %v628 = vpop.f32.mrf.mxu0
  %629 = vmatprep.mubr.f32.mxu0 0.0
  %630 = vmatmul.mubr.f32.gmra.mxu0 %v293
  %v631 = vpop.f32.mrf.mxu0
  %v632 = vadd.f32 %v547, %v631
  %v633 = vpop.f32.mrf.mxu0
  %634 = vdwg.mxu0
  %vm635 = vcmp.ge.f32.partialorder %v617, 0.0
  %vm636 = vcmp.ge.f32.partialorder %v622, 0.0
  %vm637 = vcmp.ge.f32.partialorder %v627, 0.0
  %vm638 = vcmp.ge.f32.partialorder %v632, 0.0
  %v639 = vmul.f32 %v617, 0.01
  %v640 = vmul.f32 %v622, 0.01
  %v641 = vmul.f32 %v627, 0.01
  %v642 = vmul.f32 %v632, 0.01
  %v643 = vsel %vm635, %v617, %v639
  %v644 = vsel %vm636, %v622, %v640
  %v645 = vsel %vm637, %v627, %v641
  %v646 = vsel %vm638, %v632, %v642
  %v647 = vpack.c.bf16 %v644, %v643
  %v648 = vpack.c.bf16 %v646, %v645
  %v651 = vunpack.c.l.b16 %v647
  %v652 = vunpack.c.h.b16 %v647
  %v653 = vunpack.c.l.b16 %v648
  %v654 = vunpack.c.h.b16 %v648
  %v655 = vpack.c.b16 %v651, %v651
  %v656 = vpack.c.b16 %v652, %v652
  %v657 = vpack.c.b16 %v653, %v653
  %v658 = vpack.c.b16 %v654, %v654
  %663 = vst [vmem:[%s3] sm:$0xf] %v655
  %664 = vst [vmem:[%s3 + $0x4] sm:$0xf] %v656
  %665 = vst [vmem:[%s3 + $0x8] sm:$0xf] %v657
  %666 = vst [vmem:[%s3 + $0xc] sm:$0xf] %v658
  // Predicated region
  $region14: #{autoencoder_forward.13} parent=0 // pred_check
    _
  $region15: #{autoencoder_forward.13} parent=0 // pred_check_branch
    %668 = sbr.rel (0) target = $region17
  $region16: #{autoencoder_forward.13} parent=0 // pred_region
    _
  $region17: #{autoencoder_forward.13} parent=0 // pred_fallthru
    _
  // Predicated region
  $region18: #{autoencoder_forward.13} parent=0 // pred_check
    _
  $region19: #{autoencoder_forward.13} parent=0 // pred_check_branch
    %670 = sbr.rel (0) target = $region21
  $region20: #{autoencoder_forward.13} parent=0 // pred_region
    _
  $region21: #{autoencoder_forward.13} parent=0 // pred_fallthru
    _

// kernel: autoencoder_forward.15
$region0: #{autoencoder_forward.15}
  #allocation0 [shape = 'u32[]', space=smem, size = 0x4, offset = 0x4, fixed_abs, tag = 'smem constant byte address 0x4 - core index']
  #allocation1 [shape = 'u32[144,128]{1,0:T(1,128)}', space=vmem, size = 0x12000, scoped, tag = 'internal scratch']
  %s0 = inlined_call_operand.vmem [shape: bf16[16,288], index: 0, kind: input, shape index: {}]
  %s1 = inlined_call_operand.vmem [shape: bf16[288,32], index: 1, kind: input, shape index: {}]
  %s2 = inlined_call_operand.vmem [shape: f32[16,1], index: 2, kind: input, shape index: {}]
  %s3 = inlined_call_operand.vmem [shape: bf16[16,32], index: 3, kind: output, shape index: {}]
  %s4 = sld [smem:[#allocation0]]
  $region22: #{autoencoder_forward.15} parent=0
    _
  %s6 = ssub.s32 1, %s4
  %s7 = scalar_select 0, %s6, %s4
  // Predicated region
  $region2: #{autoencoder_forward.15} parent=0 // pred_check
    _
  $region3: #{autoencoder_forward.15} parent=0 // pred_check_branch
    %9 = sbr.rel (0) target = $region5
  $region4: #{autoencoder_forward.15} parent=0 // pred_region
    _
  $region5: #{autoencoder_forward.15} parent=0 // pred_fallthru
    _
  // Predicated region
  $region6: #{autoencoder_forward.15} parent=0 // pred_check
    _
  $region7: #{autoencoder_forward.15} parent=0 // pred_check_branch
    %11 = sbr.rel (0) target = $region9
  $region8: #{autoencoder_forward.15} parent=0 // pred_region
    _
  $region9: #{autoencoder_forward.15} parent=0 // pred_fallthru
    _
  // Predicated region
  $region10: #{autoencoder_forward.15} parent=0 // pred_check
    _
  $region11: #{autoencoder_forward.15} parent=0 // pred_check_branch
    %13 = sbr.rel (0) target = $region13
  $region12: #{autoencoder_forward.15} parent=0 // pred_region
    _
  $region13: #{autoencoder_forward.15} parent=0 // pred_fallthru
    _
  %v14 = vld [vmem:[%s0] sm:$0xff]
  %v15 = vld [vmem:[%s0 + $0x8] sm:$0xf]
  %v16 = vld [vmem:[%s0 + $0xc] sm:$0xff]
  %v17 = vld [vmem:[%s0 + $0x14] sm:$0xf]
  %v18 = vunpack.c.l.bf16 %v14
  %v19 = vunpack.c.h.bf16 %v14
  %v20 = vunpack.c.l.bf16 %v15
  %v21 = vunpack.c.l.bf16 %v16
  %v22 = vunpack.c.h.bf16 %v16
  %v23 = vunpack.c.l.bf16 %v17
  %v24 = vld [vmem:[%s1] sm:$0xf]
  %v25 = vld [vmem:[%s1 + $0x4] sm:$0xf]
  %v26 = vld [vmem:[%s1 + $0x8] sm:$0xf]
  %v27 = vld [vmem:[%s1 + $0xc] sm:$0xf]
  %v28 = vld [vmem:[%s1 + $0x10] sm:$0xf]
  %v29 = vld [vmem:[%s1 + $0x14] sm:$0xf]
  %v30 = vld [vmem:[%s1 + $0x18] sm:$0xf]
  %v31 = vld [vmem:[%s1 + $0x1c] sm:$0xf]
  %v32 = vld [vmem:[%s1 + $0x20] sm:$0xf]
  %v33 = vld [vmem:[%s1 + $0x24] sm:$0xf]
  %v34 = vld [vmem:[%s1 + $0x28] sm:$0xf]
  %v35 = vld [vmem:[%s1 + $0x2c] sm:$0xf]
  %v36 = vld [vmem:[%s1 + $0x30] sm:$0xf]
  %v37 = vld [vmem:[%s1 + $0x34] sm:$0xf]
  %v38 = vld [vmem:[%s1 + $0x38] sm:$0xf]
  %v39 = vld [vmem:[%s1 + $0x3c] sm:$0xf]
  %v40 = vld [vmem:[%s1 + $0x40] sm:$0xf]
  %v41 = vld [vmem:[%s1 + $0x44] sm:$0xf]
  %v42 = vld [vmem:[%s1 + $0x48] sm:$0xf]
  %v43 = vld [vmem:[%s1 + $0x4c] sm:$0xf]
  %v44 = vld [vmem:[%s1 + $0x50] sm:$0xf]
  %v45 = vld [vmem:[%s1 + $0x54] sm:$0xf]
  %v46 = vld [vmem:[%s1 + $0x58] sm:$0xf]
  %v47 = vld [vmem:[%s1 + $0x5c] sm:$0xf]
  %v48 = vld [vmem:[%s1 + $0x60] sm:$0xf]
  %v49 = vld [vmem:[%s1 + $0x64] sm:$0xf]
  %v50 = vld [vmem:[%s1 + $0x68] sm:$0xf]
  %v51 = vld [vmem:[%s1 + $0x6c] sm:$0xf]
  %v52 = vld [vmem:[%s1 + $0x70] sm:$0xf]
  %v53 = vld [vmem:[%s1 + $0x74] sm:$0xf]
  %v54 = vld [vmem:[%s1 + $0x78] sm:$0xf]
  %v55 = vld [vmem:[%s1 + $0x7c] sm:$0xf]
  %v56 = vld [vmem:[%s1 + $0x80] sm:$0xf]
  %v57 = vld [vmem:[%s1 + $0x84] sm:$0xf]
  %v58 = vld [vmem:[%s1 + $0x88] sm:$0xf]
  %v59 = vld [vmem:[%s1 + $0x8c] sm:$0xf]
  %v60 = vunpack.c.l.bf16 %v24
  %v61 = vunpack.c.l.bf16 %v25
  %v62 = vunpack.c.l.bf16 %v26
  %v63 = vunpack.c.l.bf16 %v27
  %v64 = vunpack.c.l.bf16 %v28
  %v65 = vunpack.c.l.bf16 %v29
  %v66 = vunpack.c.l.bf16 %v30
  %v67 = vunpack.c.l.bf16 %v31
  %v68 = vunpack.c.l.bf16 %v32
  %v69 = vunpack.c.l.bf16 %v33
  %v70 = vunpack.c.l.bf16 %v34
  %v71 = vunpack.c.l.bf16 %v35
  %v72 = vunpack.c.l.bf16 %v36
  %v73 = vunpack.c.l.bf16 %v37
  %v74 = vunpack.c.l.bf16 %v38
  %v75 = vunpack.c.l.bf16 %v39
  %v76 = vunpack.c.l.bf16 %v40
  %v77 = vunpack.c.l.bf16 %v41
  %v78 = vunpack.c.l.bf16 %v42
  %v79 = vunpack.c.l.bf16 %v43
  %v80 = vunpack.c.l.bf16 %v44
  %v81 = vunpack.c.l.bf16 %v45
  %v82 = vunpack.c.l.bf16 %v46
  %v83 = vunpack.c.l.bf16 %v47
  %v84 = vunpack.c.l.bf16 %v48
  %v85 = vunpack.c.l.bf16 %v49
  %v86 = vunpack.c.l.bf16 %v50
  %v87 = vunpack.c.l.bf16 %v51
  %v88 = vunpack.c.l.bf16 %v52
  %v89 = vunpack.c.l.bf16 %v53
  %v90 = vunpack.c.l.bf16 %v54
  %v91 = vunpack.c.l.bf16 %v55
  %v92 = vunpack.c.l.bf16 %v56
  %v93 = vunpack.c.l.bf16 %v57
  %v94 = vunpack.c.l.bf16 %v58
  %v95 = vunpack.c.l.bf16 %v59
  %v96 = vld [vmem:[%s2] sm:$0xff]
  %v97 = vld [vmem:[%s2 + $0x8] sm:$0xff]
  %99 = vset.pattern.permute.xlu0 0
  %100 = vperm.xlu0 %99, %v96
  %v101 = vpop.permute.xlu0 %100
  %104 = vset.pattern.permute.xlu0 0
  %105 = vperm.xlu0 %104, %v97
  %v106 = vpop.permute.xlu0 %105
  %vm108 = vcmask 261120
  %v110 = vsel %vm108, %v20, 0
  %v113 = vsel %vm108, %v23, 0
  %115 = vmatprep.subr.mxu0 0.0
  %116 = vmatpush1.msra.mxu0 %v75
  %117 = vmatprep.subr.mxu0 0.0
  %118 = vmatpush1.msra.mxu0 %v74
  %119 = vmatprep.subr.mxu0 0.0
  %120 = vmatpush1.msra.mxu0 %v73
  %121 = vmatprep.subr.mxu0 0.0
  %122 = vmatpush1.msra.mxu0 %v72
  %123 = vmatprep.subr.mxu0 0.0
  %124 = vmatpush1.msra.mxu0 %v71
  %125 = vmatprep.subr.mxu0 0.0
  %126 = vmatpush1.msra.mxu0 %v70
  %127 = vmatprep.subr.mxu0 0.0
  %128 = vmatpush1.msra.mxu0 %v69
  %129 = vmatprep.subr.mxu0 0.0
  %130 = vmatpush1.msra.mxu0 %v68
  %131 = vmatprep.subr.mxu0 0.0
  %132 = vmatpush1.msra.mxu0 %v67
  %133 = vmatprep.subr.mxu0 0.0
  %134 = vmatpush1.msra.mxu0 %v66
  %135 = vmatprep.subr.mxu0 0.0
  %136 = vmatpush1.msra.mxu0 %v65
  %137 = vmatprep.subr.mxu0 0.0
  %138 = vmatpush1.msra.mxu0 %v64
  %139 = vmatprep.subr.mxu0 0.0
  %140 = vmatpush1.msra.mxu0 %v63
  %141 = vmatprep.subr.mxu0 0.0
  %142 = vmatpush1.msra.mxu0 %v62
  %143 = vmatprep.subr.mxu0 0.0
  %144 = vmatpush1.msra.mxu0 %v61
  %145 = vmatprep.subr.mxu0 0.0
  %146 = vmatpush1.msra.mxu0 %v60
  %147 = vmatprep.subr.mxu0 0.0
  %148 = vmatpush2.msra.mxu0 %v91
  %149 = vmatprep.subr.mxu0 0.0
  %150 = vmatpush2.msra.mxu0 %v90
  %151 = vmatprep.subr.mxu0 0.0
  %152 = vmatpush2.msra.mxu0 %v89
  %153 = vmatprep.subr.mxu0 0.0
  %154 = vmatpush2.msra.mxu0 %v88
  %155 = vmatprep.subr.mxu0 0.0
  %156 = vmatpush2.msra.mxu0 %v87
  %157 = vmatprep.subr.mxu0 0.0
  %158 = vmatpush2.msra.mxu0 %v86
  %159 = vmatprep.subr.mxu0 0.0
  %160 = vmatpush2.msra.mxu0 %v85
  %161 = vmatprep.subr.mxu0 0.0
  %162 = vmatpush2.msra.mxu0 %v84
  %163 = vmatprep.subr.mxu0 0.0
  %164 = vmatpush2.msra.mxu0 %v83
  %165 = vmatprep.subr.mxu0 0.0
  %166 = vmatpush2.msra.mxu0 %v82
  %167 = vmatprep.subr.mxu0 0.0
  %168 = vmatpush2.msra.mxu0 %v81
  %169 = vmatprep.subr.mxu0 0.0
  %170 = vmatpush2.msra.mxu0 %v80
  %171 = vmatprep.subr.mxu0 0.0
  %172 = vmatpush2.msra.mxu0 %v79
  %173 = vmatprep.subr.mxu0 0.0
  %174 = vmatpush2.msra.mxu0 %v78
  %175 = vmatprep.subr.mxu0 0.0
  %176 = vmatpush2.msra.mxu0 %v77
  %177 = vmatprep.subr.mxu0 0.0
  %178 = vmatpush2.msra.mxu0 %v76
  %179 = vmatprep.mubr.f32.mxu0 %v19
  %180 = vmatmul.mubr.f32.gmra.mxu0 %v18
  %v181 = vpop.f32.mrf.mxu0
  %v182 = vadd.f32 %v101, %v181
  %v183 = vpop.f32.mrf.mxu0
  %184 = vmatprep.mubr.f32.mxu0 %v22
  %185 = vmatmul.mubr.f32.gmra.mxu0 %v21
  %v186 = vpop.f32.mrf.mxu0
  %v187 = vadd.f32 %v106, %v186
  %v188 = vpop.f32.mrf.mxu0
  %189 = vdwg.mxu0
  %190 = vmatprep.subr.mxu0 0.0
  %191 = vmatpush1.msra.mxu0 0.0
  %192 = vmatprep.subr.mxu0 0.0
  %193 = vmatpush1.msra.mxu0 0.0
  %194 = vmatprep.subr.mxu0 0.0
  %195 = vmatpush1.msra.mxu0 0.0
  %196 = vmatprep.subr.mxu0 0.0
  %197 = vmatpush1.msra.mxu0 0.0
  %198 = vmatprep.subr.mxu0 0.0
  %199 = vmatpush1.msra.mxu0 0.0
  %200 = vmatprep.subr.mxu0 0.0
  %201 = vmatpush1.msra.mxu0 0.0
  %202 = vmatprep.subr.mxu0 0.0
  %203 = vmatpush1.msra.mxu0 0.0
  %204 = vmatprep.subr.mxu0 0.0
  %205 = vmatpush1.msra.mxu0 0.0
  %206 = vmatprep.subr.mxu0 0.0
  %207 = vmatpush1.msra.mxu0 0.0
  %208 = vmatprep.subr.mxu0 0.0
  %209 = vmatpush1.msra.mxu0 0.0
  %210 = vmatprep.subr.mxu0 0.0
  %211 = vmatpush1.msra.mxu0 0.0
  %212 = vmatprep.subr.mxu0 0.0
  %213 = vmatpush1.msra.mxu0 0.0
  %214 = vmatprep.subr.mxu0 0.0
  %215 = vmatpush1.msra.mxu0 %v95
  %216 = vmatprep.subr.mxu0 0.0
  %217 = vmatpush1.msra.mxu0 %v94
  %218 = vmatprep.subr.mxu0 0.0
  %219 = vmatpush1.msra.mxu0 %v93
  %220 = vmatprep.subr.mxu0 0.0
  %221 = vmatpush1.msra.mxu0 %v92
  %222 = vmatprep.subr.mxu0 0.0
  %223 = vmatpush2.msra.mxu0 0.0
  %224 = vmatprep.subr.mxu0 0.0
  %225 = vmatpush2.msra.mxu0 0.0
  %226 = vmatprep.subr.mxu0 0.0
  %227 = vmatpush2.msra.mxu0 0.0
  %228 = vmatprep.subr.mxu0 0.0
  %229 = vmatpush2.msra.mxu0 0.0
  %230 = vmatprep.subr.mxu0 0.0
  %231 = vmatpush2.msra.mxu0 0.0
  %232 = vmatprep.subr.mxu0 0.0
  %233 = vmatpush2.msra.mxu0 0.0
  %234 = vmatprep.subr.mxu0 0.0
  %235 = vmatpush2.msra.mxu0 0.0
  %236 = vmatprep.subr.mxu0 0.0
  %237 = vmatpush2.msra.mxu0 0.0
  %238 = vmatprep.subr.mxu0 0.0
  %239 = vmatpush2.msra.mxu0 0.0
  %240 = vmatprep.subr.mxu0 0.0
  %241 = vmatpush2.msra.mxu0 0.0
  %242 = vmatprep.subr.mxu0 0.0
  %243 = vmatpush2.msra.mxu0 0.0
  %244 = vmatprep.subr.mxu0 0.0
  %245 = vmatpush2.msra.mxu0 0.0
  %246 = vmatprep.subr.mxu0 0.0
  %247 = vmatpush2.msra.mxu0 0.0
  %248 = vmatprep.subr.mxu0 0.0
  %249 = vmatpush2.msra.mxu0 0.0
  %250 = vmatprep.subr.mxu0 0.0
  %251 = vmatpush2.msra.mxu0 0.0
  %252 = vmatprep.subr.mxu0 0.0
  %253 = vmatpush2.msra.mxu0 0.0
  %254 = vmatprep.mubr.f32.mxu0 0.0
  %255 = vmatmul.mubr.f32.gmra.mxu0 %v110
  %v256 = vpop.f32.mrf.mxu0
  %v257 = vadd.f32 %v182, %v256
  %v258 = vpop.f32.mrf.mxu0
  %259 = vmatprep.mubr.f32.mxu0 0.0
  %260 = vmatmul.mubr.f32.gmra.mxu0 %v113
  %v261 = vpop.f32.mrf.mxu0
  %v262 = vadd.f32 %v187, %v261
  %v263 = vpop.f32.mrf.mxu0
  %264 = vdwg.mxu0
  %vm265 = vcmp.ge.f32.partialorder %v257, 0.0
  %vm266 = vcmp.ge.f32.partialorder %v262, 0.0
  %v267 = vmul.f32 %v257, 0.01
  %v268 = vmul.f32 %v262, 0.01
  %v269 = vsel %vm265, %v257, %v267
  %v270 = vsel %vm266, %v262, %v268
  %v271 = vpack.c.bf16 %v270, %v269
  %v273 = vunpack.c.l.b16 %v271
  %v274 = vunpack.c.h.b16 %v271
  %v275 = vpack.c.b16 %v273, %v273
  %v276 = vpack.c.b16 %v274, %v274
  %vm279 = vcmask 257024
  %280 = vst.msk [vmem:[%s3] sm:$0xf] %vm279, %v275
  %281 = vst.msk [vmem:[%s3 + $0x4] sm:$0xf] %vm279, %v276
  // Predicated region
  $region14: #{autoencoder_forward.15} parent=0 // pred_check
    _
  $region15: #{autoencoder_forward.15} parent=0 // pred_check_branch
    %283 = sbr.rel (0) target = $region17
  $region16: #{autoencoder_forward.15} parent=0 // pred_region
    _
  $region17: #{autoencoder_forward.15} parent=0 // pred_fallthru
    _
  // Predicated region
  $region18: #{autoencoder_forward.15} parent=0 // pred_check
    _
  $region19: #{autoencoder_forward.15} parent=0 // pred_check_branch
    %285 = sbr.rel (0) target = $region21
  $region20: #{autoencoder_forward.15} parent=0 // pred_region
    _
  $region21: #{autoencoder_forward.15} parent=0 // pred_fallthru
    _

// kernel: autoencoder_forward.17
$region0: #{autoencoder_forward.17}
  #allocation0 [shape = 'u32[]', space=smem, size = 0x4, offset = 0x4, fixed_abs, tag = 'smem constant byte address 0x4 - core index']
  #allocation1 [shape = 'u32[144,128]{1,0:T(1,128)}', space=vmem, size = 0x12000, scoped, tag = 'internal scratch']
  %s0 = inlined_call_operand.vmem [shape: bf16[8,144], index: 0, kind: input, shape index: {}]
  %s1 = inlined_call_operand.vmem [shape: bf16[144,8], index: 1, kind: input, shape index: {}]
  %s2 = inlined_call_operand.vmem [shape: f32[8,1], index: 2, kind: input, shape index: {}]
  %s3 = inlined_call_operand.vmem [shape: bf16[8,8], index: 3, kind: output, shape index: {}]
  %s4 = sld [smem:[#allocation0]]
  $region22: #{autoencoder_forward.17} parent=0
    _
  %s6 = ssub.s32 1, %s4
  %s7 = scalar_select 0, %s6, %s4
  // Predicated region
  $region2: #{autoencoder_forward.17} parent=0 // pred_check
    _
  $region3: #{autoencoder_forward.17} parent=0 // pred_check_branch
    %9 = sbr.rel (0) target = $region5
  $region4: #{autoencoder_forward.17} parent=0 // pred_region
    _
  $region5: #{autoencoder_forward.17} parent=0 // pred_fallthru
    _
  // Predicated region
  $region6: #{autoencoder_forward.17} parent=0 // pred_check
    _
  $region7: #{autoencoder_forward.17} parent=0 // pred_check_branch
    %11 = sbr.rel (0) target = $region9
  $region8: #{autoencoder_forward.17} parent=0 // pred_region
    _
  $region9: #{autoencoder_forward.17} parent=0 // pred_fallthru
    _
  // Predicated region
  $region10: #{autoencoder_forward.17} parent=0 // pred_check
    _
  $region11: #{autoencoder_forward.17} parent=0 // pred_check_branch
    %13 = sbr.rel (0) target = $region13
  $region12: #{autoencoder_forward.17} parent=0 // pred_region
    _
  $region13: #{autoencoder_forward.17} parent=0 // pred_fallthru
    _
  %v14 = vld [vmem:[%s0] sm:$0xff]
  %v15 = vunpack.c.l.bf16 %v14
  %v16 = vunpack.c.h.bf16 %v14
  %v17 = vld [vmem:[%s1] sm:$0xf]
  %v18 = vld [vmem:[%s1 + $0x4] sm:$0xf]
  %v19 = vld [vmem:[%s1 + $0x8] sm:$0xf]
  %v20 = vld [vmem:[%s1 + $0xc] sm:$0xf]
  %v21 = vld [vmem:[%s1 + $0x10] sm:$0xf]
  %v22 = vld [vmem:[%s1 + $0x14] sm:$0xf]
  %v23 = vld [vmem:[%s1 + $0x18] sm:$0xf]
  %v24 = vld [vmem:[%s1 + $0x1c] sm:$0xf]
  %v25 = vld [vmem:[%s1 + $0x20] sm:$0xf]
  %v26 = vld [vmem:[%s1 + $0x24] sm:$0xf]
  %v27 = vld [vmem:[%s1 + $0x28] sm:$0xf]
  %v28 = vld [vmem:[%s1 + $0x2c] sm:$0xf]
  %v29 = vld [vmem:[%s1 + $0x30] sm:$0xf]
  %v30 = vld [vmem:[%s1 + $0x34] sm:$0xf]
  %v31 = vld [vmem:[%s1 + $0x38] sm:$0xf]
  %v32 = vld [vmem:[%s1 + $0x3c] sm:$0xf]
  %v33 = vld [vmem:[%s1 + $0x40] sm:$0xf]
  %v34 = vld [vmem:[%s1 + $0x44] sm:$0xf]
  %v35 = vunpack.c.l.bf16 %v17
  %v36 = vunpack.c.l.bf16 %v18
  %v37 = vunpack.c.l.bf16 %v19
  %v38 = vunpack.c.l.bf16 %v20
  %v39 = vunpack.c.l.bf16 %v21
  %v40 = vunpack.c.l.bf16 %v22
  %v41 = vunpack.c.l.bf16 %v23
  %v42 = vunpack.c.l.bf16 %v24
  %v43 = vunpack.c.l.bf16 %v25
  %v44 = vunpack.c.l.bf16 %v26
  %v45 = vunpack.c.l.bf16 %v27
  %v46 = vunpack.c.l.bf16 %v28
  %v47 = vunpack.c.l.bf16 %v29
  %v48 = vunpack.c.l.bf16 %v30
  %v49 = vunpack.c.l.bf16 %v31
  %v50 = vunpack.c.l.bf16 %v32
  %v51 = vunpack.c.l.bf16 %v33
  %v52 = vunpack.c.l.bf16 %v34
  %v53 = vld [vmem:[%s2] sm:$0xff]
  %55 = vset.pattern.permute.xlu0 0
  %56 = vperm.xlu0 %55, %v53
  %v57 = vpop.permute.xlu0 %56
  %vm59 = vcmask 130048
  %v61 = vsel %vm59, %v16, 0
  %63 = vmatprep.subr.mxu0 0.0
  %64 = vmatpush1.msra.mxu0 %v50
  %65 = vmatprep.subr.mxu0 0.0
  %66 = vmatpush1.msra.mxu0 %v49
  %67 = vmatprep.subr.mxu0 0.0
  %68 = vmatpush1.msra.mxu0 %v48
  %69 = vmatprep.subr.mxu0 0.0
  %70 = vmatpush1.msra.mxu0 %v47
  %71 = vmatprep.subr.mxu0 0.0
  %72 = vmatpush1.msra.mxu0 %v46
  %73 = vmatprep.subr.mxu0 0.0
  %74 = vmatpush1.msra.mxu0 %v45
  %75 = vmatprep.subr.mxu0 0.0
  %76 = vmatpush1.msra.mxu0 %v44
  %77 = vmatprep.subr.mxu0 0.0
  %78 = vmatpush1.msra.mxu0 %v43
  %79 = vmatprep.subr.mxu0 0.0
  %80 = vmatpush1.msra.mxu0 %v42
  %81 = vmatprep.subr.mxu0 0.0
  %82 = vmatpush1.msra.mxu0 %v41
  %83 = vmatprep.subr.mxu0 0.0
  %84 = vmatpush1.msra.mxu0 %v40
  %85 = vmatprep.subr.mxu0 0.0
  %86 = vmatpush1.msra.mxu0 %v39
  %87 = vmatprep.subr.mxu0 0.0
  %88 = vmatpush1.msra.mxu0 %v38
  %89 = vmatprep.subr.mxu0 0.0
  %90 = vmatpush1.msra.mxu0 %v37
  %91 = vmatprep.subr.mxu0 0.0
  %92 = vmatpush1.msra.mxu0 %v36
  %93 = vmatprep.subr.mxu0 0.0
  %94 = vmatpush1.msra.mxu0 %v35
  %95 = vmatprep.subr.mxu0 0.0
  %96 = vmatpush2.msra.mxu0 0.0
  %97 = vmatprep.subr.mxu0 0.0
  %98 = vmatpush2.msra.mxu0 0.0
  %99 = vmatprep.subr.mxu0 0.0
  %100 = vmatpush2.msra.mxu0 0.0
  %101 = vmatprep.subr.mxu0 0.0
  %102 = vmatpush2.msra.mxu0 0.0
  %103 = vmatprep.subr.mxu0 0.0
  %104 = vmatpush2.msra.mxu0 0.0
  %105 = vmatprep.subr.mxu0 0.0
  %106 = vmatpush2.msra.mxu0 0.0
  %107 = vmatprep.subr.mxu0 0.0
  %108 = vmatpush2.msra.mxu0 0.0
  %109 = vmatprep.subr.mxu0 0.0
  %110 = vmatpush2.msra.mxu0 0.0
  %111 = vmatprep.subr.mxu0 0.0
  %112 = vmatpush2.msra.mxu0 0.0
  %113 = vmatprep.subr.mxu0 0.0
  %114 = vmatpush2.msra.mxu0 0.0
  %115 = vmatprep.subr.mxu0 0.0
  %116 = vmatpush2.msra.mxu0 0.0
  %117 = vmatprep.subr.mxu0 0.0
  %118 = vmatpush2.msra.mxu0 0.0
  %119 = vmatprep.subr.mxu0 0.0
  %120 = vmatpush2.msra.mxu0 0.0
  %121 = vmatprep.subr.mxu0 0.0
  %122 = vmatpush2.msra.mxu0 0.0
  %123 = vmatprep.subr.mxu0 0.0
  %124 = vmatpush2.msra.mxu0 %v52
  %125 = vmatprep.subr.mxu0 0.0
  %126 = vmatpush2.msra.mxu0 %v51
  %127 = vmatprep.mubr.f32.mxu0 %v61
  %128 = vmatmul.mubr.f32.gmra.mxu0 %v15
  %v129 = vpop.f32.mrf.mxu0
  %v130 = vadd.f32 %v57, %v129
  %v131 = vpop.f32.mrf.mxu0
  %132 = vdwg.mxu0
  %v133 = vmax.f32 %v130, 0.0
  %v134 = vpack.c.bf16 %v133, %v133
  %vm135 = vcmask 60416
  %136 = vst.msk [vmem:[%s3] sm:$0xf] %vm135, %v134
  // Predicated region
  $region14: #{autoencoder_forward.17} parent=0 // pred_check
    _
  $region15: #{autoencoder_forward.17} parent=0 // pred_check_branch
    %138 = sbr.rel (0) target = $region17
  $region16: #{autoencoder_forward.17} parent=0 // pred_region
    _
  $region17: #{autoencoder_forward.17} parent=0 // pred_fallthru
    _
  // Predicated region
  $region18: #{autoencoder_forward.17} parent=0 // pred_check
    _
  $region19: #{autoencoder_forward.17} parent=0 // pred_check_branch
    %140 = sbr.rel (0) target = $region21
  $region20: #{autoencoder_forward.17} parent=0 // pred_region
    _
  $region21: #{autoencoder_forward.17} parent=0 // pred_fallthru
    _

// kernel: autoencoder_forward.18
$region0: #{autoencoder_forward.18}
  #allocation0 [shape = 'u32[]', space=smem, size = 0x4, offset = 0x4, fixed_abs, tag = 'smem constant byte address 0x4 - core index']
  #allocation1 [shape = 'u32[144,128]{1,0:T(1,128)}', space=vmem, size = 0x12000, scoped, tag = 'internal scratch']
  %s0 = inlined_call_operand.vmem [shape: bf16[8,80], index: 0, kind: input, shape index: {}]
  %s1 = inlined_call_operand.vmem [shape: bf16[80,8], index: 1, kind: input, shape index: {}]
  %s2 = inlined_call_operand.vmem [shape: f32[8,1], index: 2, kind: input, shape index: {}]
  %s3 = inlined_call_operand.vmem [shape: bf16[8,8], index: 3, kind: output, shape index: {}]
  %s4 = sld [smem:[#allocation0]]
  $region22: #{autoencoder_forward.18} parent=0
    _
  %s6 = ssub.s32 1, %s4
  %s7 = scalar_select 0, %s6, %s4
  // Predicated region
  $region2: #{autoencoder_forward.18} parent=0 // pred_check
    _
  $region3: #{autoencoder_forward.18} parent=0 // pred_check_branch
    %9 = sbr.rel (0) target = $region5
  $region4: #{autoencoder_forward.18} parent=0 // pred_region
    _
  $region5: #{autoencoder_forward.18} parent=0 // pred_fallthru
    _
  // Predicated region
  $region6: #{autoencoder_forward.18} parent=0 // pred_check
    _
  $region7: #{autoencoder_forward.18} parent=0 // pred_check_branch
    %11 = sbr.rel (0) target = $region9
  $region8: #{autoencoder_forward.18} parent=0 // pred_region
    _
  $region9: #{autoencoder_forward.18} parent=0 // pred_fallthru
    _
  // Predicated region
  $region10: #{autoencoder_forward.18} parent=0 // pred_check
    _
  $region11: #{autoencoder_forward.18} parent=0 // pred_check_branch
    %13 = sbr.rel (0) target = $region13
  $region12: #{autoencoder_forward.18} parent=0 // pred_region
    _
  $region13: #{autoencoder_forward.18} parent=0 // pred_fallthru
    _
  %v14 = vld [vmem:[%s0] sm:$0xf]
  %v15 = vunpack.c.l.bf16 %v14
  %v16 = vld [vmem:[%s1] sm:$0xf]
  %v17 = vld [vmem:[%s1 + $0x4] sm:$0xf]
  %v18 = vld [vmem:[%s1 + $0x8] sm:$0xf]
  %v19 = vld [vmem:[%s1 + $0xc] sm:$0xf]
  %v20 = vld [vmem:[%s1 + $0x10] sm:$0xf]
  %v21 = vld [vmem:[%s1 + $0x14] sm:$0xf]
  %v22 = vld [vmem:[%s1 + $0x18] sm:$0xf]
  %v23 = vld [vmem:[%s1 + $0x1c] sm:$0xf]
  %v24 = vld [vmem:[%s1 + $0x20] sm:$0xf]
  %v25 = vld [vmem:[%s1 + $0x24] sm:$0xf]
  %v26 = vunpack.c.l.bf16 %v16
  %v27 = vunpack.c.l.bf16 %v17
  %v28 = vunpack.c.l.bf16 %v18
  %v29 = vunpack.c.l.bf16 %v19
  %v30 = vunpack.c.l.bf16 %v20
  %v31 = vunpack.c.l.bf16 %v21
  %v32 = vunpack.c.l.bf16 %v22
  %v33 = vunpack.c.l.bf16 %v23
  %v34 = vunpack.c.l.bf16 %v24
  %v35 = vunpack.c.l.bf16 %v25
  %v36 = vld [vmem:[%s2] sm:$0xff]
  %38 = vset.pattern.permute.xlu0 0
  %39 = vperm.xlu0 %38, %v36
  %v40 = vpop.permute.xlu0 %39
  %vm42 = vcmask 654336
  %v44 = vsel %vm42, %v15, 0
  %46 = vmatprep.subr.mxu0 0.0
  %47 = vmatpush1.msra.mxu0 0.0
  %48 = vmatprep.subr.mxu0 0.0
  %49 = vmatpush1.msra.mxu0 0.0
  %50 = vmatprep.subr.mxu0 0.0
  %51 = vmatpush1.msra.mxu0 0.0
  %52 = vmatprep.subr.mxu0 0.0
  %53 = vmatpush1.msra.mxu0 0.0
  %54 = vmatprep.subr.mxu0 0.0
  %55 = vmatpush1.msra.mxu0 0.0
  %56 = vmatprep.subr.mxu0 0.0
  %57 = vmatpush1.msra.mxu0 0.0
  %58 = vmatprep.subr.mxu0 0.0
  %59 = vmatpush1.msra.mxu0 %v35
  %60 = vmatprep.subr.mxu0 0.0
  %61 = vmatpush1.msra.mxu0 %v34
  %62 = vmatprep.subr.mxu0 0.0
  %63 = vmatpush1.msra.mxu0 %v33
  %64 = vmatprep.subr.mxu0 0.0
  %65 = vmatpush1.msra.mxu0 %v32
  %66 = vmatprep.subr.mxu0 0.0
  %67 = vmatpush1.msra.mxu0 %v31
  %68 = vmatprep.subr.mxu0 0.0
  %69 = vmatpush1.msra.mxu0 %v30
  %70 = vmatprep.subr.mxu0 0.0
  %71 = vmatpush1.msra.mxu0 %v29
  %72 = vmatprep.subr.mxu0 0.0
  %73 = vmatpush1.msra.mxu0 %v28
  %74 = vmatprep.subr.mxu0 0.0
  %75 = vmatpush1.msra.mxu0 %v27
  %76 = vmatprep.subr.mxu0 0.0
  %77 = vmatpush1.msra.mxu0 %v26
  %78 = vmatprep.subr.mxu0 0.0
  %79 = vmatpush2.msra.mxu0 0.0
  %80 = vmatprep.subr.mxu0 0.0
  %81 = vmatpush2.msra.mxu0 0.0
  %82 = vmatprep.subr.mxu0 0.0
  %83 = vmatpush2.msra.mxu0 0.0
  %84 = vmatprep.subr.mxu0 0.0
  %85 = vmatpush2.msra.mxu0 0.0
  %86 = vmatprep.subr.mxu0 0.0
  %87 = vmatpush2.msra.mxu0 0.0
  %88 = vmatprep.subr.mxu0 0.0
  %89 = vmatpush2.msra.mxu0 0.0
  %90 = vmatprep.subr.mxu0 0.0
  %91 = vmatpush2.msra.mxu0 0.0
  %92 = vmatprep.subr.mxu0 0.0
  %93 = vmatpush2.msra.mxu0 0.0
  %94 = vmatprep.subr.mxu0 0.0
  %95 = vmatpush2.msra.mxu0 0.0
  %96 = vmatprep.subr.mxu0 0.0
  %97 = vmatpush2.msra.mxu0 0.0
  %98 = vmatprep.subr.mxu0 0.0
  %99 = vmatpush2.msra.mxu0 0.0
  %100 = vmatprep.subr.mxu0 0.0
  %101 = vmatpush2.msra.mxu0 0.0
  %102 = vmatprep.subr.mxu0 0.0
  %103 = vmatpush2.msra.mxu0 0.0
  %104 = vmatprep.subr.mxu0 0.0
  %105 = vmatpush2.msra.mxu0 0.0
  %106 = vmatprep.subr.mxu0 0.0
  %107 = vmatpush2.msra.mxu0 0.0
  %108 = vmatprep.subr.mxu0 0.0
  %109 = vmatpush2.msra.mxu0 0.0
  %110 = vmatprep.mubr.f32.mxu0 0.0
  %111 = vmatmul.mubr.f32.gmra.mxu0 %v44
  %v112 = vpop.f32.mrf.mxu0
  %v113 = vadd.f32 %v40, %v112
  %v114 = vpop.f32.mrf.mxu0
  %115 = vdwg.mxu0
  %vm116 = vcmp.ge.f32.partialorder %v113, 0.0
  %v117 = vmul.f32 %v113, 0.01
  %v118 = vsel %vm116, %v113, %v117
  %v119 = vpack.c.bf16 %v118, %v118
  %vm120 = vcmask 60416
  %121 = vst.msk [vmem:[%s3] sm:$0xf] %vm120, %v119
  // Predicated region
  $region14: #{autoencoder_forward.18} parent=0 // pred_check
    _
  $region15: #{autoencoder_forward.18} parent=0 // pred_check_branch
    %123 = sbr.rel (0) target = $region17
  $region16: #{autoencoder_forward.18} parent=0 // pred_region
    _
  $region17: #{autoencoder_forward.18} parent=0 // pred_fallthru
    _
  // Predicated region
  $region18: #{autoencoder_forward.18} parent=0 // pred_check
    _
  $region19: #{autoencoder_forward.18} parent=0 // pred_check_branch
    %125 = sbr.rel (0) target = $region21
  $region20: #{autoencoder_forward.18} parent=0 // pred_region
    _
  $region21: #{autoencoder_forward.18} parent=0 // pred_fallthru
    _

// kernel: autoencoder_forward.19
$region0: #{autoencoder_forward.19}
  #allocation0 [shape = 'u32[]', space=smem, size = 0x4, offset = 0x4, fixed_abs, tag = 'smem constant byte address 0x4 - core index']
  #allocation1 [shape = 'u32[144,128]{1,0:T(1,128)}', space=vmem, size = 0x12000, scoped, tag = 'internal scratch']
  %s0 = inlined_call_operand.vmem [shape: bf16[16,80], index: 0, kind: input, shape index: {}]
  %s1 = inlined_call_operand.vmem [shape: bf16[80,32], index: 1, kind: input, shape index: {}]
  %s2 = inlined_call_operand.vmem [shape: f32[16,1], index: 2, kind: input, shape index: {}]
  %s3 = inlined_call_operand.vmem [shape: bf16[16,32], index: 3, kind: output, shape index: {}]
  %s4 = sld [smem:[#allocation0]]
  $region22: #{autoencoder_forward.19} parent=0
    _
  %s6 = ssub.s32 1, %s4
  %s7 = scalar_select 0, %s6, %s4
  // Predicated region
  $region2: #{autoencoder_forward.19} parent=0 // pred_check
    _
  $region3: #{autoencoder_forward.19} parent=0 // pred_check_branch
    %9 = sbr.rel (0) target = $region5
  $region4: #{autoencoder_forward.19} parent=0 // pred_region
    _
  $region5: #{autoencoder_forward.19} parent=0 // pred_fallthru
    _
  // Predicated region
  $region6: #{autoencoder_forward.19} parent=0 // pred_check
    _
  $region7: #{autoencoder_forward.19} parent=0 // pred_check_branch
    %11 = sbr.rel (0) target = $region9
  $region8: #{autoencoder_forward.19} parent=0 // pred_region
    _
  $region9: #{autoencoder_forward.19} parent=0 // pred_fallthru
    _
  // Predicated region
  $region10: #{autoencoder_forward.19} parent=0 // pred_check
    _
  $region11: #{autoencoder_forward.19} parent=0 // pred_check_branch
    %13 = sbr.rel (0) target = $region13
  $region12: #{autoencoder_forward.19} parent=0 // pred_region
    _
  $region13: #{autoencoder_forward.19} parent=0 // pred_fallthru
    _
  %v14 = vld [vmem:[%s0] sm:$0xf]
  %v15 = vld [vmem:[%s0 + $0x4] sm:$0xf]
  %v16 = vunpack.c.l.bf16 %v14
  %v17 = vunpack.c.l.bf16 %v15
  %v18 = vld [vmem:[%s1] sm:$0xf]
  %v19 = vld [vmem:[%s1 + $0x4] sm:$0xf]
  %v20 = vld [vmem:[%s1 + $0x8] sm:$0xf]
  %v21 = vld [vmem:[%s1 + $0xc] sm:$0xf]
  %v22 = vld [vmem:[%s1 + $0x10] sm:$0xf]
  %v23 = vld [vmem:[%s1 + $0x14] sm:$0xf]
  %v24 = vld [vmem:[%s1 + $0x18] sm:$0xf]
  %v25 = vld [vmem:[%s1 + $0x1c] sm:$0xf]
  %v26 = vld [vmem:[%s1 + $0x20] sm:$0xf]
  %v27 = vld [vmem:[%s1 + $0x24] sm:$0xf]
  %v28 = vunpack.c.l.bf16 %v18
  %v29 = vunpack.c.l.bf16 %v19
  %v30 = vunpack.c.l.bf16 %v20
  %v31 = vunpack.c.l.bf16 %v21
  %v32 = vunpack.c.l.bf16 %v22
  %v33 = vunpack.c.l.bf16 %v23
  %v34 = vunpack.c.l.bf16 %v24
  %v35 = vunpack.c.l.bf16 %v25
  %v36 = vunpack.c.l.bf16 %v26
  %v37 = vunpack.c.l.bf16 %v27
  %v38 = vld [vmem:[%s2] sm:$0xff]
  %v39 = vld [vmem:[%s2 + $0x8] sm:$0xff]
  %41 = vset.pattern.permute.xlu0 0
  %42 = vperm.xlu0 %41, %v38
  %v43 = vpop.permute.xlu0 %42
  %46 = vset.pattern.permute.xlu0 0
  %47 = vperm.xlu0 %46, %v39
  %v48 = vpop.permute.xlu0 %47
  %vm50 = vcmask 654336
  %v52 = vsel %vm50, %v16, 0
  %v55 = vsel %vm50, %v17, 0
  %57 = vmatprep.subr.mxu0 0.0
  %58 = vmatpush1.msra.mxu0 0.0
  %59 = vmatprep.subr.mxu0 0.0
  %60 = vmatpush1.msra.mxu0 0.0
  %61 = vmatprep.subr.mxu0 0.0
  %62 = vmatpush1.msra.mxu0 0.0
  %63 = vmatprep.subr.mxu0 0.0
  %64 = vmatpush1.msra.mxu0 0.0
  %65 = vmatprep.subr.mxu0 0.0
  %66 = vmatpush1.msra.mxu0 0.0
  %67 = vmatprep.subr.mxu0 0.0
  %68 = vmatpush1.msra.mxu0 0.0
  %69 = vmatprep.subr.mxu0 0.0
  %70 = vmatpush1.msra.mxu0 %v37
  %71 = vmatprep.subr.mxu0 0.0
  %72 = vmatpush1.msra.mxu0 %v36
  %73 = vmatprep.subr.mxu0 0.0
  %74 = vmatpush1.msra.mxu0 %v35
  %75 = vmatprep.subr.mxu0 0.0
  %76 = vmatpush1.msra.mxu0 %v34
  %77 = vmatprep.subr.mxu0 0.0
  %78 = vmatpush1.msra.mxu0 %v33
  %79 = vmatprep.subr.mxu0 0.0
  %80 = vmatpush1.msra.mxu0 %v32
  %81 = vmatprep.subr.mxu0 0.0
  %82 = vmatpush1.msra.mxu0 %v31
  %83 = vmatprep.subr.mxu0 0.0
  %84 = vmatpush1.msra.mxu0 %v30
  %85 = vmatprep.subr.mxu0 0.0
  %86 = vmatpush1.msra.mxu0 %v29
  %87 = vmatprep.subr.mxu0 0.0
  %88 = vmatpush1.msra.mxu0 %v28
  %89 = vmatprep.subr.mxu0 0.0
  %90 = vmatpush2.msra.mxu0 0.0
  %91 = vmatprep.subr.mxu0 0.0
  %92 = vmatpush2.msra.mxu0 0.0
  %93 = vmatprep.subr.mxu0 0.0
  %94 = vmatpush2.msra.mxu0 0.0
  %95 = vmatprep.subr.mxu0 0.0
  %96 = vmatpush2.msra.mxu0 0.0
  %97 = vmatprep.subr.mxu0 0.0
  %98 = vmatpush2.msra.mxu0 0.0
  %99 = vmatprep.subr.mxu0 0.0
  %100 = vmatpush2.msra.mxu0 0.0
  %101 = vmatprep.subr.mxu0 0.0
  %102 = vmatpush2.msra.mxu0 0.0
  %103 = vmatprep.subr.mxu0 0.0
  %104 = vmatpush2.msra.mxu0 0.0
  %105 = vmatprep.subr.mxu0 0.0
  %106 = vmatpush2.msra.mxu0 0.0
  %107 = vmatprep.subr.mxu0 0.0
  %108 = vmatpush2.msra.mxu0 0.0
  %109 = vmatprep.subr.mxu0 0.0
  %110 = vmatpush2.msra.mxu0 0.0
  %111 = vmatprep.subr.mxu0 0.0
  %112 = vmatpush2.msra.mxu0 0.0
  %113 = vmatprep.subr.mxu0 0.0
  %114 = vmatpush2.msra.mxu0 0.0
  %115 = vmatprep.subr.mxu0 0.0
  %116 = vmatpush2.msra.mxu0 0.0
  %117 = vmatprep.subr.mxu0 0.0
  %118 = vmatpush2.msra.mxu0 0.0
  %119 = vmatprep.subr.mxu0 0.0
  %120 = vmatpush2.msra.mxu0 0.0
  %121 = vmatprep.mubr.f32.mxu0 0.0
  %122 = vmatmul.mubr.f32.gmra.mxu0 %v52
  %v123 = vpop.f32.mrf.mxu0
  %v124 = vadd.f32 %v43, %v123
  %v125 = vpop.f32.mrf.mxu0
  %126 = vmatprep.mubr.f32.mxu0 0.0
  %127 = vmatmul.mubr.f32.gmra.mxu0 %v55
  %v128 = vpop.f32.mrf.mxu0
  %v129 = vadd.f32 %v48, %v128
  %v130 = vpop.f32.mrf.mxu0
  %131 = vdwg.mxu0
  %vm132 = vcmp.ge.f32.partialorder %v124, 0.0
  %vm133 = vcmp.ge.f32.partialorder %v129, 0.0
  %v134 = vmul.f32 %v124, 0.01
  %v135 = vmul.f32 %v129, 0.01
  %v136 = vsel %vm132, %v124, %v134
  %v137 = vsel %vm133, %v129, %v135
  %v138 = vpack.c.bf16 %v137, %v136
  %v140 = vunpack.c.l.b16 %v138
  %v141 = vunpack.c.h.b16 %v138
  %v142 = vpack.c.b16 %v140, %v140
  %v143 = vpack.c.b16 %v141, %v141
  %vm146 = vcmask 257024
  %147 = vst.msk [vmem:[%s3] sm:$0xf] %vm146, %v142
  %148 = vst.msk [vmem:[%s3 + $0x4] sm:$0xf] %vm146, %v143
  // Predicated region
  $region14: #{autoencoder_forward.19} parent=0 // pred_check
    _
  $region15: #{autoencoder_forward.19} parent=0 // pred_check_branch
    %150 = sbr.rel (0) target = $region17
  $region16: #{autoencoder_forward.19} parent=0 // pred_region
    _
  $region17: #{autoencoder_forward.19} parent=0 // pred_fallthru
    _
  // Predicated region
  $region18: #{autoencoder_forward.19} parent=0 // pred_check
    _
  $region19: #{autoencoder_forward.19} parent=0 // pred_check_branch
    %152 = sbr.rel (0) target = $region21
  $region20: #{autoencoder_forward.19} parent=0 // pred_region
    _
  $region21: #{autoencoder_forward.19} parent=0 // pred_fallthru
    _

// kernel: autoencoder_forward.20
$region0: #{autoencoder_forward.20}
  #allocation0 [shape = 'u32[]', space=smem, size = 0x4, offset = 0x4, fixed_abs, tag = 'smem constant byte address 0x4 - core index']
  #allocation1 [shape = 'u32[144,128]{1,0:T(1,128)}', space=vmem, size = 0x12000, scoped, tag = 'internal scratch']
  %s0 = inlined_call_operand.vmem [shape: bf16[32,400], index: 0, kind: input, shape index: {}]
  %s1 = inlined_call_operand.vmem [shape: bf16[400,128], index: 1, kind: input, shape index: {}]
  %s2 = inlined_call_operand.vmem [shape: f32[32,1], index: 2, kind: input, shape index: {}]
  %s3 = inlined_call_operand.vmem [shape: bf16[32,128], index: 3, kind: output, shape index: {}]
  %s4 = sld [smem:[#allocation0]]
  $region22: #{autoencoder_forward.20} parent=0
    _
  %s6 = ssub.s32 1, %s4
  %s7 = scalar_select 0, %s6, %s4
  // Predicated region
  $region2: #{autoencoder_forward.20} parent=0 // pred_check
    _
  $region3: #{autoencoder_forward.20} parent=0 // pred_check_branch
    %9 = sbr.rel (0) target = $region5
  $region4: #{autoencoder_forward.20} parent=0 // pred_region
    _
  $region5: #{autoencoder_forward.20} parent=0 // pred_fallthru
    _
  // Predicated region
  $region6: #{autoencoder_forward.20} parent=0 // pred_check
    _
  $region7: #{autoencoder_forward.20} parent=0 // pred_check_branch
    %11 = sbr.rel (0) target = $region9
  $region8: #{autoencoder_forward.20} parent=0 // pred_region
    _
  $region9: #{autoencoder_forward.20} parent=0 // pred_fallthru
    _
  // Predicated region
  $region10: #{autoencoder_forward.20} parent=0 // pred_check
    _
  $region11: #{autoencoder_forward.20} parent=0 // pred_check_branch
    %13 = sbr.rel (0) target = $region13
  $region12: #{autoencoder_forward.20} parent=0 // pred_region
    _
  $region13: #{autoencoder_forward.20} parent=0 // pred_fallthru
    _
  %v14 = vld [vmem:[%s0] sm:$0xff]
  %v15 = vld [vmem:[%s0 + $0x8] sm:$0xff]
  %v16 = vld [vmem:[%s0 + $0x10] sm:$0xff]
  %v17 = vld [vmem:[%s0 + $0x18] sm:$0xff]
  %v18 = vld [vmem:[%s0 + $0x20] sm:$0xff]
  %v19 = vld [vmem:[%s0 + $0x28] sm:$0xff]
  %v20 = vld [vmem:[%s0 + $0x30] sm:$0xff]
  %v21 = vld [vmem:[%s0 + $0x38] sm:$0xff]
  %v22 = vunpack.c.l.bf16 %v14
  %v23 = vunpack.c.h.bf16 %v14
  %v24 = vunpack.c.l.bf16 %v15
  %v25 = vunpack.c.h.bf16 %v15
  %v26 = vunpack.c.l.bf16 %v16
  %v27 = vunpack.c.h.bf16 %v16
  %v28 = vunpack.c.l.bf16 %v17
  %v29 = vunpack.c.h.bf16 %v17
  %v30 = vunpack.c.l.bf16 %v18
  %v31 = vunpack.c.h.bf16 %v18
  %v32 = vunpack.c.l.bf16 %v19
  %v33 = vunpack.c.h.bf16 %v19
  %v34 = vunpack.c.l.bf16 %v20
  %v35 = vunpack.c.h.bf16 %v20
  %v36 = vunpack.c.l.bf16 %v21
  %v37 = vunpack.c.h.bf16 %v21
  %v38 = vld [vmem:[%s1] sm:$0xf]
  %v39 = vld [vmem:[%s1 + $0x4] sm:$0xf]
  %v40 = vld [vmem:[%s1 + $0x8] sm:$0xf]
  %v41 = vld [vmem:[%s1 + $0xc] sm:$0xf]
  %v42 = vld [vmem:[%s1 + $0x10] sm:$0xf]
  %v43 = vld [vmem:[%s1 + $0x14] sm:$0xf]
  %v44 = vld [vmem:[%s1 + $0x18] sm:$0xf]
  %v45 = vld [vmem:[%s1 + $0x1c] sm:$0xf]
  %v46 = vld [vmem:[%s1 + $0x20] sm:$0xf]
  %v47 = vld [vmem:[%s1 + $0x24] sm:$0xf]
  %v48 = vld [vmem:[%s1 + $0x28] sm:$0xf]
  %v49 = vld [vmem:[%s1 + $0x2c] sm:$0xf]
  %v50 = vld [vmem:[%s1 + $0x30] sm:$0xf]
  %v51 = vld [vmem:[%s1 + $0x34] sm:$0xf]
  %v52 = vld [vmem:[%s1 + $0x38] sm:$0xf]
  %v53 = vld [vmem:[%s1 + $0x3c] sm:$0xf]
  %v54 = vld [vmem:[%s1 + $0x40] sm:$0xf]
  %v55 = vld [vmem:[%s1 + $0x44] sm:$0xf]
  %v56 = vld [vmem:[%s1 + $0x48] sm:$0xf]
  %v57 = vld [vmem:[%s1 + $0x4c] sm:$0xf]
  %v58 = vld [vmem:[%s1 + $0x50] sm:$0xf]
  %v59 = vld [vmem:[%s1 + $0x54] sm:$0xf]
  %v60 = vld [vmem:[%s1 + $0x58] sm:$0xf]
  %v61 = vld [vmem:[%s1 + $0x5c] sm:$0xf]
  %v62 = vld [vmem:[%s1 + $0x60] sm:$0xf]
  %v63 = vld [vmem:[%s1 + $0x64] sm:$0xf]
  %v64 = vld [vmem:[%s1 + $0x68] sm:$0xf]
  %v65 = vld [vmem:[%s1 + $0x6c] sm:$0xf]
  %v66 = vld [vmem:[%s1 + $0x70] sm:$0xf]
  %v67 = vld [vmem:[%s1 + $0x74] sm:$0xf]
  %v68 = vld [vmem:[%s1 + $0x78] sm:$0xf]
  %v69 = vld [vmem:[%s1 + $0x7c] sm:$0xf]
  %v70 = vld [vmem:[%s1 + $0x80] sm:$0xf]
  %v71 = vld [vmem:[%s1 + $0x84] sm:$0xf]
  %v72 = vld [vmem:[%s1 + $0x88] sm:$0xf]
  %v73 = vld [vmem:[%s1 + $0x8c] sm:$0xf]
  %v74 = vld [vmem:[%s1 + $0x90] sm:$0xf]
  %v75 = vld [vmem:[%s1 + $0x94] sm:$0xf]
  %v76 = vld [vmem:[%s1 + $0x98] sm:$0xf]
  %v77 = vld [vmem:[%s1 + $0x9c] sm:$0xf]
  %v78 = vld [vmem:[%s1 + $0xa0] sm:$0xf]
  %v79 = vld [vmem:[%s1 + $0xa4] sm:$0xf]
  %v80 = vld [vmem:[%s1 + $0xa8] sm:$0xf]
  %v81 = vld [vmem:[%s1 + $0xac] sm:$0xf]
  %v82 = vld [vmem:[%s1 + $0xb0] sm:$0xf]
  %v83 = vld [vmem:[%s1 + $0xb4] sm:$0xf]
  %v84 = vld [vmem:[%s1 + $0xb8] sm:$0xf]
  %v85 = vld [vmem:[%s1 + $0xbc] sm:$0xf]
  %v86 = vld [vmem:[%s1 + $0xc0] sm:$0xf]
  %v87 = vld [vmem:[%s1 + $0xc4] sm:$0xf]
  %v88 = vunpack.c.l.bf16 %v38
  %v89 = vunpack.c.l.bf16 %v39
  %v90 = vunpack.c.l.bf16 %v40
  %v91 = vunpack.c.l.bf16 %v41
  %v92 = vunpack.c.l.bf16 %v42
  %v93 = vunpack.c.l.bf16 %v43
  %v94 = vunpack.c.l.bf16 %v44
  %v95 = vunpack.c.l.bf16 %v45
  %v96 = vunpack.c.l.bf16 %v46
  %v97 = vunpack.c.l.bf16 %v47
  %v98 = vunpack.c.l.bf16 %v48
  %v99 = vunpack.c.l.bf16 %v49
  %v100 = vunpack.c.l.bf16 %v50
  %v101 = vunpack.c.l.bf16 %v51
  %v102 = vunpack.c.l.bf16 %v52
  %v103 = vunpack.c.l.bf16 %v53
  %v104 = vunpack.c.l.bf16 %v54
  %v105 = vunpack.c.l.bf16 %v55
  %v106 = vunpack.c.l.bf16 %v56
  %v107 = vunpack.c.l.bf16 %v57
  %v108 = vunpack.c.l.bf16 %v58
  %v109 = vunpack.c.l.bf16 %v59
  %v110 = vunpack.c.l.bf16 %v60
  %v111 = vunpack.c.l.bf16 %v61
  %v112 = vunpack.c.l.bf16 %v62
  %v113 = vunpack.c.l.bf16 %v63
  %v114 = vunpack.c.l.bf16 %v64
  %v115 = vunpack.c.l.bf16 %v65
  %v116 = vunpack.c.l.bf16 %v66
  %v117 = vunpack.c.l.bf16 %v67
  %v118 = vunpack.c.l.bf16 %v68
  %v119 = vunpack.c.l.bf16 %v69
  %v120 = vunpack.c.l.bf16 %v70
  %v121 = vunpack.c.l.bf16 %v71
  %v122 = vunpack.c.l.bf16 %v72
  %v123 = vunpack.c.l.bf16 %v73
  %v124 = vunpack.c.l.bf16 %v74
  %v125 = vunpack.c.l.bf16 %v75
  %v126 = vunpack.c.l.bf16 %v76
  %v127 = vunpack.c.l.bf16 %v77
  %v128 = vunpack.c.l.bf16 %v78
  %v129 = vunpack.c.l.bf16 %v79
  %v130 = vunpack.c.l.bf16 %v80
  %v131 = vunpack.c.l.bf16 %v81
  %v132 = vunpack.c.l.bf16 %v82
  %v133 = vunpack.c.l.bf16 %v83
  %v134 = vunpack.c.l.bf16 %v84
  %v135 = vunpack.c.l.bf16 %v85
  %v136 = vunpack.c.l.bf16 %v86
  %v137 = vunpack.c.l.bf16 %v87
  %v138 = vld [vmem:[%s2] sm:$0xff]
  %v139 = vld [vmem:[%s2 + $0x8] sm:$0xff]
  %v140 = vld [vmem:[%s2 + $0x10] sm:$0xff]
  %v141 = vld [vmem:[%s2 + $0x18] sm:$0xff]
  %143 = vset.pattern.permute.xlu0 0
  %144 = vperm.xlu0 %143, %v138
  %v145 = vpop.permute.xlu0 %144
  %148 = vset.pattern.permute.xlu0 0
  %149 = vperm.xlu0 %148, %v139
  %v150 = vpop.permute.xlu0 %149
  %153 = vset.pattern.permute.xlu0 0
  %154 = vperm.xlu0 %153, %v140
  %v155 = vpop.permute.xlu0 %154
  %158 = vset.pattern.permute.xlu0 0
  %159 = vperm.xlu0 %158, %v141
  %v160 = vpop.permute.xlu0 %159
  %vm162 = vcmask 130048
  %v164 = vsel %vm162, %v25, 0
  %v167 = vsel %vm162, %v29, 0
  %v170 = vsel %vm162, %v33, 0
  %v173 = vsel %vm162, %v37, 0
  %175 = vmatprep.subr.mxu0 0.0
  %176 = vmatpush1.msra.mxu0 %v103
  %177 = vmatprep.subr.mxu0 0.0
  %178 = vmatpush1.msra.mxu0 %v102
  %179 = vmatprep.subr.mxu0 0.0
  %180 = vmatpush1.msra.mxu0 %v101
  %181 = vmatprep.subr.mxu0 0.0
  %182 = vmatpush1.msra.mxu0 %v100
  %183 = vmatprep.subr.mxu0 0.0
  %184 = vmatpush1.msra.mxu0 %v99
  %185 = vmatprep.subr.mxu0 0.0
  %186 = vmatpush1.msra.mxu0 %v98
  %187 = vmatprep.subr.mxu0 0.0
  %188 = vmatpush1.msra.mxu0 %v97
  %189 = vmatprep.subr.mxu0 0.0
  %190 = vmatpush1.msra.mxu0 %v96
  %191 = vmatprep.subr.mxu0 0.0
  %192 = vmatpush1.msra.mxu0 %v95
  %193 = vmatprep.subr.mxu0 0.0
  %194 = vmatpush1.msra.mxu0 %v94
  %195 = vmatprep.subr.mxu0 0.0
  %196 = vmatpush1.msra.mxu0 %v93
  %197 = vmatprep.subr.mxu0 0.0
  %198 = vmatpush1.msra.mxu0 %v92
  %199 = vmatprep.subr.mxu0 0.0
  %200 = vmatpush1.msra.mxu0 %v91
  %201 = vmatprep.subr.mxu0 0.0
  %202 = vmatpush1.msra.mxu0 %v90
  %203 = vmatprep.subr.mxu0 0.0
  %204 = vmatpush1.msra.mxu0 %v89
  %205 = vmatprep.subr.mxu0 0.0
  %206 = vmatpush1.msra.mxu0 %v88
  %207 = vmatprep.subr.mxu0 0.0
  %208 = vmatpush2.msra.mxu0 %v119
  %209 = vmatprep.subr.mxu0 0.0
  %210 = vmatpush2.msra.mxu0 %v118
  %211 = vmatprep.subr.mxu0 0.0
  %212 = vmatpush2.msra.mxu0 %v117
  %213 = vmatprep.subr.mxu0 0.0
  %214 = vmatpush2.msra.mxu0 %v116
  %215 = vmatprep.subr.mxu0 0.0
  %216 = vmatpush2.msra.mxu0 %v115
  %217 = vmatprep.subr.mxu0 0.0
  %218 = vmatpush2.msra.mxu0 %v114
  %219 = vmatprep.subr.mxu0 0.0
  %220 = vmatpush2.msra.mxu0 %v113
  %221 = vmatprep.subr.mxu0 0.0
  %222 = vmatpush2.msra.mxu0 %v112
  %223 = vmatprep.subr.mxu0 0.0
  %224 = vmatpush2.msra.mxu0 %v111
  %225 = vmatprep.subr.mxu0 0.0
  %226 = vmatpush2.msra.mxu0 %v110
  %227 = vmatprep.subr.mxu0 0.0
  %228 = vmatpush2.msra.mxu0 %v109
  %229 = vmatprep.subr.mxu0 0.0
  %230 = vmatpush2.msra.mxu0 %v108
  %231 = vmatprep.subr.mxu0 0.0
  %232 = vmatpush2.msra.mxu0 %v107
  %233 = vmatprep.subr.mxu0 0.0
  %234 = vmatpush2.msra.mxu0 %v106
  %235 = vmatprep.subr.mxu0 0.0
  %236 = vmatpush2.msra.mxu0 %v105
  %237 = vmatprep.subr.mxu0 0.0
  %238 = vmatpush2.msra.mxu0 %v104
  %239 = vmatprep.mubr.f32.mxu0 %v23
  %240 = vmatmul.mubr.f32.gmra.mxu0 %v22
  %v241 = vpop.f32.mrf.mxu0
  %v242 = vadd.f32 %v145, %v241
  %v243 = vpop.f32.mrf.mxu0
  %244 = vmatprep.mubr.f32.mxu0 %v27
  %245 = vmatmul.mubr.f32.gmra.mxu0 %v26
  %v246 = vpop.f32.mrf.mxu0
  %v247 = vadd.f32 %v150, %v246
  %v248 = vpop.f32.mrf.mxu0
  %249 = vmatprep.mubr.f32.mxu0 %v31
  %250 = vmatmul.mubr.f32.gmra.mxu0 %v30
  %v251 = vpop.f32.mrf.mxu0
  %v252 = vadd.f32 %v155, %v251
  %v253 = vpop.f32.mrf.mxu0
  %254 = vmatprep.mubr.f32.mxu0 %v35
  %255 = vmatmul.mubr.f32.gmra.mxu0 %v34
  %v256 = vpop.f32.mrf.mxu0
  %v257 = vadd.f32 %v160, %v256
  %v258 = vpop.f32.mrf.mxu0
  %259 = vdwg.mxu0
  %260 = vmatprep.subr.mxu0 0.0
  %261 = vmatpush1.msra.mxu0 %v135
  %262 = vmatprep.subr.mxu0 0.0
  %263 = vmatpush1.msra.mxu0 %v134
  %264 = vmatprep.subr.mxu0 0.0
  %265 = vmatpush1.msra.mxu0 %v133
  %266 = vmatprep.subr.mxu0 0.0
  %267 = vmatpush1.msra.mxu0 %v132
  %268 = vmatprep.subr.mxu0 0.0
  %269 = vmatpush1.msra.mxu0 %v131
  %270 = vmatprep.subr.mxu0 0.0
  %271 = vmatpush1.msra.mxu0 %v130
  %272 = vmatprep.subr.mxu0 0.0
  %273 = vmatpush1.msra.mxu0 %v129
  %274 = vmatprep.subr.mxu0 0.0
  %275 = vmatpush1.msra.mxu0 %v128
  %276 = vmatprep.subr.mxu0 0.0
  %277 = vmatpush1.msra.mxu0 %v127
  %278 = vmatprep.subr.mxu0 0.0
  %279 = vmatpush1.msra.mxu0 %v126
  %280 = vmatprep.subr.mxu0 0.0
  %281 = vmatpush1.msra.mxu0 %v125
  %282 = vmatprep.subr.mxu0 0.0
  %283 = vmatpush1.msra.mxu0 %v124
  %284 = vmatprep.subr.mxu0 0.0
  %285 = vmatpush1.msra.mxu0 %v123
  %286 = vmatprep.subr.mxu0 0.0
  %287 = vmatpush1.msra.mxu0 %v122
  %288 = vmatprep.subr.mxu0 0.0
  %289 = vmatpush1.msra.mxu0 %v121
  %290 = vmatprep.subr.mxu0 0.0
  %291 = vmatpush1.msra.mxu0 %v120
  %292 = vmatprep.subr.mxu0 0.0
  %293 = vmatpush2.msra.mxu0 0.0
  %294 = vmatprep.subr.mxu0 0.0
  %295 = vmatpush2.msra.mxu0 0.0
  %296 = vmatprep.subr.mxu0 0.0
  %297 = vmatpush2.msra.mxu0 0.0
  %298 = vmatprep.subr.mxu0 0.0
  %299 = vmatpush2.msra.mxu0 0.0
  %300 = vmatprep.subr.mxu0 0.0
  %301 = vmatpush2.msra.mxu0 0.0
  %302 = vmatprep.subr.mxu0 0.0
  %303 = vmatpush2.msra.mxu0 0.0
  %304 = vmatprep.subr.mxu0 0.0
  %305 = vmatpush2.msra.mxu0 0.0
  %306 = vmatprep.subr.mxu0 0.0
  %307 = vmatpush2.msra.mxu0 0.0
  %308 = vmatprep.subr.mxu0 0.0
  %309 = vmatpush2.msra.mxu0 0.0
  %310 = vmatprep.subr.mxu0 0.0
  %311 = vmatpush2.msra.mxu0 0.0
  %312 = vmatprep.subr.mxu0 0.0
  %313 = vmatpush2.msra.mxu0 0.0
  %314 = vmatprep.subr.mxu0 0.0
  %315 = vmatpush2.msra.mxu0 0.0
  %316 = vmatprep.subr.mxu0 0.0
  %317 = vmatpush2.msra.mxu0 0.0
  %318 = vmatprep.subr.mxu0 0.0
  %319 = vmatpush2.msra.mxu0 0.0
  %320 = vmatprep.subr.mxu0 0.0
  %321 = vmatpush2.msra.mxu0 %v137
  %322 = vmatprep.subr.mxu0 0.0
  %323 = vmatpush2.msra.mxu0 %v136
  %324 = vmatprep.mubr.f32.mxu0 %v164
  %325 = vmatmul.mubr.f32.gmra.mxu0 %v24
  %v326 = vpop.f32.mrf.mxu0
  %v327 = vadd.f32 %v242, %v326
  %v328 = vpop.f32.mrf.mxu0
  %329 = vmatprep.mubr.f32.mxu0 %v167
  %330 = vmatmul.mubr.f32.gmra.mxu0 %v28
  %v331 = vpop.f32.mrf.mxu0
  %v332 = vadd.f32 %v247, %v331
  %v333 = vpop.f32.mrf.mxu0
  %334 = vmatprep.mubr.f32.mxu0 %v170
  %335 = vmatmul.mubr.f32.gmra.mxu0 %v32
  %v336 = vpop.f32.mrf.mxu0
  %v337 = vadd.f32 %v252, %v336
  %v338 = vpop.f32.mrf.mxu0
  %339 = vmatprep.mubr.f32.mxu0 %v173
  %340 = vmatmul.mubr.f32.gmra.mxu0 %v36
  %v341 = vpop.f32.mrf.mxu0
  %v342 = vadd.f32 %v257, %v341
  %v343 = vpop.f32.mrf.mxu0
  %344 = vdwg.mxu0
  %vm345 = vcmp.ge.f32.partialorder %v327, 0.0
  %vm346 = vcmp.ge.f32.partialorder %v332, 0.0
  %vm347 = vcmp.ge.f32.partialorder %v337, 0.0
  %vm348 = vcmp.ge.f32.partialorder %v342, 0.0
  %v349 = vmul.f32 %v327, 0.01
  %v350 = vmul.f32 %v332, 0.01
  %v351 = vmul.f32 %v337, 0.01
  %v352 = vmul.f32 %v342, 0.01
  %v353 = vsel %vm345, %v327, %v349
  %v354 = vsel %vm346, %v332, %v350
  %v355 = vsel %vm347, %v337, %v351
  %v356 = vsel %vm348, %v342, %v352
  %v357 = vpack.c.bf16 %v354, %v353
  %v358 = vpack.c.bf16 %v356, %v355
  %v361 = vunpack.c.l.b16 %v357
  %v362 = vunpack.c.h.b16 %v357
  %v363 = vunpack.c.l.b16 %v358
  %v364 = vunpack.c.h.b16 %v358
  %v365 = vpack.c.b16 %v361, %v361
  %v366 = vpack.c.b16 %v362, %v362
  %v367 = vpack.c.b16 %v363, %v363
  %v368 = vpack.c.b16 %v364, %v364
  %373 = vst [vmem:[%s3] sm:$0xf] %v365
  %374 = vst [vmem:[%s3 + $0x4] sm:$0xf] %v366
  %375 = vst [vmem:[%s3 + $0x8] sm:$0xf] %v367
  %376 = vst [vmem:[%s3 + $0xc] sm:$0xf] %v368
  // Predicated region
  $region14: #{autoencoder_forward.20} parent=0 // pred_check
    _
  $region15: #{autoencoder_forward.20} parent=0 // pred_check_branch
    %378 = sbr.rel (0) target = $region17
  $region16: #{autoencoder_forward.20} parent=0 // pred_region
    _
  $region17: #{autoencoder_forward.20} parent=0 // pred_fallthru
    _
  // Predicated region
  $region18: #{autoencoder_forward.20} parent=0 // pred_check
    _
  $region19: #{autoencoder_forward.20} parent=0 // pred_check_branch
    %380 = sbr.rel (0) target = $region21
  $region20: #{autoencoder_forward.20} parent=0 // pred_region
    _
  $region21: #{autoencoder_forward.20} parent=0 // pred_fallthru
    _

// kernel: autoencoder_forward.21
$region0: #{autoencoder_forward.21}
  #allocation0 [shape = 'u32[]', space=smem, size = 0x4, offset = 0x4, fixed_abs, tag = 'smem constant byte address 0x4 - core index']
  #allocation1 [shape = 'u32[144,128]{1,0:T(1,128)}', space=vmem, size = 0x12000, scoped, tag = 'internal scratch']
  %s0 = inlined_call_operand.vmem [shape: bf16[8,1568], index: 0, kind: input, shape index: {}]
  %s1 = inlined_call_operand.vmem [shape: bf16[1568,512], index: 1, kind: input, shape index: {}]
  %s2 = inlined_call_operand.vmem [shape: f32[8,1], index: 2, kind: input, shape index: {}]
  %s3 = inlined_call_operand.vmem [shape: f32[8,512], index: 3, kind: output, shape index: {}]
  %s4 = sld [smem:[#allocation0]]
  $region83: #{autoencoder_forward.21} parent=0
    _
  %s6 = ssub.s32 1, %s4
  %s7 = scalar_select 0, %s6, %s4
  $region1: #{autoencoder_forward.21} parent=0
    #allocation2 [shape = 'u8[1605632]{0}', space=vmem, size = 0x188000, scoped, tag = 'input window, operand 1']
    loop: start=0, step=1, limit=4
    $region2: #{autoencoder_forward.21} parent=1 // loop_pre_header
      _
    $region3: #{autoencoder_forward.21} parent=1 // loop_header
      %s9 = sphi 0, %s13
      %p10 = scmp.ge.s32.totalorder %s9, 4
      %s17 = sphi 0, %s17
      %s19 = sphi 0, %s17
      %s20 = sphi 0, %s19
      %s34 = sphi 0, %s20
      %s40 = sphi 0, %s42
      %s43 = sphi 0, %s40
      %s44 = sphi 0, %s43
      %s60 = sphi 0, %s44
      %s64 = sphi 0, %s64
      %s66 = sphi 0, %s64
      %s67 = sphi 0, %s66
      %s81 = sphi 0, %s67
      %s87 = sphi 0, %s89
      %s90 = sphi 0, %s87
      %s91 = sphi 0, %s90
      %s107 = sphi 0, %s91
    $region4: #{autoencoder_forward.21} parent=1 // loop_header_branch
      %12 = sbr.rel (%p10) target = $region8
    $region5: #{autoencoder_forward.21} parent=1 // loop_body
      %s14 = ssub.s32 %s9, 1
      %s15 = ssub.s32 %s9, 2
      %s16 = sadd.s32 %s9, 1
      %s18 = sadd.s32 %s17, 1
      %p21 = scmp.eq.s32.totalorder %s9, 1
      %p22 = scmp.ne.s32.totalorder %s17, %s19
      %p23 = scmp.eq.s32.totalorder %s9, 0
      %p24 = por %p22, %p23
      %p25 = scmp.ne.s32.totalorder %s17, %s19
      %p26 = scmp.eq.s32.totalorder %s14, 1
      %p27 = por %p25, %p26
      %p28 = scmp.ne.s32.totalorder %s19, %s20
      %p29 = scmp.eq.s32.totalorder %s14, 0
      %p30 = por %p28, %p29
      %p31 = scmp.ne.s32.totalorder %s19, %s20
      %p32 = scmp.eq.s32.totalorder %s15, 1
      %p33 = por %p31, %p32
      %p35 = scmp.ne.s32.totalorder %s20, %s34
      %p36 = scmp.eq.s32.totalorder %s15, 0
      %p37 = por %p35, %p36
      %s38 = ssub.s32 %s9, %s16
      %p39 = scmp.eq.s32.totalorder %s38, 0
      %s41 = sadd.s32 %s40, 1
      %s42 = scalar_select %p39, %s40, %s41
      %p45 = pneg %p39
      %p46 = scmp.eq.s32.totalorder %s9, 1
      %p47 = por %p45, %p46
      %p48 = scmp.ne.s32.totalorder %s40, %s43
      %p49 = scmp.eq.s32.totalorder %s9, 0
      %p50 = por %p48, %p49
      %p51 = scmp.ne.s32.totalorder %s40, %s43
      %p52 = scmp.eq.s32.totalorder %s14, 1
      %p53 = por %p51, %p52
      %p54 = scmp.ne.s32.totalorder %s43, %s44
      %p55 = scmp.eq.s32.totalorder %s14, 0
      %p56 = por %p54, %p55
      %p57 = scmp.ne.s32.totalorder %s43, %s44
      %p58 = scmp.eq.s32.totalorder %s15, 1
      %p59 = por %p57, %p58
      %p61 = scmp.ne.s32.totalorder %s44, %s60
      %p62 = scmp.eq.s32.totalorder %s15, 0
      %p63 = por %p61, %p62
      %s65 = sadd.s32 %s64, 1
      %p68 = scmp.eq.s32.totalorder %s9, 1
      %p69 = scmp.ne.s32.totalorder %s64, %s66
      %p70 = scmp.eq.s32.totalorder %s9, 0
      %p71 = por %p69, %p70
      %p72 = scmp.ne.s32.totalorder %s64, %s66
      %p73 = scmp.eq.s32.totalorder %s14, 1
      %p74 = por %p72, %p73
      %p75 = scmp.ne.s32.totalorder %s66, %s67
      %p76 = scmp.eq.s32.totalorder %s14, 0
      %p77 = por %p75, %p76
      %p78 = scmp.ne.s32.totalorder %s66, %s67
      %p79 = scmp.eq.s32.totalorder %s15, 1
      %p80 = por %p78, %p79
      %p82 = scmp.ne.s32.totalorder %s67, %s81
      %p83 = scmp.eq.s32.totalorder %s15, 0
      %p84 = por %p82, %p83
      %s85 = ssub.s32 %s9, %s16
      %p86 = scmp.eq.s32.totalorder %s85, 0
      %s88 = sadd.s32 %s87, 1
      %s89 = scalar_select %p86, %s87, %s88
      %p92 = pneg %p86
      %p93 = scmp.eq.s32.totalorder %s9, 1
      %p94 = por %p92, %p93
      %p95 = scmp.ne.s32.totalorder %s87, %s90
      %p96 = scmp.eq.s32.totalorder %s9, 0
      %p97 = por %p95, %p96
      %p98 = scmp.ne.s32.totalorder %s87, %s90
      %p99 = scmp.eq.s32.totalorder %s14, 1
      %p100 = por %p98, %p99
      %p101 = scmp.ne.s32.totalorder %s90, %s91
      %p102 = scmp.eq.s32.totalorder %s14, 0
      %p103 = por %p101, %p102
      %p104 = scmp.ne.s32.totalorder %s90, %s91
      %p105 = scmp.eq.s32.totalorder %s15, 1
      %p106 = por %p104, %p105
      %p108 = scmp.ne.s32.totalorder %s91, %s107
      %p109 = scmp.eq.s32.totalorder %s15, 0
      %p110 = por %p108, %p109
      %p111 = scmp.le.s32.totalorder 1, %s9
      %p112 = scmp.lt.s32.totalorder %s9, 3
      %p113 = pnand %p111, %p112
      %p114 = pneg %p113
      // Predicated region
      $region9: #{autoencoder_forward.21} parent=5 // pred_check
        _
      $region10: #{autoencoder_forward.21} parent=5 // pred_check_branch
        %116 = sbr.rel (%p113) target = $region12
      $region11: #{autoencoder_forward.21} parent=5 // pred_region
        %s117 = ssub.s32 %s9, 1
        // Predicated region
        $region13: #{autoencoder_forward.21} parent=11 // pred_check
          %p118 = pneg %p30
        $region14: #{autoencoder_forward.21} parent=11 // pred_check_branch
          %120 = sbr.rel (%p118) target = $region16
        $region15: #{autoencoder_forward.21} parent=11 // pred_region
          _
        $region16: #{autoencoder_forward.21} parent=11 // pred_fallthru
          _
        // Predicated region
        $region17: #{autoencoder_forward.21} parent=11 // pred_check
          %p121 = pneg %p77
        $region18: #{autoencoder_forward.21} parent=11 // pred_check_branch
          %123 = sbr.rel (%p121) target = $region20
        $region19: #{autoencoder_forward.21} parent=11 // pred_region
          _
        $region20: #{autoencoder_forward.21} parent=11 // pred_fallthru
          _
      $region12: #{autoencoder_forward.21} parent=5 // pred_fallthru
        _
      %p124 = scmp.lt.s32.totalorder %s9, 2
      // Predicated region
      $region21: #{autoencoder_forward.21} parent=5 // pred_check
        %p125 = pneg %p124
      $region22: #{autoencoder_forward.21} parent=5 // pred_check_branch
        %127 = sbr.rel (%p125) target = $region24
      $region23: #{autoencoder_forward.21} parent=5 // pred_region
        // Predicated region
        $region25: #{autoencoder_forward.21} parent=23 // pred_check
          %p128 = pneg %p50
        $region26: #{autoencoder_forward.21} parent=23 // pred_check_branch
          %130 = sbr.rel (%p128) target = $region28
        $region27: #{autoencoder_forward.21} parent=23 // pred_region
          %s131 = sand.u32 %s40, 1
          %s132 = sand.u32 %s40, 1
          %s133 = smul.addr %s132, 1568
          %s134 = scalar_lea.vmem [#allocation2], %s133
          %s135 = smul.u32 2, %s9
          %s136 = smul.addr %s135, 4
          %s137 = scalar_lea.vmem %s1, %s136
          // Predicated region
          $region29: #{autoencoder_forward.21} parent=27 // pred_check
            _
          $region30: #{autoencoder_forward.21} parent=27 // pred_check_branch
            %139 = sbr.rel (0) target = $region32
          $region31: #{autoencoder_forward.21} parent=27 // pred_region
            // Predicated region
            $region33: #{autoencoder_forward.21} parent=31 // pred_check
              _
            $region34: #{autoencoder_forward.21} parent=31 // pred_check_branch
              %141 = sbr.rel (0) target = $region36
            $region35: #{autoencoder_forward.21} parent=31 // pred_region
              // Predicated region
              $region48: #{autoencoder_forward.21} parent=35 // pred_check
                _
              $region49: #{autoencoder_forward.21} parent=35 // pred_check_branch
                %547 = sbr.rel (0) target = $region51
              $region50: #{autoencoder_forward.21} parent=35 // pred_region
                loop: start=0, step=1, limit=1
                $region52: #{autoencoder_forward.21} parent=50 // loop_pre_header
                  _
                $region53: #{autoencoder_forward.21} parent=50 // loop_header
                  %s549 = sphi 0, %s553
                  %p550 = scmp.ge.s32.totalorder %s549, 1
                  %s554 = sphi %s137, %s137
                  %s555 = sphi %s134, %s134
                $region54: #{autoencoder_forward.21} parent=50 // loop_header_branch
                  %552 = sbr.rel (%p550) target = $region58
                $region55: #{autoencoder_forward.21} parent=50 // loop_body
                  %v556 = vld [vmem:[%s554] sm:$0xff]
                  %557 = vst [vmem:[%s555] sm:$0xff] %v556
                  %v558 = vld [vmem:[%s554 + $0x10] sm:$0xff]
                  %559 = vst [vmem:[%s555 + $0x8] sm:$0xff] %v558
                  %v560 = vld [vmem:[%s554 + $0x20] sm:$0xff]
                  %561 = vst [vmem:[%s555 + $0x10] sm:$0xff] %v560
                  %v562 = vld [vmem:[%s554 + $0x30] sm:$0xff]
                  %563 = vst [vmem:[%s555 + $0x18] sm:$0xff] %v562
                  %v564 = vld [vmem:[%s554 + $0x40] sm:$0xff]
                  %565 = vst [vmem:[%s555 + $0x20] sm:$0xff] %v564
                  %v566 = vld [vmem:[%s554 + $0x50] sm:$0xff]
                  %567 = vst [vmem:[%s555 + $0x28] sm:$0xff] %v566
                  %v568 = vld [vmem:[%s554 + $0x60] sm:$0xff]
                  %569 = vst [vmem:[%s555 + $0x30] sm:$0xff] %v568
                  %v570 = vld [vmem:[%s554 + $0x70] sm:$0xff]
                  %571 = vst [vmem:[%s555 + $0x38] sm:$0xff] %v570
                  %v572 = vld [vmem:[%s554 + $0x80] sm:$0xff]
                  %573 = vst [vmem:[%s555 + $0x40] sm:$0xff] %v572
                  %v574 = vld [vmem:[%s554 + $0x90] sm:$0xff]
                  %575 = vst [vmem:[%s555 + $0x48] sm:$0xff] %v574
                  %v576 = vld [vmem:[%s554 + $0xa0] sm:$0xff]
                  %577 = vst [vmem:[%s555 + $0x50] sm:$0xff] %v576
                  %v578 = vld [vmem:[%s554 + $0xb0] sm:$0xff]
                  %579 = vst [vmem:[%s555 + $0x58] sm:$0xff] %v578
                  %v580 = vld [vmem:[%s554 + $0xc0] sm:$0xff]
                  %581 = vst [vmem:[%s555 + $0x60] sm:$0xff] %v580
                  %v582 = vld [vmem:[%s554 + $0xd0] sm:$0xff]
                  %583 = vst [vmem:[%s555 + $0x68] sm:$0xff] %v582
                  %v584 = vld [vmem:[%s554 + $0xe0] sm:$0xff]
                  %585 = vst [vmem:[%s555 + $0x70] sm:$0xff] %v584
                  %v586 = vld [vmem:[%s554 + $0xf0] sm:$0xff]
                  %587 = vst [vmem:[%s555 + $0x78] sm:$0xff] %v586
                  %v588 = vld [vmem:[%s554 + $0x100] sm:$0xff]
                  %589 = vst [vmem:[%s555 + $0x80] sm:$0xff] %v588
                  %v590 = vld [vmem:[%s554 + $0x110] sm:$0xff]
                  %591 = vst [vmem:[%s555 + $0x88] sm:$0xff] %v590
                  %v592 = vld [vmem:[%s554 + $0x120] sm:$0xff]
                  %593 = vst [vmem:[%s555 + $0x90] sm:$0xff] %v592
                  %v594 = vld [vmem:[%s554 + $0x130] sm:$0xff]
                  %595 = vst [vmem:[%s555 + $0x98] sm:$0xff] %v594
                  %v596 = vld [vmem:[%s554 + $0x140] sm:$0xff]
                  %597 = vst [vmem:[%s555 + $0xa0] sm:$0xff] %v596
                  %v598 = vld [vmem:[%s554 + $0x150] sm:$0xff]
                  %599 = vst [vmem:[%s555 + $0xa8] sm:$0xff] %v598
                  %v600 = vld [vmem:[%s554 + $0x160] sm:$0xff]
                  %601 = vst [vmem:[%s555 + $0xb0] sm:$0xff] %v600
                  %v602 = vld [vmem:[%s554 + $0x170] sm:$0xff]
                  %603 = vst [vmem:[%s555 + $0xb8] sm:$0xff] %v602
                  %v604 = vld [vmem:[%s554 + $0x180] sm:$0xff]
                  %605 = vst [vmem:[%s555 + $0xc0] sm:$0xff] %v604
                  %v606 = vld [vmem:[%s554 + $0x190] sm:$0xff]
                  %607 = vst [vmem:[%s555 + $0xc8] sm:$0xff] %v606
                  %v608 = vld [vmem:[%s554 + $0x1a0] sm:$0xff]
                  %609 = vst [vmem:[%s555 + $0xd0] sm:$0xff] %v608
                  %v610 = vld [vmem:[%s554 + $0x1b0] sm:$0xff]
                  %611 = vst [vmem:[%s555 + $0xd8] sm:$0xff] %v610
                  %v612 = vld [vmem:[%s554 + $0x1c0] sm:$0xff]
                  %613 = vst [vmem:[%s555 + $0xe0] sm:$0xff] %v612
                  %v614 = vld [vmem:[%s554 + $0x1d0] sm:$0xff]
                  %615 = vst [vmem:[%s555 + $0xe8] sm:$0xff] %v614
                  %v616 = vld [vmem:[%s554 + $0x1e0] sm:$0xff]
                  %617 = vst [vmem:[%s555 + $0xf0] sm:$0xff] %v616
                  %v618 = vld [vmem:[%s554 + $0x1f0] sm:$0xff]
                  %619 = vst [vmem:[%s555 + $0xf8] sm:$0xff] %v618
                  %v620 = vld [vmem:[%s554 + $0x200] sm:$0xff]
                  %621 = vst [vmem:[%s555 + $0x100] sm:$0xff] %v620
                  %v622 = vld [vmem:[%s554 + $0x210] sm:$0xff]
                  %623 = vst [vmem:[%s555 + $0x108] sm:$0xff] %v622
                  %v624 = vld [vmem:[%s554 + $0x220] sm:$0xff]
                  %625 = vst [vmem:[%s555 + $0x110] sm:$0xff] %v624
                  %v626 = vld [vmem:[%s554 + $0x230] sm:$0xff]
                  %627 = vst [vmem:[%s555 + $0x118] sm:$0xff] %v626
                  %v628 = vld [vmem:[%s554 + $0x240] sm:$0xff]
                  %629 = vst [vmem:[%s555 + $0x120] sm:$0xff] %v628
                  %v630 = vld [vmem:[%s554 + $0x250] sm:$0xff]
                  %631 = vst [vmem:[%s555 + $0x128] sm:$0xff] %v630
                  %v632 = vld [vmem:[%s554 + $0x260] sm:$0xff]
                  %633 = vst [vmem:[%s555 + $0x130] sm:$0xff] %v632
                  %v634 = vld [vmem:[%s554 + $0x270] sm:$0xff]
                  %635 = vst [vmem:[%s555 + $0x138] sm:$0xff] %v634
                  %v636 = vld [vmem:[%s554 + $0x280] sm:$0xff]
                  %637 = vst [vmem:[%s555 + $0x140] sm:$0xff] %v636
                  %v638 = vld [vmem:[%s554 + $0x290] sm:$0xff]
                  %639 = vst [vmem:[%s555 + $0x148] sm:$0xff] %v638
                  %v640 = vld [vmem:[%s554 + $0x2a0] sm:$0xff]
                  %641 = vst [vmem:[%s555 + $0x150] sm:$0xff] %v640
                  %v642 = vld [vmem:[%s554 + $0x2b0] sm:$0xff]
                  %643 = vst [vmem:[%s555 + $0x158] sm:$0xff] %v642
                  %v644 = vld [vmem:[%s554 + $0x2c0] sm:$0xff]
                  %645 = vst [vmem:[%s555 + $0x160] sm:$0xff] %v644
                  %v646 = vld [vmem:[%s554 + $0x2d0] sm:$0xff]
                  %647 = vst [vmem:[%s555 + $0x168] sm:$0xff] %v646
                  %v648 = vld [vmem:[%s554 + $0x2e0] sm:$0xff]
                  %649 = vst [vmem:[%s555 + $0x170] sm:$0xff] %v648
                  %v650 = vld [vmem:[%s554 + $0x2f0] sm:$0xff]
                  %651 = vst [vmem:[%s555 + $0x178] sm:$0xff] %v650
                  %v652 = vld [vmem:[%s554 + $0x300] sm:$0xff]
                  %653 = vst [vmem:[%s555 + $0x180] sm:$0xff] %v652
                  %v654 = vld [vmem:[%s554 + $0x310] sm:$0xff]
                  %655 = vst [vmem:[%s555 + $0x188] sm:$0xff] %v654
                  %v656 = vld [vmem:[%s554 + $0x320] sm:$0xff]
                  %657 = vst [vmem:[%s555 + $0x190] sm:$0xff] %v656
                  %v658 = vld [vmem:[%s554 + $0x330] sm:$0xff]
                  %659 = vst [vmem:[%s555 + $0x198] sm:$0xff] %v658
                  %v660 = vld [vmem:[%s554 + $0x340] sm:$0xff]
                  %661 = vst [vmem:[%s555 + $0x1a0] sm:$0xff] %v660
                  %v662 = vld [vmem:[%s554 + $0x350] sm:$0xff]
                  %663 = vst [vmem:[%s555 + $0x1a8] sm:$0xff] %v662
                  %v664 = vld [vmem:[%s554 + $0x360] sm:$0xff]
                  %665 = vst [vmem:[%s555 + $0x1b0] sm:$0xff] %v664
                  %v666 = vld [vmem:[%s554 + $0x370] sm:$0xff]
                  %667 = vst [vmem:[%s555 + $0x1b8] sm:$0xff] %v666
                  %v668 = vld [vmem:[%s554 + $0x380] sm:$0xff]
                  %669 = vst [vmem:[%s555 + $0x1c0] sm:$0xff] %v668
                  %v670 = vld [vmem:[%s554 + $0x390] sm:$0xff]
                  %671 = vst [vmem:[%s555 + $0x1c8] sm:$0xff] %v670
                  %v672 = vld [vmem:[%s554 + $0x3a0] sm:$0xff]
                  %673 = vst [vmem:[%s555 + $0x1d0] sm:$0xff] %v672
                  %v674 = vld [vmem:[%s554 + $0x3b0] sm:$0xff]
                  %675 = vst [vmem:[%s555 + $0x1d8] sm:$0xff] %v674
                  %v676 = vld [vmem:[%s554 + $0x3c0] sm:$0xff]
                  %677 = vst [vmem:[%s555 + $0x1e0] sm:$0xff] %v676
                  %v678 = vld [vmem:[%s554 + $0x3d0] sm:$0xff]
                  %679 = vst [vmem:[%s555 + $0x1e8] sm:$0xff] %v678
                  %v680 = vld [vmem:[%s554 + $0x3e0] sm:$0xff]
                  %681 = vst [vmem:[%s555 + $0x1f0] sm:$0xff] %v680
                  %v682 = vld [vmem:[%s554 + $0x3f0] sm:$0xff]
                  %683 = vst [vmem:[%s555 + $0x1f8] sm:$0xff] %v682
                  %v684 = vld [vmem:[%s554 + $0x400] sm:$0xff]
                  %685 = vst [vmem:[%s555 + $0x200] sm:$0xff] %v684
                  %v686 = vld [vmem:[%s554 + $0x410] sm:$0xff]
                  %687 = vst [vmem:[%s555 + $0x208] sm:$0xff] %v686
                  %v688 = vld [vmem:[%s554 + $0x420] sm:$0xff]
                  %689 = vst [vmem:[%s555 + $0x210] sm:$0xff] %v688
                  %v690 = vld [vmem:[%s554 + $0x430] sm:$0xff]
                  %691 = vst [vmem:[%s555 + $0x218] sm:$0xff] %v690
                  %v692 = vld [vmem:[%s554 + $0x440] sm:$0xff]
                  %693 = vst [vmem:[%s555 + $0x220] sm:$0xff] %v692
                  %v694 = vld [vmem:[%s554 + $0x450] sm:$0xff]
                  %695 = vst [vmem:[%s555 + $0x228] sm:$0xff] %v694
                  %v696 = vld [vmem:[%s554 + $0x460] sm:$0xff]
                  %697 = vst [vmem:[%s555 + $0x230] sm:$0xff] %v696
                  %v698 = vld [vmem:[%s554 + $0x470] sm:$0xff]
                  %699 = vst [vmem:[%s555 + $0x238] sm:$0xff] %v698
                  %v700 = vld [vmem:[%s554 + $0x480] sm:$0xff]
                  %701 = vst [vmem:[%s555 + $0x240] sm:$0xff] %v700
                  %v702 = vld [vmem:[%s554 + $0x490] sm:$0xff]
                  %703 = vst [vmem:[%s555 + $0x248] sm:$0xff] %v702
                  %v704 = vld [vmem:[%s554 + $0x4a0] sm:$0xff]
                  %705 = vst [vmem:[%s555 + $0x250] sm:$0xff] %v704
                  %v706 = vld [vmem:[%s554 + $0x4b0] sm:$0xff]
                  %707 = vst [vmem:[%s555 + $0x258] sm:$0xff] %v706
                  %v708 = vld [vmem:[%s554 + $0x4c0] sm:$0xff]
                  %709 = vst [vmem:[%s555 + $0x260] sm:$0xff] %v708
                  %v710 = vld [vmem:[%s554 + $0x4d0] sm:$0xff]
                  %711 = vst [vmem:[%s555 + $0x268] sm:$0xff] %v710
                  %v712 = vld [vmem:[%s554 + $0x4e0] sm:$0xff]
                  %713 = vst [vmem:[%s555 + $0x270] sm:$0xff] %v712
                  %v714 = vld [vmem:[%s554 + $0x4f0] sm:$0xff]
                  %715 = vst [vmem:[%s555 + $0x278] sm:$0xff] %v714
                  %v716 = vld [vmem:[%s554 + $0x500] sm:$0xff]
                  %717 = vst [vmem:[%s555 + $0x280] sm:$0xff] %v716
                  %v718 = vld [vmem:[%s554 + $0x510] sm:$0xff]
                  %719 = vst [vmem:[%s555 + $0x288] sm:$0xff] %v718
                  %v720 = vld [vmem:[%s554 + $0x520] sm:$0xff]
                  %721 = vst [vmem:[%s555 + $0x290] sm:$0xff] %v720
                  %v722 = vld [vmem:[%s554 + $0x530] sm:$0xff]
                  %723 = vst [vmem:[%s555 + $0x298] sm:$0xff] %v722
                  %v724 = vld [vmem:[%s554 + $0x540] sm:$0xff]
                  %725 = vst [vmem:[%s555 + $0x2a0] sm:$0xff] %v724
                  %v726 = vld [vmem:[%s554 + $0x550] sm:$0xff]
                  %727 = vst [vmem:[%s555 + $0x2a8] sm:$0xff] %v726
                  %v728 = vld [vmem:[%s554 + $0x560] sm:$0xff]
                  %729 = vst [vmem:[%s555 + $0x2b0] sm:$0xff] %v728
                  %v730 = vld [vmem:[%s554 + $0x570] sm:$0xff]
                  %731 = vst [vmem:[%s555 + $0x2b8] sm:$0xff] %v730
                  %v732 = vld [vmem:[%s554 + $0x580] sm:$0xff]
                  %733 = vst [vmem:[%s555 + $0x2c0] sm:$0xff] %v732
                  %v734 = vld [vmem:[%s554 + $0x590] sm:$0xff]
                  %735 = vst [vmem:[%s555 + $0x2c8] sm:$0xff] %v734
                  %v736 = vld [vmem:[%s554 + $0x5a0] sm:$0xff]
                  %737 = vst [vmem:[%s555 + $0x2d0] sm:$0xff] %v736
                  %v738 = vld [vmem:[%s554 + $0x5b0] sm:$0xff]
                  %739 = vst [vmem:[%s555 + $0x2d8] sm:$0xff] %v738
                  %v740 = vld [vmem:[%s554 + $0x5c0] sm:$0xff]
                  %741 = vst [vmem:[%s555 + $0x2e0] sm:$0xff] %v740
                  %v742 = vld [vmem:[%s554 + $0x5d0] sm:$0xff]
                  %743 = vst [vmem:[%s555 + $0x2e8] sm:$0xff] %v742
                  %v744 = vld [vmem:[%s554 + $0x5e0] sm:$0xff]
                  %745 = vst [vmem:[%s555 + $0x2f0] sm:$0xff] %v744
                  %v746 = vld [vmem:[%s554 + $0x5f0] sm:$0xff]
                  %747 = vst [vmem:[%s555 + $0x2f8] sm:$0xff] %v746
                  %v748 = vld [vmem:[%s554 + $0x600] sm:$0xff]
                  %749 = vst [vmem:[%s555 + $0x300] sm:$0xff] %v748
                  %v750 = vld [vmem:[%s554 + $0x610] sm:$0xff]
                  %751 = vst [vmem:[%s555 + $0x308] sm:$0xff] %v750
                  %v752 = vld [vmem:[%s554 + $0x620] sm:$0xff]
                  %753 = vst [vmem:[%s555 + $0x310] sm:$0xff] %v752
                  %v754 = vld [vmem:[%s554 + $0x630] sm:$0xff]
                  %755 = vst [vmem:[%s555 + $0x318] sm:$0xff] %v754
                  %v756 = vld [vmem:[%s554 + $0x640] sm:$0xff]
                  %757 = vst [vmem:[%s555 + $0x320] sm:$0xff] %v756
                  %v758 = vld [vmem:[%s554 + $0x650] sm:$0xff]
                  %759 = vst [vmem:[%s555 + $0x328] sm:$0xff] %v758
                  %v760 = vld [vmem:[%s554 + $0x660] sm:$0xff]
                  %761 = vst [vmem:[%s555 + $0x330] sm:$0xff] %v760
                  %v762 = vld [vmem:[%s554 + $0x670] sm:$0xff]
                  %763 = vst [vmem:[%s555 + $0x338] sm:$0xff] %v762
                  %v764 = vld [vmem:[%s554 + $0x680] sm:$0xff]
                  %765 = vst [vmem:[%s555 + $0x340] sm:$0xff] %v764
                  %v766 = vld [vmem:[%s554 + $0x690] sm:$0xff]
                  %767 = vst [vmem:[%s555 + $0x348] sm:$0xff] %v766
                  %v768 = vld [vmem:[%s554 + $0x6a0] sm:$0xff]
                  %769 = vst [vmem:[%s555 + $0x350] sm:$0xff] %v768
                  %v770 = vld [vmem:[%s554 + $0x6b0] sm:$0xff]
                  %771 = vst [vmem:[%s555 + $0x358] sm:$0xff] %v770
                  %v772 = vld [vmem:[%s554 + $0x6c0] sm:$0xff]
                  %773 = vst [vmem:[%s555 + $0x360] sm:$0xff] %v772
                  %v774 = vld [vmem:[%s554 + $0x6d0] sm:$0xff]
                  %775 = vst [vmem:[%s555 + $0x368] sm:$0xff] %v774
                  %v776 = vld [vmem:[%s554 + $0x6e0] sm:$0xff]
                  %777 = vst [vmem:[%s555 + $0x370] sm:$0xff] %v776
                  %v778 = vld [vmem:[%s554 + $0x6f0] sm:$0xff]
                  %779 = vst [vmem:[%s555 + $0x378] sm:$0xff] %v778
                  %v780 = vld [vmem:[%s554 + $0x700] sm:$0xff]
                  %781 = vst [vmem:[%s555 + $0x380] sm:$0xff] %v780
                  %v782 = vld [vmem:[%s554 + $0x710] sm:$0xff]
                  %783 = vst [vmem:[%s555 + $0x388] sm:$0xff] %v782
                  %v784 = vld [vmem:[%s554 + $0x720] sm:$0xff]
                  %785 = vst [vmem:[%s555 + $0x390] sm:$0xff] %v784
                  %v786 = vld [vmem:[%s554 + $0x730] sm:$0xff]
                  %787 = vst [vmem:[%s555 + $0x398] sm:$0xff] %v786
                  %v788 = vld [vmem:[%s554 + $0x740] sm:$0xff]
                  %789 = vst [vmem:[%s555 + $0x3a0] sm:$0xff] %v788
                  %v790 = vld [vmem:[%s554 + $0x750] sm:$0xff]
                  %791 = vst [vmem:[%s555 + $0x3a8] sm:$0xff] %v790
                  %v792 = vld [vmem:[%s554 + $0x760] sm:$0xff]
                  %793 = vst [vmem:[%s555 + $0x3b0] sm:$0xff] %v792
                  %v794 = vld [vmem:[%s554 + $0x770] sm:$0xff]
                  %795 = vst [vmem:[%s555 + $0x3b8] sm:$0xff] %v794
                  %v796 = vld [vmem:[%s554 + $0x780] sm:$0xff]
                  %797 = vst [vmem:[%s555 + $0x3c0] sm:$0xff] %v796
                  %v798 = vld [vmem:[%s554 + $0x790] sm:$0xff]
                  %799 = vst [vmem:[%s555 + $0x3c8] sm:$0xff] %v798
                  %v800 = vld [vmem:[%s554 + $0x7a0] sm:$0xff]
                  %801 = vst [vmem:[%s555 + $0x3d0] sm:$0xff] %v800
                  %v802 = vld [vmem:[%s554 + $0x7b0] sm:$0xff]
                  %803 = vst [vmem:[%s555 + $0x3d8] sm:$0xff] %v802
                  %v804 = vld [vmem:[%s554 + $0x7c0] sm:$0xff]
                  %805 = vst [vmem:[%s555 + $0x3e0] sm:$0xff] %v804
                  %v806 = vld [vmem:[%s554 + $0x7d0] sm:$0xff]
                  %807 = vst [vmem:[%s555 + $0x3e8] sm:$0xff] %v806
                  %v808 = vld [vmem:[%s554 + $0x7e0] sm:$0xff]
                  %809 = vst [vmem:[%s555 + $0x3f0] sm:$0xff] %v808
                  %v810 = vld [vmem:[%s554 + $0x7f0] sm:$0xff]
                  %811 = vst [vmem:[%s555 + $0x3f8] sm:$0xff] %v810
                  %v812 = vld [vmem:[%s554 + $0x800] sm:$0xff]
                  %813 = vst [vmem:[%s555 + $0x400] sm:$0xff] %v812
                  %v814 = vld [vmem:[%s554 + $0x810] sm:$0xff]
                  %815 = vst [vmem:[%s555 + $0x408] sm:$0xff] %v814
                  %v816 = vld [vmem:[%s554 + $0x820] sm:$0xff]
                  %817 = vst [vmem:[%s555 + $0x410] sm:$0xff] %v816
                  %v818 = vld [vmem:[%s554 + $0x830] sm:$0xff]
                  %819 = vst [vmem:[%s555 + $0x418] sm:$0xff] %v818
                  %v820 = vld [vmem:[%s554 + $0x840] sm:$0xff]
                  %821 = vst [vmem:[%s555 + $0x420] sm:$0xff] %v820
                  %v822 = vld [vmem:[%s554 + $0x850] sm:$0xff]
                  %823 = vst [vmem:[%s555 + $0x428] sm:$0xff] %v822
                  %v824 = vld [vmem:[%s554 + $0x860] sm:$0xff]
                  %825 = vst [vmem:[%s555 + $0x430] sm:$0xff] %v824
                  %v826 = vld [vmem:[%s554 + $0x870] sm:$0xff]
                  %827 = vst [vmem:[%s555 + $0x438] sm:$0xff] %v826
                  %v828 = vld [vmem:[%s554 + $0x880] sm:$0xff]
                  %829 = vst [vmem:[%s555 + $0x440] sm:$0xff] %v828
                  %v830 = vld [vmem:[%s554 + $0x890] sm:$0xff]
                  %831 = vst [vmem:[%s555 + $0x448] sm:$0xff] %v830
                  %v832 = vld [vmem:[%s554 + $0x8a0] sm:$0xff]
                  %833 = vst [vmem:[%s555 + $0x450] sm:$0xff] %v832
                  %v834 = vld [vmem:[%s554 + $0x8b0] sm:$0xff]
                  %835 = vst [vmem:[%s555 + $0x458] sm:$0xff] %v834
                  %v836 = vld [vmem:[%s554 + $0x8c0] sm:$0xff]
                  %837 = vst [vmem:[%s555 + $0x460] sm:$0xff] %v836
                  %v838 = vld [vmem:[%s554 + $0x8d0] sm:$0xff]
                  %839 = vst [vmem:[%s555 + $0x468] sm:$0xff] %v838
                  %v840 = vld [vmem:[%s554 + $0x8e0] sm:$0xff]
                  %841 = vst [vmem:[%s555 + $0x470] sm:$0xff] %v840
                  %v842 = vld [vmem:[%s554 + $0x8f0] sm:$0xff]
                  %843 = vst [vmem:[%s555 + $0x478] sm:$0xff] %v842
                  %v844 = vld [vmem:[%s554 + $0x900] sm:$0xff]
                  %845 = vst [vmem:[%s555 + $0x480] sm:$0xff] %v844
                  %v846 = vld [vmem:[%s554 + $0x910] sm:$0xff]
                  %847 = vst [vmem:[%s555 + $0x488] sm:$0xff] %v846
                  %v848 = vld [vmem:[%s554 + $0x920] sm:$0xff]
                  %849 = vst [vmem:[%s555 + $0x490] sm:$0xff] %v848
                  %v850 = vld [vmem:[%s554 + $0x930] sm:$0xff]
                  %851 = vst [vmem:[%s555 + $0x498] sm:$0xff] %v850
                  %v852 = vld [vmem:[%s554 + $0x940] sm:$0xff]
                  %853 = vst [vmem:[%s555 + $0x4a0] sm:$0xff] %v852
                  %v854 = vld [vmem:[%s554 + $0x950] sm:$0xff]
                  %855 = vst [vmem:[%s555 + $0x4a8] sm:$0xff] %v854
                  %v856 = vld [vmem:[%s554 + $0x960] sm:$0xff]
                  %857 = vst [vmem:[%s555 + $0x4b0] sm:$0xff] %v856
                  %v858 = vld [vmem:[%s554 + $0x970] sm:$0xff]
                  %859 = vst [vmem:[%s555 + $0x4b8] sm:$0xff] %v858
                  %v860 = vld [vmem:[%s554 + $0x980] sm:$0xff]
                  %861 = vst [vmem:[%s555 + $0x4c0] sm:$0xff] %v860
                  %v862 = vld [vmem:[%s554 + $0x990] sm:$0xff]
                  %863 = vst [vmem:[%s555 + $0x4c8] sm:$0xff] %v862
                  %v864 = vld [vmem:[%s554 + $0x9a0] sm:$0xff]
                  %865 = vst [vmem:[%s555 + $0x4d0] sm:$0xff] %v864
                  %v866 = vld [vmem:[%s554 + $0x9b0] sm:$0xff]
                  %867 = vst [vmem:[%s555 + $0x4d8] sm:$0xff] %v866
                  %v868 = vld [vmem:[%s554 + $0x9c0] sm:$0xff]
                  %869 = vst [vmem:[%s555 + $0x4e0] sm:$0xff] %v868
                  %v870 = vld [vmem:[%s554 + $0x9d0] sm:$0xff]
                  %871 = vst [vmem:[%s555 + $0x4e8] sm:$0xff] %v870
                  %v872 = vld [vmem:[%s554 + $0x9e0] sm:$0xff]
                  %873 = vst [vmem:[%s555 + $0x4f0] sm:$0xff] %v872
                  %v874 = vld [vmem:[%s554 + $0x9f0] sm:$0xff]
                  %875 = vst [vmem:[%s555 + $0x4f8] sm:$0xff] %v874
                  %v876 = vld [vmem:[%s554 + $0xa00] sm:$0xff]
                  %877 = vst [vmem:[%s555 + $0x500] sm:$0xff] %v876
                  %v878 = vld [vmem:[%s554 + $0xa10] sm:$0xff]
                  %879 = vst [vmem:[%s555 + $0x508] sm:$0xff] %v878
                  %v880 = vld [vmem:[%s554 + $0xa20] sm:$0xff]
                  %881 = vst [vmem:[%s555 + $0x510] sm:$0xff] %v880
                  %v882 = vld [vmem:[%s554 + $0xa30] sm:$0xff]
                  %883 = vst [vmem:[%s555 + $0x518] sm:$0xff] %v882
                  %v884 = vld [vmem:[%s554 + $0xa40] sm:$0xff]
                  %885 = vst [vmem:[%s555 + $0x520] sm:$0xff] %v884
                  %v886 = vld [vmem:[%s554 + $0xa50] sm:$0xff]
                  %887 = vst [vmem:[%s555 + $0x528] sm:$0xff] %v886
                  %v888 = vld [vmem:[%s554 + $0xa60] sm:$0xff]
                  %889 = vst [vmem:[%s555 + $0x530] sm:$0xff] %v888
                  %v890 = vld [vmem:[%s554 + $0xa70] sm:$0xff]
                  %891 = vst [vmem:[%s555 + $0x538] sm:$0xff] %v890
                  %v892 = vld [vmem:[%s554 + $0xa80] sm:$0xff]
                  %893 = vst [vmem:[%s555 + $0x540] sm:$0xff] %v892
                  %v894 = vld [vmem:[%s554 + $0xa90] sm:$0xff]
                  %895 = vst [vmem:[%s555 + $0x548] sm:$0xff] %v894
                  %v896 = vld [vmem:[%s554 + $0xaa0] sm:$0xff]
                  %897 = vst [vmem:[%s555 + $0x550] sm:$0xff] %v896
                  %v898 = vld [vmem:[%s554 + $0xab0] sm:$0xff]
                  %899 = vst [vmem:[%s555 + $0x558] sm:$0xff] %v898
                  %v900 = vld [vmem:[%s554 + $0xac0] sm:$0xff]
                  %901 = vst [vmem:[%s555 + $0x560] sm:$0xff] %v900
                  %v902 = vld [vmem:[%s554 + $0xad0] sm:$0xff]
                  %903 = vst [vmem:[%s555 + $0x568] sm:$0xff] %v902
                  %v904 = vld [vmem:[%s554 + $0xae0] sm:$0xff]
                  %905 = vst [vmem:[%s555 + $0x570] sm:$0xff] %v904
                  %v906 = vld [vmem:[%s554 + $0xaf0] sm:$0xff]
                  %907 = vst [vmem:[%s555 + $0x578] sm:$0xff] %v906
                  %v908 = vld [vmem:[%s554 + $0xb00] sm:$0xff]
                  %909 = vst [vmem:[%s555 + $0x580] sm:$0xff] %v908
                  %v910 = vld [vmem:[%s554 + $0xb10] sm:$0xff]
                  %911 = vst [vmem:[%s555 + $0x588] sm:$0xff] %v910
                  %v912 = vld [vmem:[%s554 + $0xb20] sm:$0xff]
                  %913 = vst [vmem:[%s555 + $0x590] sm:$0xff] %v912
                  %v914 = vld [vmem:[%s554 + $0xb30] sm:$0xff]
                  %915 = vst [vmem:[%s555 + $0x598] sm:$0xff] %v914
                  %v916 = vld [vmem:[%s554 + $0xb40] sm:$0xff]
                  %917 = vst [vmem:[%s555 + $0x5a0] sm:$0xff] %v916
                  %v918 = vld [vmem:[%s554 + $0xb50] sm:$0xff]
                  %919 = vst [vmem:[%s555 + $0x5a8] sm:$0xff] %v918
                  %v920 = vld [vmem:[%s554 + $0xb60] sm:$0xff]
                  %921 = vst [vmem:[%s555 + $0x5b0] sm:$0xff] %v920
                  %v922 = vld [vmem:[%s554 + $0xb70] sm:$0xff]
                  %923 = vst [vmem:[%s555 + $0x5b8] sm:$0xff] %v922
                  %v924 = vld [vmem:[%s554 + $0xb80] sm:$0xff]
                  %925 = vst [vmem:[%s555 + $0x5c0] sm:$0xff] %v924
                  %v926 = vld [vmem:[%s554 + $0xb90] sm:$0xff]
                  %927 = vst [vmem:[%s555 + $0x5c8] sm:$0xff] %v926
                  %v928 = vld [vmem:[%s554 + $0xba0] sm:$0xff]
                  %929 = vst [vmem:[%s555 + $0x5d0] sm:$0xff] %v928
                  %v930 = vld [vmem:[%s554 + $0xbb0] sm:$0xff]
                  %931 = vst [vmem:[%s555 + $0x5d8] sm:$0xff] %v930
                  %v932 = vld [vmem:[%s554 + $0xbc0] sm:$0xff]
                  %933 = vst [vmem:[%s555 + $0x5e0] sm:$0xff] %v932
                  %v934 = vld [vmem:[%s554 + $0xbd0] sm:$0xff]
                  %935 = vst [vmem:[%s555 + $0x5e8] sm:$0xff] %v934
                  %v936 = vld [vmem:[%s554 + $0xbe0] sm:$0xff]
                  %937 = vst [vmem:[%s555 + $0x5f0] sm:$0xff] %v936
                  %v938 = vld [vmem:[%s554 + $0xbf0] sm:$0xff]
                  %939 = vst [vmem:[%s555 + $0x5f8] sm:$0xff] %v938
                  %v940 = vld [vmem:[%s554 + $0xc00] sm:$0xff]
                  %941 = vst [vmem:[%s555 + $0x600] sm:$0xff] %v940
                  %v942 = vld [vmem:[%s554 + $0xc10] sm:$0xff]
                  %943 = vst [vmem:[%s555 + $0x608] sm:$0xff] %v942
                  %v944 = vld [vmem:[%s554 + $0xc20] sm:$0xff]
                  %945 = vst [vmem:[%s555 + $0x610] sm:$0xff] %v944
                  %v946 = vld [vmem:[%s554 + $0xc30] sm:$0xff]
                  %947 = vst [vmem:[%s555 + $0x618] sm:$0xff] %v946
                $region56: #{autoencoder_forward.21} parent=50 // loop_footer
                  %s553 = sadd.s32 1, %s549
                $region57: #{autoencoder_forward.21} parent=50 // loop_footer_branch
                  %548 = sbr.rel target = $region53
                $region58: #{autoencoder_forward.21} parent=50 // loop_exit
                  _
              $region51: #{autoencoder_forward.21} parent=35 // pred_fallthru
                _
              // Predicated region
              $region59: #{autoencoder_forward.21} parent=35 // pred_check
                _
              $region60: #{autoencoder_forward.21} parent=35 // pred_check_branch
                %949 = sbr.rel target = $region62
              $region61: #{autoencoder_forward.21} parent=35 // pred_region
                _
              $region62: #{autoencoder_forward.21} parent=35 // pred_fallthru
                _
            $region36: #{autoencoder_forward.21} parent=31 // pred_fallthru
              _
            // Predicated region
            $region37: #{autoencoder_forward.21} parent=31 // pred_check
              _
            $region38: #{autoencoder_forward.21} parent=31 // pred_check_branch
              %143 = sbr.rel target = $region40
            $region39: #{autoencoder_forward.21} parent=31 // pred_region
              %s145 = ssub.s32 256, 1
              loop: start=0, step=1, limit=1
              $region41: #{autoencoder_forward.21} parent=39 // loop_pre_header
                _
              $region42: #{autoencoder_forward.21} parent=39 // loop_header
                %s147 = sphi 0, %s151
                %p148 = scmp.ge.s32.totalorder %s147, 1
                %s152 = sphi %s137, %s137
                %s153 = sphi %s134, %s134
              $region43: #{autoencoder_forward.21} parent=39 // loop_header_branch
                %150 = sbr.rel (%p148) target = $region47
              $region44: #{autoencoder_forward.21} parent=39 // loop_body
                %v154 = vld [vmem:[%s152] sm:%s145]
                %155 = vst [vmem:[%s153] sm:%s145] %v154
                %v156 = vld [vmem:[%s152 + $0x10] sm:%s145]
                %157 = vst [vmem:[%s153 + $0x8] sm:%s145] %v156
                %v158 = vld [vmem:[%s152 + $0x20] sm:%s145]
                %159 = vst [vmem:[%s153 + $0x10] sm:%s145] %v158
                %v160 = vld [vmem:[%s152 + $0x30] sm:%s145]
                %161 = vst [vmem:[%s153 + $0x18] sm:%s145] %v160
                %v162 = vld [vmem:[%s152 + $0x40] sm:%s145]
                %163 = vst [vmem:[%s153 + $0x20] sm:%s145] %v162
                %v164 = vld [vmem:[%s152 + $0x50] sm:%s145]
                %165 = vst [vmem:[%s153 + $0x28] sm:%s145] %v164
                %v166 = vld [vmem:[%s152 + $0x60] sm:%s145]
                %167 = vst [vmem:[%s153 + $0x30] sm:%s145] %v166
                %v168 = vld [vmem:[%s152 + $0x70] sm:%s145]
                %169 = vst [vmem:[%s153 + $0x38] sm:%s145] %v168
                %v170 = vld [vmem:[%s152 + $0x80] sm:%s145]
                %171 = vst [vmem:[%s153 + $0x40] sm:%s145] %v170
                %v172 = vld [vmem:[%s152 + $0x90] sm:%s145]
                %173 = vst [vmem:[%s153 + $0x48] sm:%s145] %v172
                %v174 = vld [vmem:[%s152 + $0xa0] sm:%s145]
                %175 = vst [vmem:[%s153 + $0x50] sm:%s145] %v174
                %v176 = vld [vmem:[%s152 + $0xb0] sm:%s145]
                %177 = vst [vmem:[%s153 + $0x58] sm:%s145] %v176
                %v178 = vld [vmem:[%s152 + $0xc0] sm:%s145]
                %179 = vst [vmem:[%s153 + $0x60] sm:%s145] %v178
                %v180 = vld [vmem:[%s152 + $0xd0] sm:%s145]
                %181 = vst [vmem:[%s153 + $0x68] sm:%s145] %v180
                %v182 = vld [vmem:[%s152 + $0xe0] sm:%s145]
                %183 = vst [vmem:[%s153 + $0x70] sm:%s145] %v182
                %v184 = vld [vmem:[%s152 + $0xf0] sm:%s145]
                %185 = vst [vmem:[%s153 + $0x78] sm:%s145] %v184
                %v186 = vld [vmem:[%s152 + $0x100] sm:%s145]
                %187 = vst [vmem:[%s153 + $0x80] sm:%s145] %v186
                %v188 = vld [vmem:[%s152 + $0x110] sm:%s145]
                %189 = vst [vmem:[%s153 + $0x88] sm:%s145] %v188
                %v190 = vld [vmem:[%s152 + $0x120] sm:%s145]
                %191 = vst [vmem:[%s153 + $0x90] sm:%s145] %v190
                %v192 = vld [vmem:[%s152 + $0x130] sm:%s145]
                %193 = vst [vmem:[%s153 + $0x98] sm:%s145] %v192
                %v194 = vld [vmem:[%s152 + $0x140] sm:%s145]
                %195 = vst [vmem:[%s153 + $0xa0] sm:%s145] %v194
                %v196 = vld [vmem:[%s152 + $0x150] sm:%s145]
                %197 = vst [vmem:[%s153 + $0xa8] sm:%s145] %v196
                %v198 = vld [vmem:[%s152 + $0x160] sm:%s145]
                %199 = vst [vmem:[%s153 + $0xb0] sm:%s145] %v198
                %v200 = vld [vmem:[%s152 + $0x170] sm:%s145]
                %201 = vst [vmem:[%s153 + $0xb8] sm:%s145] %v200
                %v202 = vld [vmem:[%s152 + $0x180] sm:%s145]
                %203 = vst [vmem:[%s153 + $0xc0] sm:%s145] %v202
                %v204 = vld [vmem:[%s152 + $0x190] sm:%s145]
                %205 = vst [vmem:[%s153 + $0xc8] sm:%s145] %v204
                %v206 = vld [vmem:[%s152 + $0x1a0] sm:%s145]
                %207 = vst [vmem:[%s153 + $0xd0] sm:%s145] %v206
                %v208 = vld [vmem:[%s152 + $0x1b0] sm:%s145]
                %209 = vst [vmem:[%s153 + $0xd8] sm:%s145] %v208
                %v210 = vld [vmem:[%s152 + $0x1c0] sm:%s145]
                %211 = vst [vmem:[%s153 + $0xe0] sm:%s145] %v210
                %v212 = vld [vmem:[%s152 + $0x1d0] sm:%s145]
                %213 = vst [vmem:[%s153 + $0xe8] sm:%s145] %v212
                %v214 = vld [vmem:[%s152 + $0x1e0] sm:%s145]
                %215 = vst [vmem:[%s153 + $0xf0] sm:%s145] %v214
                %v216 = vld [vmem:[%s152 + $0x1f0] sm:%s145]
                %217 = vst [vmem:[%s153 + $0xf8] sm:%s145] %v216
                %v218 = vld [vmem:[%s152 + $0x200] sm:%s145]
                %219 = vst [vmem:[%s153 + $0x100] sm:%s145] %v218
                %v220 = vld [vmem:[%s152 + $0x210] sm:%s145]
                %221 = vst [vmem:[%s153 + $0x108] sm:%s145] %v220
                %v222 = vld [vmem:[%s152 + $0x220] sm:%s145]
                %223 = vst [vmem:[%s153 + $0x110] sm:%s145] %v222
                %v224 = vld [vmem:[%s152 + $0x230] sm:%s145]
                %225 = vst [vmem:[%s153 + $0x118] sm:%s145] %v224
                %v226 = vld [vmem:[%s152 + $0x240] sm:%s145]
                %227 = vst [vmem:[%s153 + $0x120] sm:%s145] %v226
                %v228 = vld [vmem:[%s152 + $0x250] sm:%s145]
                %229 = vst [vmem:[%s153 + $0x128] sm:%s145] %v228
                %v230 = vld [vmem:[%s152 + $0x260] sm:%s145]
                %231 = vst [vmem:[%s153 + $0x130] sm:%s145] %v230
                %v232 = vld [vmem:[%s152 + $0x270] sm:%s145]
                %233 = vst [vmem:[%s153 + $0x138] sm:%s145] %v232
                %v234 = vld [vmem:[%s152 + $0x280] sm:%s145]
                %235 = vst [vmem:[%s153 + $0x140] sm:%s145] %v234
                %v236 = vld [vmem:[%s152 + $0x290] sm:%s145]
                %237 = vst [vmem:[%s153 + $0x148] sm:%s145] %v236
                %v238 = vld [vmem:[%s152 + $0x2a0] sm:%s145]
                %239 = vst [vmem:[%s153 + $0x150] sm:%s145] %v238
                %v240 = vld [vmem:[%s152 + $0x2b0] sm:%s145]
                %241 = vst [vmem:[%s153 + $0x158] sm:%s145] %v240
                %v242 = vld [vmem:[%s152 + $0x2c0] sm:%s145]
                %243 = vst [vmem:[%s153 + $0x160] sm:%s145] %v242
                %v244 = vld [vmem:[%s152 + $0x2d0] sm:%s145]
                %245 = vst [vmem:[%s153 + $0x168] sm:%s145] %v244
                %v246 = vld [vmem:[%s152 + $0x2e0] sm:%s145]
                %247 = vst [vmem:[%s153 + $0x170] sm:%s145] %v246
                %v248 = vld [vmem:[%s152 + $0x2f0] sm:%s145]
                %249 = vst [vmem:[%s153 + $0x178] sm:%s145] %v248
                %v250 = vld [vmem:[%s152 + $0x300] sm:%s145]
                %251 = vst [vmem:[%s153 + $0x180] sm:%s145] %v250
                %v252 = vld [vmem:[%s152 + $0x310] sm:%s145]
                %253 = vst [vmem:[%s153 + $0x188] sm:%s145] %v252
                %v254 = vld [vmem:[%s152 + $0x320] sm:%s145]
                %255 = vst [vmem:[%s153 + $0x190] sm:%s145] %v254
                %v256 = vld [vmem:[%s152 + $0x330] sm:%s145]
                %257 = vst [vmem:[%s153 + $0x198] sm:%s145] %v256
                %v258 = vld [vmem:[%s152 + $0x340] sm:%s145]
                %259 = vst [vmem:[%s153 + $0x1a0] sm:%s145] %v258
                %v260 = vld [vmem:[%s152 + $0x350] sm:%s145]
                %261 = vst [vmem:[%s153 + $0x1a8] sm:%s145] %v260
                %v262 = vld [vmem:[%s152 + $0x360] sm:%s145]
                %263 = vst [vmem:[%s153 + $0x1b0] sm:%s145] %v262
                %v264 = vld [vmem:[%s152 + $0x370] sm:%s145]
                %265 = vst [vmem:[%s153 + $0x1b8] sm:%s145] %v264
                %v266 = vld [vmem:[%s152 + $0x380] sm:%s145]
                %267 = vst [vmem:[%s153 + $0x1c0] sm:%s145] %v266
                %v268 = vld [vmem:[%s152 + $0x390] sm:%s145]
                %269 = vst [vmem:[%s153 + $0x1c8] sm:%s145] %v268
                %v270 = vld [vmem:[%s152 + $0x3a0] sm:%s145]
                %271 = vst [vmem:[%s153 + $0x1d0] sm:%s145] %v270
                %v272 = vld [vmem:[%s152 + $0x3b0] sm:%s145]
                %273 = vst [vmem:[%s153 + $0x1d8] sm:%s145] %v272
                %v274 = vld [vmem:[%s152 + $0x3c0] sm:%s145]
                %275 = vst [vmem:[%s153 + $0x1e0] sm:%s145] %v274
                %v276 = vld [vmem:[%s152 + $0x3d0] sm:%s145]
                %277 = vst [vmem:[%s153 + $0x1e8] sm:%s145] %v276
                %v278 = vld [vmem:[%s152 + $0x3e0] sm:%s145]
                %279 = vst [vmem:[%s153 + $0x1f0] sm:%s145] %v278
                %v280 = vld [vmem:[%s152 + $0x3f0] sm:%s145]
                %281 = vst [vmem:[%s153 + $0x1f8] sm:%s145] %v280
                %v282 = vld [vmem:[%s152 + $0x400] sm:%s145]
                %283 = vst [vmem:[%s153 + $0x200] sm:%s145] %v282
                %v284 = vld [vmem:[%s152 + $0x410] sm:%s145]
                %285 = vst [vmem:[%s153 + $0x208] sm:%s145] %v284
                %v286 = vld [vmem:[%s152 + $0x420] sm:%s145]
                %287 = vst [vmem:[%s153 + $0x210] sm:%s145] %v286
                %v288 = vld [vmem:[%s152 + $0x430] sm:%s145]
                %289 = vst [vmem:[%s153 + $0x218] sm:%s145] %v288
                %v290 = vld [vmem:[%s152 + $0x440] sm:%s145]
                %291 = vst [vmem:[%s153 + $0x220] sm:%s145] %v290
                %v292 = vld [vmem:[%s152 + $0x450] sm:%s145]
                %293 = vst [vmem:[%s153 + $0x228] sm:%s145] %v292
                %v294 = vld [vmem:[%s152 + $0x460] sm:%s145]
                %295 = vst [vmem:[%s153 + $0x230] sm:%s145] %v294
                %v296 = vld [vmem:[%s152 + $0x470] sm:%s145]
                %297 = vst [vmem:[%s153 + $0x238] sm:%s145] %v296
                %v298 = vld [vmem:[%s152 + $0x480] sm:%s145]
                %299 = vst [vmem:[%s153 + $0x240] sm:%s145] %v298
                %v300 = vld [vmem:[%s152 + $0x490] sm:%s145]
                %301 = vst [vmem:[%s153 + $0x248] sm:%s145] %v300
                %v302 = vld [vmem:[%s152 + $0x4a0] sm:%s145]
                %303 = vst [vmem:[%s153 + $0x250] sm:%s145] %v302
                %v304 = vld [vmem:[%s152 + $0x4b0] sm:%s145]
                %305 = vst [vmem:[%s153 + $0x258] sm:%s145] %v304
                %v306 = vld [vmem:[%s152 + $0x4c0] sm:%s145]
                %307 = vst [vmem:[%s153 + $0x260] sm:%s145] %v306
                %v308 = vld [vmem:[%s152 + $0x4d0] sm:%s145]
                %309 = vst [vmem:[%s153 + $0x268] sm:%s145] %v308
                %v310 = vld [vmem:[%s152 + $0x4e0] sm:%s145]
                %311 = vst [vmem:[%s153 + $0x270] sm:%s145] %v310
                %v312 = vld [vmem:[%s152 + $0x4f0] sm:%s145]
                %313 = vst [vmem:[%s153 + $0x278] sm:%s145] %v312
                %v314 = vld [vmem:[%s152 + $0x500] sm:%s145]
                %315 = vst [vmem:[%s153 + $0x280] sm:%s145] %v314
                %v316 = vld [vmem:[%s152 + $0x510] sm:%s145]
                %317 = vst [vmem:[%s153 + $0x288] sm:%s145] %v316
                %v318 = vld [vmem:[%s152 + $0x520] sm:%s145]
                %319 = vst [vmem:[%s153 + $0x290] sm:%s145] %v318
                %v320 = vld [vmem:[%s152 + $0x530] sm:%s145]
                %321 = vst [vmem:[%s153 + $0x298] sm:%s145] %v320
                %v322 = vld [vmem:[%s152 + $0x540] sm:%s145]
                %323 = vst [vmem:[%s153 + $0x2a0] sm:%s145] %v322
                %v324 = vld [vmem:[%s152 + $0x550] sm:%s145]
                %325 = vst [vmem:[%s153 + $0x2a8] sm:%s145] %v324
                %v326 = vld [vmem:[%s152 + $0x560] sm:%s145]
                %327 = vst [vmem:[%s153 + $0x2b0] sm:%s145] %v326
                %v328 = vld [vmem:[%s152 + $0x570] sm:%s145]
                %329 = vst [vmem:[%s153 + $0x2b8] sm:%s145] %v328
                %v330 = vld [vmem:[%s152 + $0x580] sm:%s145]
                %331 = vst [vmem:[%s153 + $0x2c0] sm:%s145] %v330
                %v332 = vld [vmem:[%s152 + $0x590] sm:%s145]
                %333 = vst [vmem:[%s153 + $0x2c8] sm:%s145] %v332
                %v334 = vld [vmem:[%s152 + $0x5a0] sm:%s145]
                %335 = vst [vmem:[%s153 + $0x2d0] sm:%s145] %v334
                %v336 = vld [vmem:[%s152 + $0x5b0] sm:%s145]
                %337 = vst [vmem:[%s153 + $0x2d8] sm:%s145] %v336
                %v338 = vld [vmem:[%s152 + $0x5c0] sm:%s145]
                %339 = vst [vmem:[%s153 + $0x2e0] sm:%s145] %v338
                %v340 = vld [vmem:[%s152 + $0x5d0] sm:%s145]
                %341 = vst [vmem:[%s153 + $0x2e8] sm:%s145] %v340
                %v342 = vld [vmem:[%s152 + $0x5e0] sm:%s145]
                %343 = vst [vmem:[%s153 + $0x2f0] sm:%s145] %v342
                %v344 = vld [vmem:[%s152 + $0x5f0] sm:%s145]
                %345 = vst [vmem:[%s153 + $0x2f8] sm:%s145] %v344
                %v346 = vld [vmem:[%s152 + $0x600] sm:%s145]
                %347 = vst [vmem:[%s153 + $0x300] sm:%s145] %v346
                %v348 = vld [vmem:[%s152 + $0x610] sm:%s145]
                %349 = vst [vmem:[%s153 + $0x308] sm:%s145] %v348
                %v350 = vld [vmem:[%s152 + $0x620] sm:%s145]
                %351 = vst [vmem:[%s153 + $0x310] sm:%s145] %v350
                %v352 = vld [vmem:[%s152 + $0x630] sm:%s145]
                %353 = vst [vmem:[%s153 + $0x318] sm:%s145] %v352
                %v354 = vld [vmem:[%s152 + $0x640] sm:%s145]
                %355 = vst [vmem:[%s153 + $0x320] sm:%s145] %v354
                %v356 = vld [vmem:[%s152 + $0x650] sm:%s145]
                %357 = vst [vmem:[%s153 + $0x328] sm:%s145] %v356
                %v358 = vld [vmem:[%s152 + $0x660] sm:%s145]
                %359 = vst [vmem:[%s153 + $0x330] sm:%s145] %v358
                %v360 = vld [vmem:[%s152 + $0x670] sm:%s145]
                %361 = vst [vmem:[%s153 + $0x338] sm:%s145] %v360
                %v362 = vld [vmem:[%s152 + $0x680] sm:%s145]
                %363 = vst [vmem:[%s153 + $0x340] sm:%s145] %v362
                %v364 = vld [vmem:[%s152 + $0x690] sm:%s145]
                %365 = vst [vmem:[%s153 + $0x348] sm:%s145] %v364
                %v366 = vld [vmem:[%s152 + $0x6a0] sm:%s145]
                %367 = vst [vmem:[%s153 + $0x350] sm:%s145] %v366
                %v368 = vld [vmem:[%s152 + $0x6b0] sm:%s145]
                %369 = vst [vmem:[%s153 + $0x358] sm:%s145] %v368
                %v370 = vld [vmem:[%s152 + $0x6c0] sm:%s145]
                %371 = vst [vmem:[%s153 + $0x360] sm:%s145] %v370
                %v372 = vld [vmem:[%s152 + $0x6d0] sm:%s145]
                %373 = vst [vmem:[%s153 + $0x368] sm:%s145] %v372
                %v374 = vld [vmem:[%s152 + $0x6e0] sm:%s145]
                %375 = vst [vmem:[%s153 + $0x370] sm:%s145] %v374
                %v376 = vld [vmem:[%s152 + $0x6f0] sm:%s145]
                %377 = vst [vmem:[%s153 + $0x378] sm:%s145] %v376
                %v378 = vld [vmem:[%s152 + $0x700] sm:%s145]
                %379 = vst [vmem:[%s153 + $0x380] sm:%s145] %v378
                %v380 = vld [vmem:[%s152 + $0x710] sm:%s145]
                %381 = vst [vmem:[%s153 + $0x388] sm:%s145] %v380
                %v382 = vld [vmem:[%s152 + $0x720] sm:%s145]
                %383 = vst [vmem:[%s153 + $0x390] sm:%s145] %v382
                %v384 = vld [vmem:[%s152 + $0x730] sm:%s145]
                %385 = vst [vmem:[%s153 + $0x398] sm:%s145] %v384
                %v386 = vld [vmem:[%s152 + $0x740] sm:%s145]
                %387 = vst [vmem:[%s153 + $0x3a0] sm:%s145] %v386
                %v388 = vld [vmem:[%s152 + $0x750] sm:%s145]
                %389 = vst [vmem:[%s153 + $0x3a8] sm:%s145] %v388
                %v390 = vld [vmem:[%s152 + $0x760] sm:%s145]
                %391 = vst [vmem:[%s153 + $0x3b0] sm:%s145] %v390
                %v392 = vld [vmem:[%s152 + $0x770] sm:%s145]
                %393 = vst [vmem:[%s153 + $0x3b8] sm:%s145] %v392
                %v394 = vld [vmem:[%s152 + $0x780] sm:%s145]
                %395 = vst [vmem:[%s153 + $0x3c0] sm:%s145] %v394
                %v396 = vld [vmem:[%s152 + $0x790] sm:%s145]
                %397 = vst [vmem:[%s153 + $0x3c8] sm:%s145] %v396
                %v398 = vld [vmem:[%s152 + $0x7a0] sm:%s145]
                %399 = vst [vmem:[%s153 + $0x3d0] sm:%s145] %v398
                %v400 = vld [vmem:[%s152 + $0x7b0] sm:%s145]
                %401 = vst [vmem:[%s153 + $0x3d8] sm:%s145] %v400
                %v402 = vld [vmem:[%s152 + $0x7c0] sm:%s145]
                %403 = vst [vmem:[%s153 + $0x3e0] sm:%s145] %v402
                %v404 = vld [vmem:[%s152 + $0x7d0] sm:%s145]
                %405 = vst [vmem:[%s153 + $0x3e8] sm:%s145] %v404
                %v406 = vld [vmem:[%s152 + $0x7e0] sm:%s145]
                %407 = vst [vmem:[%s153 + $0x3f0] sm:%s145] %v406
                %v408 = vld [vmem:[%s152 + $0x7f0] sm:%s145]
                %409 = vst [vmem:[%s153 + $0x3f8] sm:%s145] %v408
                %v410 = vld [vmem:[%s152 + $0x800] sm:%s145]
                %411 = vst [vmem:[%s153 + $0x400] sm:%s145] %v410
                %v412 = vld [vmem:[%s152 + $0x810] sm:%s145]
                %413 = vst [vmem:[%s153 + $0x408] sm:%s145] %v412
                %v414 = vld [vmem:[%s152 + $0x820] sm:%s145]
                %415 = vst [vmem:[%s153 + $0x410] sm:%s145] %v414
                %v416 = vld [vmem:[%s152 + $0x830] sm:%s145]
                %417 = vst [vmem:[%s153 + $0x418] sm:%s145] %v416
                %v418 = vld [vmem:[%s152 + $0x840] sm:%s145]
                %419 = vst [vmem:[%s153 + $0x420] sm:%s145] %v418
                %v420 = vld [vmem:[%s152 + $0x850] sm:%s145]
                %421 = vst [vmem:[%s153 + $0x428] sm:%s145] %v420
                %v422 = vld [vmem:[%s152 + $0x860] sm:%s145]
                %423 = vst [vmem:[%s153 + $0x430] sm:%s145] %v422
                %v424 = vld [vmem:[%s152 + $0x870] sm:%s145]
                %425 = vst [vmem:[%s153 + $0x438] sm:%s145] %v424
                %v426 = vld [vmem:[%s152 + $0x880] sm:%s145]
                %427 = vst [vmem:[%s153 + $0x440] sm:%s145] %v426
                %v428 = vld [vmem:[%s152 + $0x890] sm:%s145]
                %429 = vst [vmem:[%s153 + $0x448] sm:%s145] %v428
                %v430 = vld [vmem:[%s152 + $0x8a0] sm:%s145]
                %431 = vst [vmem:[%s153 + $0x450] sm:%s145] %v430
                %v432 = vld [vmem:[%s152 + $0x8b0] sm:%s145]
                %433 = vst [vmem:[%s153 + $0x458] sm:%s145] %v432
                %v434 = vld [vmem:[%s152 + $0x8c0] sm:%s145]
                %435 = vst [vmem:[%s153 + $0x460] sm:%s145] %v434
                %v436 = vld [vmem:[%s152 + $0x8d0] sm:%s145]
                %437 = vst [vmem:[%s153 + $0x468] sm:%s145] %v436
                %v438 = vld [vmem:[%s152 + $0x8e0] sm:%s145]
                %439 = vst [vmem:[%s153 + $0x470] sm:%s145] %v438
                %v440 = vld [vmem:[%s152 + $0x8f0] sm:%s145]
                %441 = vst [vmem:[%s153 + $0x478] sm:%s145] %v440
                %v442 = vld [vmem:[%s152 + $0x900] sm:%s145]
                %443 = vst [vmem:[%s153 + $0x480] sm:%s145] %v442
                %v444 = vld [vmem:[%s152 + $0x910] sm:%s145]
                %445 = vst [vmem:[%s153 + $0x488] sm:%s145] %v444
                %v446 = vld [vmem:[%s152 + $0x920] sm:%s145]
                %447 = vst [vmem:[%s153 + $0x490] sm:%s145] %v446
                %v448 = vld [vmem:[%s152 + $0x930] sm:%s145]
                %449 = vst [vmem:[%s153 + $0x498] sm:%s145] %v448
                %v450 = vld [vmem:[%s152 + $0x940] sm:%s145]
                %451 = vst [vmem:[%s153 + $0x4a0] sm:%s145] %v450
                %v452 = vld [vmem:[%s152 + $0x950] sm:%s145]
                %453 = vst [vmem:[%s153 + $0x4a8] sm:%s145] %v452
                %v454 = vld [vmem:[%s152 + $0x960] sm:%s145]
                %455 = vst [vmem:[%s153 + $0x4b0] sm:%s145] %v454
                %v456 = vld [vmem:[%s152 + $0x970] sm:%s145]
                %457 = vst [vmem:[%s153 + $0x4b8] sm:%s145] %v456
                %v458 = vld [vmem:[%s152 + $0x980] sm:%s145]
                %459 = vst [vmem:[%s153 + $0x4c0] sm:%s145] %v458
                %v460 = vld [vmem:[%s152 + $0x990] sm:%s145]
                %461 = vst [vmem:[%s153 + $0x4c8] sm:%s145] %v460
                %v462 = vld [vmem:[%s152 + $0x9a0] sm:%s145]
                %463 = vst [vmem:[%s153 + $0x4d0] sm:%s145] %v462
                %v464 = vld [vmem:[%s152 + $0x9b0] sm:%s145]
                %465 = vst [vmem:[%s153 + $0x4d8] sm:%s145] %v464
                %v466 = vld [vmem:[%s152 + $0x9c0] sm:%s145]
                %467 = vst [vmem:[%s153 + $0x4e0] sm:%s145] %v466
                %v468 = vld [vmem:[%s152 + $0x9d0] sm:%s145]
                %469 = vst [vmem:[%s153 + $0x4e8] sm:%s145] %v468
                %v470 = vld [vmem:[%s152 + $0x9e0] sm:%s145]
                %471 = vst [vmem:[%s153 + $0x4f0] sm:%s145] %v470
                %v472 = vld [vmem:[%s152 + $0x9f0] sm:%s145]
                %473 = vst [vmem:[%s153 + $0x4f8] sm:%s145] %v472
                %v474 = vld [vmem:[%s152 + $0xa00] sm:%s145]
                %475 = vst [vmem:[%s153 + $0x500] sm:%s145] %v474
                %v476 = vld [vmem:[%s152 + $0xa10] sm:%s145]
                %477 = vst [vmem:[%s153 + $0x508] sm:%s145] %v476
                %v478 = vld [vmem:[%s152 + $0xa20] sm:%s145]
                %479 = vst [vmem:[%s153 + $0x510] sm:%s145] %v478
                %v480 = vld [vmem:[%s152 + $0xa30] sm:%s145]
                %481 = vst [vmem:[%s153 + $0x518] sm:%s145] %v480
                %v482 = vld [vmem:[%s152 + $0xa40] sm:%s145]
                %483 = vst [vmem:[%s153 + $0x520] sm:%s145] %v482
                %v484 = vld [vmem:[%s152 + $0xa50] sm:%s145]
                %485 = vst [vmem:[%s153 + $0x528] sm:%s145] %v484
                %v486 = vld [vmem:[%s152 + $0xa60] sm:%s145]
                %487 = vst [vmem:[%s153 + $0x530] sm:%s145] %v486
                %v488 = vld [vmem:[%s152 + $0xa70] sm:%s145]
                %489 = vst [vmem:[%s153 + $0x538] sm:%s145] %v488
                %v490 = vld [vmem:[%s152 + $0xa80] sm:%s145]
                %491 = vst [vmem:[%s153 + $0x540] sm:%s145] %v490
                %v492 = vld [vmem:[%s152 + $0xa90] sm:%s145]
                %493 = vst [vmem:[%s153 + $0x548] sm:%s145] %v492
                %v494 = vld [vmem:[%s152 + $0xaa0] sm:%s145]
                %495 = vst [vmem:[%s153 + $0x550] sm:%s145] %v494
                %v496 = vld [vmem:[%s152 + $0xab0] sm:%s145]
                %497 = vst [vmem:[%s153 + $0x558] sm:%s145] %v496
                %v498 = vld [vmem:[%s152 + $0xac0] sm:%s145]
                %499 = vst [vmem:[%s153 + $0x560] sm:%s145] %v498
                %v500 = vld [vmem:[%s152 + $0xad0] sm:%s145]
                %501 = vst [vmem:[%s153 + $0x568] sm:%s145] %v500
                %v502 = vld [vmem:[%s152 + $0xae0] sm:%s145]
                %503 = vst [vmem:[%s153 + $0x570] sm:%s145] %v502
                %v504 = vld [vmem:[%s152 + $0xaf0] sm:%s145]
                %505 = vst [vmem:[%s153 + $0x578] sm:%s145] %v504
                %v506 = vld [vmem:[%s152 + $0xb00] sm:%s145]
                %507 = vst [vmem:[%s153 + $0x580] sm:%s145] %v506
                %v508 = vld [vmem:[%s152 + $0xb10] sm:%s145]
                %509 = vst [vmem:[%s153 + $0x588] sm:%s145] %v508
                %v510 = vld [vmem:[%s152 + $0xb20] sm:%s145]
                %511 = vst [vmem:[%s153 + $0x590] sm:%s145] %v510
                %v512 = vld [vmem:[%s152 + $0xb30] sm:%s145]
                %513 = vst [vmem:[%s153 + $0x598] sm:%s145] %v512
                %v514 = vld [vmem:[%s152 + $0xb40] sm:%s145]
                %515 = vst [vmem:[%s153 + $0x5a0] sm:%s145] %v514
                %v516 = vld [vmem:[%s152 + $0xb50] sm:%s145]
                %517 = vst [vmem:[%s153 + $0x5a8] sm:%s145] %v516
                %v518 = vld [vmem:[%s152 + $0xb60] sm:%s145]
                %519 = vst [vmem:[%s153 + $0x5b0] sm:%s145] %v518
                %v520 = vld [vmem:[%s152 + $0xb70] sm:%s145]
                %521 = vst [vmem:[%s153 + $0x5b8] sm:%s145] %v520
                %v522 = vld [vmem:[%s152 + $0xb80] sm:%s145]
                %523 = vst [vmem:[%s153 + $0x5c0] sm:%s145] %v522
                %v524 = vld [vmem:[%s152 + $0xb90] sm:%s145]
                %525 = vst [vmem:[%s153 + $0x5c8] sm:%s145] %v524
                %v526 = vld [vmem:[%s152 + $0xba0] sm:%s145]
                %527 = vst [vmem:[%s153 + $0x5d0] sm:%s145] %v526
                %v528 = vld [vmem:[%s152 + $0xbb0] sm:%s145]
                %529 = vst [vmem:[%s153 + $0x5d8] sm:%s145] %v528
                %v530 = vld [vmem:[%s152 + $0xbc0] sm:%s145]
                %531 = vst [vmem:[%s153 + $0x5e0] sm:%s145] %v530
                %v532 = vld [vmem:[%s152 + $0xbd0] sm:%s145]
                %533 = vst [vmem:[%s153 + $0x5e8] sm:%s145] %v532
                %v534 = vld [vmem:[%s152 + $0xbe0] sm:%s145]
                %535 = vst [vmem:[%s153 + $0x5f0] sm:%s145] %v534
                %v536 = vld [vmem:[%s152 + $0xbf0] sm:%s145]
                %537 = vst [vmem:[%s153 + $0x5f8] sm:%s145] %v536
                %v538 = vld [vmem:[%s152 + $0xc00] sm:%s145]
                %539 = vst [vmem:[%s153 + $0x600] sm:%s145] %v538
                %v540 = vld [vmem:[%s152 + $0xc10] sm:%s145]
                %541 = vst [vmem:[%s153 + $0x608] sm:%s145] %v540
                %v542 = vld [vmem:[%s152 + $0xc20] sm:%s145]
                %543 = vst [vmem:[%s153 + $0x610] sm:%s145] %v542
                %v544 = vld [vmem:[%s152 + $0xc30] sm:%s145]
                %545 = vst [vmem:[%s153 + $0x618] sm:%s145] %v544
              $region45: #{autoencoder_forward.21} parent=39 // loop_footer
                %s151 = sadd.s32 1, %s147
              $region46: #{autoencoder_forward.21} parent=39 // loop_footer_branch
                %146 = sbr.rel target = $region42
              $region47: #{autoencoder_forward.21} parent=39 // loop_exit
                _
            $region40: #{autoencoder_forward.21} parent=31 // pred_fallthru
              _
          $region32: #{autoencoder_forward.21} parent=27 // pred_fallthru
            _
          %950 = vnop
        $region28: #{autoencoder_forward.21} parent=23 // pred_fallthru
          _
      $region24: #{autoencoder_forward.21} parent=5 // pred_fallthru
        _
      %p951 = scmp.le.s32.totalorder 1, %s9
      %p952 = scmp.lt.s32.totalorder %s9, 3
      %p953 = pnand %p951, %p952
      %p954 = pneg %p953
      // Predicated region
      $region63: #{autoencoder_forward.21} parent=5 // pred_check
        _
      $region64: #{autoencoder_forward.21} parent=5 // pred_check_branch
        %956 = sbr.rel (%p953) target = $region66
      $region65: #{autoencoder_forward.21} parent=5 // pred_region
        %s957 = ssub.s32 %s9, 1
        %s958 = sand.u32 %s43, 1
        %s959 = sand.u32 %s43, 1
        %s960 = smul.addr %s959, 1568
        %s961 = scalar_lea.vmem [#allocation2], %s960
        // Predicated region
        $region67: #{autoencoder_forward.21} parent=65 // pred_check
          %p962 = pneg %p56
        $region68: #{autoencoder_forward.21} parent=65 // pred_check_branch
          %964 = sbr.rel (%p962) target = $region70
        $region69: #{autoencoder_forward.21} parent=65 // pred_region
          _
        $region70: #{autoencoder_forward.21} parent=65 // pred_fallthru
          _
        %p965 = pneg %p30
        %p966 = pneg %p27
        %s967 = sand.u32 %s43, 1
        %s968 = sand.u32 %s43, 1
        %s969 = smul.addr %s968, 1568
        %s970 = scalar_lea.vmem [#allocation2], %s969
        %p971 = pneg %p56
        %p972 = pneg %p53
        %p973 = pneg %p77
        %p974 = pneg %p74
        %p975 = pneg %p103
        %p976 = pneg %p100
        %s977 = smul.u32 2, %s14
        %p978 = scmp.lt.s32.totalorder %s977, 3
        %s979 = scalar_select %p978, %s977, 3
        %s980 = smul.addr %s979, 8
        %s981 = scalar_lea.vmem %s3, %s980
        %s982 = smul.u32 2, %s14
        %s983 = smul.u32 2, %s14
        %p984 = scmp.lt.s32.totalorder %s983, 3
        %s985 = scalar_select %p984, %s983, 3
        %s986 = smul.addr %s985, 8
        %s987 = scalar_lea.vmem %s3, %s986
        %s988 = smul.u32 2, %s14
        %v989 = vld [vmem:[%s0] sm:$0xff]
        %v990 = vld [vmem:[%s0 + $0x8] sm:$0xff]
        %v991 = vld [vmem:[%s0 + $0x10] sm:$0xff]
        %v992 = vld [vmem:[%s0 + $0x18] sm:$0xff]
        %v993 = vld [vmem:[%s0 + $0x20] sm:$0xff]
        %v994 = vld [vmem:[%s0 + $0x28] sm:$0xff]
        %v995 = vld [vmem:[%s0 + $0x30] sm:$0xf]
        %v996 = vunpack.c.l.bf16 %v989
        %v997 = vunpack.c.h.bf16 %v989
        %v998 = vunpack.c.l.bf16 %v990
        %v999 = vunpack.c.h.bf16 %v990
        %v1000 = vunpack.c.l.bf16 %v991
        %v1001 = vunpack.c.h.bf16 %v991
        %v1002 = vunpack.c.l.bf16 %v992
        %v1003 = vunpack.c.h.bf16 %v992
        %v1004 = vunpack.c.l.bf16 %v993
        %v1005 = vunpack.c.h.bf16 %v993
        %v1006 = vunpack.c.l.bf16 %v994
        %v1007 = vunpack.c.h.bf16 %v994
        %v1008 = vunpack.c.l.bf16 %v995
        %v1009 = vld [vmem:[%s961] sm:$0xff]
        %v1010 = vld [vmem:[%s961 + $0x8] sm:$0xff]
        %v1011 = vld [vmem:[%s961 + $0x10] sm:$0xff]
        %v1012 = vld [vmem:[%s961 + $0x18] sm:$0xff]
        %v1013 = vld [vmem:[%s961 + $0x20] sm:$0xff]
        %v1014 = vld [vmem:[%s961 + $0x28] sm:$0xff]
        %v1015 = vld [vmem:[%s961 + $0x30] sm:$0xff]
        %v1016 = vld [vmem:[%s961 + $0x38] sm:$0xff]
        %v1017 = vld [vmem:[%s961 + $0x40] sm:$0xff]
        %v1018 = vld [vmem:[%s961 + $0x48] sm:$0xff]
        %v1019 = vld [vmem:[%s961 + $0x50] sm:$0xff]
        %v1020 = vld [vmem:[%s961 + $0x58] sm:$0xff]
        %v1021 = vld [vmem:[%s961 + $0x60] sm:$0xff]
        %v1022 = vld [vmem:[%s961 + $0x68] sm:$0xff]
        %v1023 = vld [vmem:[%s961 + $0x70] sm:$0xff]
        %v1024 = vld [vmem:[%s961 + $0x78] sm:$0xff]
        %v1025 = vld [vmem:[%s961 + $0x80] sm:$0xff]
        %v1026 = vld [vmem:[%s961 + $0x88] sm:$0xff]
        %v1027 = vld [vmem:[%s961 + $0x90] sm:$0xff]
        %v1028 = vld [vmem:[%s961 + $0x98] sm:$0xff]
        %v1029 = vld [vmem:[%s961 + $0xa0] sm:$0xff]
        %v1030 = vld [vmem:[%s961 + $0xa8] sm:$0xff]
        %v1031 = vld [vmem:[%s961 + $0xb0] sm:$0xff]
        %v1032 = vld [vmem:[%s961 + $0xb8] sm:$0xff]
        %v1033 = vld [vmem:[%s961 + $0xc0] sm:$0xff]
        %v1034 = vld [vmem:[%s961 + $0xc8] sm:$0xff]
        %v1035 = vld [vmem:[%s961 + $0xd0] sm:$0xff]
        %v1036 = vld [vmem:[%s961 + $0xd8] sm:$0xff]
        %v1037 = vld [vmem:[%s961 + $0xe0] sm:$0xff]
        %v1038 = vld [vmem:[%s961 + $0xe8] sm:$0xff]
        %v1039 = vld [vmem:[%s961 + $0xf0] sm:$0xff]
        %v1040 = vld [vmem:[%s961 + $0xf8] sm:$0xff]
        %v1041 = vld [vmem:[%s961 + $0x100] sm:$0xff]
        %v1042 = vld [vmem:[%s961 + $0x108] sm:$0xff]
        %v1043 = vld [vmem:[%s961 + $0x110] sm:$0xff]
        %v1044 = vld [vmem:[%s961 + $0x118] sm:$0xff]
        %v1045 = vld [vmem:[%s961 + $0x120] sm:$0xff]
        %v1046 = vld [vmem:[%s961 + $0x128] sm:$0xff]
        %v1047 = vld [vmem:[%s961 + $0x130] sm:$0xff]
        %v1048 = vld [vmem:[%s961 + $0x138] sm:$0xff]
        %v1049 = vld [vmem:[%s961 + $0x140] sm:$0xff]
        %v1050 = vld [vmem:[%s961 + $0x148] sm:$0xff]
        %v1051 = vld [vmem:[%s961 + $0x150] sm:$0xff]
        %v1052 = vld [vmem:[%s961 + $0x158] sm:$0xff]
        %v1053 = vld [vmem:[%s961 + $0x160] sm:$0xff]
        %v1054 = vld [vmem:[%s961 + $0x168] sm:$0xff]
        %v1055 = vld [vmem:[%s961 + $0x170] sm:$0xff]
        %v1056 = vld [vmem:[%s961 + $0x178] sm:$0xff]
        %v1057 = vld [vmem:[%s961 + $0x180] sm:$0xff]
        %v1058 = vld [vmem:[%s961 + $0x188] sm:$0xff]
        %v1059 = vld [vmem:[%s961 + $0x190] sm:$0xff]
        %v1060 = vld [vmem:[%s961 + $0x198] sm:$0xff]
        %v1061 = vld [vmem:[%s961 + $0x1a0] sm:$0xff]
        %v1062 = vld [vmem:[%s961 + $0x1a8] sm:$0xff]
        %v1063 = vld [vmem:[%s961 + $0x1b0] sm:$0xff]
        %v1064 = vld [vmem:[%s961 + $0x1b8] sm:$0xff]
        %v1065 = vld [vmem:[%s961 + $0x1c0] sm:$0xff]
        %v1066 = vld [vmem:[%s961 + $0x1c8] sm:$0xff]
        %v1067 = vld [vmem:[%s961 + $0x1d0] sm:$0xff]
        %v1068 = vld [vmem:[%s961 + $0x1d8] sm:$0xff]
        %v1069 = vld [vmem:[%s961 + $0x1e0] sm:$0xff]
        %v1070 = vld [vmem:[%s961 + $0x1e8] sm:$0xff]
        %v1071 = vld [vmem:[%s961 + $0x1f0] sm:$0xff]
        %v1072 = vld [vmem:[%s961 + $0x1f8] sm:$0xff]
        %v1073 = vld [vmem:[%s961 + $0x200] sm:$0xff]
        %v1074 = vld [vmem:[%s961 + $0x208] sm:$0xff]
        %v1075 = vld [vmem:[%s961 + $0x210] sm:$0xff]
        %v1076 = vld [vmem:[%s961 + $0x218] sm:$0xff]
        %v1077 = vld [vmem:[%s961 + $0x220] sm:$0xff]
        %v1078 = vld [vmem:[%s961 + $0x228] sm:$0xff]
        %v1079 = vld [vmem:[%s961 + $0x230] sm:$0xff]
        %v1080 = vld [vmem:[%s961 + $0x238] sm:$0xff]
        %v1081 = vld [vmem:[%s961 + $0x240] sm:$0xff]
        %v1082 = vld [vmem:[%s961 + $0x248] sm:$0xff]
        %v1083 = vld [vmem:[%s961 + $0x250] sm:$0xff]
        %v1084 = vld [vmem:[%s961 + $0x258] sm:$0xff]
        %v1085 = vld [vmem:[%s961 + $0x260] sm:$0xff]
        %v1086 = vld [vmem:[%s961 + $0x268] sm:$0xff]
        %v1087 = vld [vmem:[%s961 + $0x270] sm:$0xff]
        %v1088 = vld [vmem:[%s961 + $0x278] sm:$0xff]
        %v1089 = vld [vmem:[%s961 + $0x280] sm:$0xff]
        %v1090 = vld [vmem:[%s961 + $0x288] sm:$0xff]
        %v1091 = vld [vmem:[%s961 + $0x290] sm:$0xff]
        %v1092 = vld [vmem:[%s961 + $0x298] sm:$0xff]
        %v1093 = vld [vmem:[%s961 + $0x2a0] sm:$0xff]
        %v1094 = vld [vmem:[%s961 + $0x2a8] sm:$0xff]
        %v1095 = vld [vmem:[%s961 + $0x2b0] sm:$0xff]
        %v1096 = vld [vmem:[%s961 + $0x2b8] sm:$0xff]
        %v1097 = vld [vmem:[%s961 + $0x2c0] sm:$0xff]
        %v1098 = vld [vmem:[%s961 + $0x2c8] sm:$0xff]
        %v1099 = vld [vmem:[%s961 + $0x2d0] sm:$0xff]
        %v1100 = vld [vmem:[%s961 + $0x2d8] sm:$0xff]
        %v1101 = vld [vmem:[%s961 + $0x2e0] sm:$0xff]
        %v1102 = vld [vmem:[%s961 + $0x2e8] sm:$0xff]
        %v1103 = vld [vmem:[%s961 + $0x2f0] sm:$0xff]
        %v1104 = vld [vmem:[%s961 + $0x2f8] sm:$0xff]
        %v1105 = vld [vmem:[%s961 + $0x300] sm:$0xff]
        %v1106 = vld [vmem:[%s961 + $0x308] sm:$0xff]
        %v1107 = vld [vmem:[%s961 + $0x310] sm:$0xff]
        %v1108 = vld [vmem:[%s961 + $0x318] sm:$0xff]
        %v1109 = vld [vmem:[%s961 + $0x320] sm:$0xff]
        %v1110 = vld [vmem:[%s961 + $0x328] sm:$0xff]
        %v1111 = vld [vmem:[%s961 + $0x330] sm:$0xff]
        %v1112 = vld [vmem:[%s961 + $0x338] sm:$0xff]
        %v1113 = vld [vmem:[%s961 + $0x340] sm:$0xff]
        %v1114 = vld [vmem:[%s961 + $0x348] sm:$0xff]
        %v1115 = vld [vmem:[%s961 + $0x350] sm:$0xff]
        %v1116 = vld [vmem:[%s961 + $0x358] sm:$0xff]
        %v1117 = vld [vmem:[%s961 + $0x360] sm:$0xff]
        %v1118 = vld [vmem:[%s961 + $0x368] sm:$0xff]
        %v1119 = vld [vmem:[%s961 + $0x370] sm:$0xff]
        %v1120 = vld [vmem:[%s961 + $0x378] sm:$0xff]
        %v1121 = vld [vmem:[%s961 + $0x380] sm:$0xff]
        %v1122 = vld [vmem:[%s961 + $0x388] sm:$0xff]
        %v1123 = vld [vmem:[%s961 + $0x390] sm:$0xff]
        %v1124 = vld [vmem:[%s961 + $0x398] sm:$0xff]
        %v1125 = vld [vmem:[%s961 + $0x3a0] sm:$0xff]
        %v1126 = vld [vmem:[%s961 + $0x3a8] sm:$0xff]
        %v1127 = vld [vmem:[%s961 + $0x3b0] sm:$0xff]
        %v1128 = vld [vmem:[%s961 + $0x3b8] sm:$0xff]
        %v1129 = vld [vmem:[%s961 + $0x3c0] sm:$0xff]
        %v1130 = vld [vmem:[%s961 + $0x3c8] sm:$0xff]
        %v1131 = vld [vmem:[%s961 + $0x3d0] sm:$0xff]
        %v1132 = vld [vmem:[%s961 + $0x3d8] sm:$0xff]
        %v1133 = vld [vmem:[%s961 + $0x3e0] sm:$0xff]
        %v1134 = vld [vmem:[%s961 + $0x3e8] sm:$0xff]
        %v1135 = vld [vmem:[%s961 + $0x3f0] sm:$0xff]
        %v1136 = vld [vmem:[%s961 + $0x3f8] sm:$0xff]
        %v1137 = vld [vmem:[%s961 + $0x400] sm:$0xff]
        %v1138 = vld [vmem:[%s961 + $0x408] sm:$0xff]
        %v1139 = vld [vmem:[%s961 + $0x410] sm:$0xff]
        %v1140 = vld [vmem:[%s961 + $0x418] sm:$0xff]
        %v1141 = vld [vmem:[%s961 + $0x420] sm:$0xff]
        %v1142 = vld [vmem:[%s961 + $0x428] sm:$0xff]
        %v1143 = vld [vmem:[%s961 + $0x430] sm:$0xff]
        %v1144 = vld [vmem:[%s961 + $0x438] sm:$0xff]
        %v1145 = vld [vmem:[%s961 + $0x440] sm:$0xff]
        %v1146 = vld [vmem:[%s961 + $0x448] sm:$0xff]
        %v1147 = vld [vmem:[%s961 + $0x450] sm:$0xff]
        %v1148 = vld [vmem:[%s961 + $0x458] sm:$0xff]
        %v1149 = vld [vmem:[%s961 + $0x460] sm:$0xff]
        %v1150 = vld [vmem:[%s961 + $0x468] sm:$0xff]
        %v1151 = vld [vmem:[%s961 + $0x470] sm:$0xff]
        %v1152 = vld [vmem:[%s961 + $0x478] sm:$0xff]
        %v1153 = vld [vmem:[%s961 + $0x480] sm:$0xff]
        %v1154 = vld [vmem:[%s961 + $0x488] sm:$0xff]
        %v1155 = vld [vmem:[%s961 + $0x490] sm:$0xff]
        %v1156 = vld [vmem:[%s961 + $0x498] sm:$0xff]
        %v1157 = vld [vmem:[%s961 + $0x4a0] sm:$0xff]
        %v1158 = vld [vmem:[%s961 + $0x4a8] sm:$0xff]
        %v1159 = vld [vmem:[%s961 + $0x4b0] sm:$0xff]
        %v1160 = vld [vmem:[%s961 + $0x4b8] sm:$0xff]
        %v1161 = vld [vmem:[%s961 + $0x4c0] sm:$0xff]
        %v1162 = vld [vmem:[%s961 + $0x4c8] sm:$0xff]
        %v1163 = vld [vmem:[%s961 + $0x4d0] sm:$0xff]
        %v1164 = vld [vmem:[%s961 + $0x4d8] sm:$0xff]
        %v1165 = vld [vmem:[%s961 + $0x4e0] sm:$0xff]
        %v1166 = vld [vmem:[%s961 + $0x4e8] sm:$0xff]
        %v1167 = vld [vmem:[%s961 + $0x4f0] sm:$0xff]
        %v1168 = vld [vmem:[%s961 + $0x4f8] sm:$0xff]
        %v1169 = vld [vmem:[%s961 + $0x500] sm:$0xff]
        %v1170 = vld [vmem:[%s961 + $0x508] sm:$0xff]
        %v1171 = vld [vmem:[%s961 + $0x510] sm:$0xff]
        %v1172 = vld [vmem:[%s961 + $0x518] sm:$0xff]
        %v1173 = vld [vmem:[%s961 + $0x520] sm:$0xff]
        %v1174 = vld [vmem:[%s961 + $0x528] sm:$0xff]
        %v1175 = vld [vmem:[%s961 + $0x530] sm:$0xff]
        %v1176 = vld [vmem:[%s961 + $0x538] sm:$0xff]
        %v1177 = vld [vmem:[%s961 + $0x540] sm:$0xff]
        %v1178 = vld [vmem:[%s961 + $0x548] sm:$0xff]
        %v1179 = vld [vmem:[%s961 + $0x550] sm:$0xff]
        %v1180 = vld [vmem:[%s961 + $0x558] sm:$0xff]
        %v1181 = vld [vmem:[%s961 + $0x560] sm:$0xff]
        %v1182 = vld [vmem:[%s961 + $0x568] sm:$0xff]
        %v1183 = vld [vmem:[%s961 + $0x570] sm:$0xff]
        %v1184 = vld [vmem:[%s961 + $0x578] sm:$0xff]
        %v1185 = vld [vmem:[%s961 + $0x580] sm:$0xff]
        %v1186 = vld [vmem:[%s961 + $0x588] sm:$0xff]
        %v1187 = vld [vmem:[%s961 + $0x590] sm:$0xff]
        %v1188 = vld [vmem:[%s961 + $0x598] sm:$0xff]
        %v1189 = vld [vmem:[%s961 + $0x5a0] sm:$0xff]
        %v1190 = vld [vmem:[%s961 + $0x5a8] sm:$0xff]
        %v1191 = vld [vmem:[%s961 + $0x5b0] sm:$0xff]
        %v1192 = vld [vmem:[%s961 + $0x5b8] sm:$0xff]
        %v1193 = vld [vmem:[%s961 + $0x5c0] sm:$0xff]
        %v1194 = vld [vmem:[%s961 + $0x5c8] sm:$0xff]
        %v1195 = vld [vmem:[%s961 + $0x5d0] sm:$0xff]
        %v1196 = vld [vmem:[%s961 + $0x5d8] sm:$0xff]
        %v1197 = vld [vmem:[%s961 + $0x5e0] sm:$0xff]
        %v1198 = vld [vmem:[%s961 + $0x5e8] sm:$0xff]
        %v1199 = vld [vmem:[%s961 + $0x5f0] sm:$0xff]
        %v1200 = vld [vmem:[%s961 + $0x5f8] sm:$0xff]
        %v1201 = vld [vmem:[%s961 + $0x600] sm:$0xff]
        %v1202 = vld [vmem:[%s961 + $0x608] sm:$0xff]
        %v1203 = vld [vmem:[%s961 + $0x610] sm:$0xff]
        %v1204 = vld [vmem:[%s961 + $0x618] sm:$0xff]
        %v1205 = vunpack.c.l.bf16 %v1009
        %v1206 = vunpack.c.h.bf16 %v1009
        %v1207 = vunpack.c.l.bf16 %v1010
        %v1208 = vunpack.c.h.bf16 %v1010
        %v1209 = vunpack.c.l.bf16 %v1011
        %v1210 = vunpack.c.h.bf16 %v1011
        %v1211 = vunpack.c.l.bf16 %v1012
        %v1212 = vunpack.c.h.bf16 %v1012
        %v1213 = vunpack.c.l.bf16 %v1013
        %v1214 = vunpack.c.h.bf16 %v1013
        %v1215 = vunpack.c.l.bf16 %v1014
        %v1216 = vunpack.c.h.bf16 %v1014
        %v1217 = vunpack.c.l.bf16 %v1015
        %v1218 = vunpack.c.h.bf16 %v1015
        %v1219 = vunpack.c.l.bf16 %v1016
        %v1220 = vunpack.c.h.bf16 %v1016
        %v1221 = vunpack.c.l.bf16 %v1017
        %v1222 = vunpack.c.h.bf16 %v1017
        %v1223 = vunpack.c.l.bf16 %v1018
        %v1224 = vunpack.c.h.bf16 %v1018
        %v1225 = vunpack.c.l.bf16 %v1019
        %v1226 = vunpack.c.h.bf16 %v1019
        %v1227 = vunpack.c.l.bf16 %v1020
        %v1228 = vunpack.c.h.bf16 %v1020
        %v1229 = vunpack.c.l.bf16 %v1021
        %v1230 = vunpack.c.h.bf16 %v1021
        %v1231 = vunpack.c.l.bf16 %v1022
        %v1232 = vunpack.c.h.bf16 %v1022
        %v1233 = vunpack.c.l.bf16 %v1023
        %v1234 = vunpack.c.h.bf16 %v1023
        %v1235 = vunpack.c.l.bf16 %v1024
        %v1236 = vunpack.c.h.bf16 %v1024
        %v1237 = vunpack.c.l.bf16 %v1025
        %v1238 = vunpack.c.h.bf16 %v1025
        %v1239 = vunpack.c.l.bf16 %v1026
        %v1240 = vunpack.c.h.bf16 %v1026
        %v1241 = vunpack.c.l.bf16 %v1027
        %v1242 = vunpack.c.h.bf16 %v1027
        %v1243 = vunpack.c.l.bf16 %v1028
        %v1244 = vunpack.c.h.bf16 %v1028
        %v1245 = vunpack.c.l.bf16 %v1029
        %v1246 = vunpack.c.h.bf16 %v1029
        %v1247 = vunpack.c.l.bf16 %v1030
        %v1248 = vunpack.c.h.bf16 %v1030
        %v1249 = vunpack.c.l.bf16 %v1031
        %v1250 = vunpack.c.h.bf16 %v1031
        %v1251 = vunpack.c.l.bf16 %v1032
        %v1252 = vunpack.c.h.bf16 %v1032
        %v1253 = vunpack.c.l.bf16 %v1033
        %v1254 = vunpack.c.h.bf16 %v1033
        %v1255 = vunpack.c.l.bf16 %v1034
        %v1256 = vunpack.c.h.bf16 %v1034
        %v1257 = vunpack.c.l.bf16 %v1035
        %v1258 = vunpack.c.h.bf16 %v1035
        %v1259 = vunpack.c.l.bf16 %v1036
        %v1260 = vunpack.c.h.bf16 %v1036
        %v1261 = vunpack.c.l.bf16 %v1037
        %v1262 = vunpack.c.h.bf16 %v1037
        %v1263 = vunpack.c.l.bf16 %v1038
        %v1264 = vunpack.c.h.bf16 %v1038
        %v1265 = vunpack.c.l.bf16 %v1039
        %v1266 = vunpack.c.h.bf16 %v1039
        %v1267 = vunpack.c.l.bf16 %v1040
        %v1268 = vunpack.c.h.bf16 %v1040
        %v1269 = vunpack.c.l.bf16 %v1041
        %v1270 = vunpack.c.h.bf16 %v1041
        %v1271 = vunpack.c.l.bf16 %v1042
        %v1272 = vunpack.c.h.bf16 %v1042
        %v1273 = vunpack.c.l.bf16 %v1043
        %v1274 = vunpack.c.h.bf16 %v1043
        %v1275 = vunpack.c.l.bf16 %v1044
        %v1276 = vunpack.c.h.bf16 %v1044
        %v1277 = vunpack.c.l.bf16 %v1045
        %v1278 = vunpack.c.h.bf16 %v1045
        %v1279 = vunpack.c.l.bf16 %v1046
        %v1280 = vunpack.c.h.bf16 %v1046
        %v1281 = vunpack.c.l.bf16 %v1047
        %v1282 = vunpack.c.h.bf16 %v1047
        %v1283 = vunpack.c.l.bf16 %v1048
        %v1284 = vunpack.c.h.bf16 %v1048
        %v1285 = vunpack.c.l.bf16 %v1049
        %v1286 = vunpack.c.h.bf16 %v1049
        %v1287 = vunpack.c.l.bf16 %v1050
        %v1288 = vunpack.c.h.bf16 %v1050
        %v1289 = vunpack.c.l.bf16 %v1051
        %v1290 = vunpack.c.h.bf16 %v1051
        %v1291 = vunpack.c.l.bf16 %v1052
        %v1292 = vunpack.c.h.bf16 %v1052
        %v1293 = vunpack.c.l.bf16 %v1053
        %v1294 = vunpack.c.h.bf16 %v1053
        %v1295 = vunpack.c.l.bf16 %v1054
        %v1296 = vunpack.c.h.bf16 %v1054
        %v1297 = vunpack.c.l.bf16 %v1055
        %v1298 = vunpack.c.h.bf16 %v1055
        %v1299 = vunpack.c.l.bf16 %v1056
        %v1300 = vunpack.c.h.bf16 %v1056
        %v1301 = vunpack.c.l.bf16 %v1057
        %v1302 = vunpack.c.h.bf16 %v1057
        %v1303 = vunpack.c.l.bf16 %v1058
        %v1304 = vunpack.c.h.bf16 %v1058
        %v1305 = vunpack.c.l.bf16 %v1059
        %v1306 = vunpack.c.h.bf16 %v1059
        %v1307 = vunpack.c.l.bf16 %v1060
        %v1308 = vunpack.c.h.bf16 %v1060
        %v1309 = vunpack.c.l.bf16 %v1061
        %v1310 = vunpack.c.h.bf16 %v1061
        %v1311 = vunpack.c.l.bf16 %v1062
        %v1312 = vunpack.c.h.bf16 %v1062
        %v1313 = vunpack.c.l.bf16 %v1063
        %v1314 = vunpack.c.h.bf16 %v1063
        %v1315 = vunpack.c.l.bf16 %v1064
        %v1316 = vunpack.c.h.bf16 %v1064
        %v1317 = vunpack.c.l.bf16 %v1065
        %v1318 = vunpack.c.h.bf16 %v1065
        %v1319 = vunpack.c.l.bf16 %v1066
        %v1320 = vunpack.c.h.bf16 %v1066
        %v1321 = vunpack.c.l.bf16 %v1067
        %v1322 = vunpack.c.h.bf16 %v1067
        %v1323 = vunpack.c.l.bf16 %v1068
        %v1324 = vunpack.c.h.bf16 %v1068
        %v1325 = vunpack.c.l.bf16 %v1069
        %v1326 = vunpack.c.h.bf16 %v1069
        %v1327 = vunpack.c.l.bf16 %v1070
        %v1328 = vunpack.c.h.bf16 %v1070
        %v1329 = vunpack.c.l.bf16 %v1071
        %v1330 = vunpack.c.h.bf16 %v1071
        %v1331 = vunpack.c.l.bf16 %v1072
        %v1332 = vunpack.c.h.bf16 %v1072
        %v1333 = vunpack.c.l.bf16 %v1073
        %v1334 = vunpack.c.h.bf16 %v1073
        %v1335 = vunpack.c.l.bf16 %v1074
        %v1336 = vunpack.c.h.bf16 %v1074
        %v1337 = vunpack.c.l.bf16 %v1075
        %v1338 = vunpack.c.h.bf16 %v1075
        %v1339 = vunpack.c.l.bf16 %v1076
        %v1340 = vunpack.c.h.bf16 %v1076
        %v1341 = vunpack.c.l.bf16 %v1077
        %v1342 = vunpack.c.h.bf16 %v1077
        %v1343 = vunpack.c.l.bf16 %v1078
        %v1344 = vunpack.c.h.bf16 %v1078
        %v1345 = vunpack.c.l.bf16 %v1079
        %v1346 = vunpack.c.h.bf16 %v1079
        %v1347 = vunpack.c.l.bf16 %v1080
        %v1348 = vunpack.c.h.bf16 %v1080
        %v1349 = vunpack.c.l.bf16 %v1081
        %v1350 = vunpack.c.h.bf16 %v1081
        %v1351 = vunpack.c.l.bf16 %v1082
        %v1352 = vunpack.c.h.bf16 %v1082
        %v1353 = vunpack.c.l.bf16 %v1083
        %v1354 = vunpack.c.h.bf16 %v1083
        %v1355 = vunpack.c.l.bf16 %v1084
        %v1356 = vunpack.c.h.bf16 %v1084
        %v1357 = vunpack.c.l.bf16 %v1085
        %v1358 = vunpack.c.h.bf16 %v1085
        %v1359 = vunpack.c.l.bf16 %v1086
        %v1360 = vunpack.c.h.bf16 %v1086
        %v1361 = vunpack.c.l.bf16 %v1087
        %v1362 = vunpack.c.h.bf16 %v1087
        %v1363 = vunpack.c.l.bf16 %v1088
        %v1364 = vunpack.c.h.bf16 %v1088
        %v1365 = vunpack.c.l.bf16 %v1089
        %v1366 = vunpack.c.h.bf16 %v1089
        %v1367 = vunpack.c.l.bf16 %v1090
        %v1368 = vunpack.c.h.bf16 %v1090
        %v1369 = vunpack.c.l.bf16 %v1091
        %v1370 = vunpack.c.h.bf16 %v1091
        %v1371 = vunpack.c.l.bf16 %v1092
        %v1372 = vunpack.c.h.bf16 %v1092
        %v1373 = vunpack.c.l.bf16 %v1093
        %v1374 = vunpack.c.h.bf16 %v1093
        %v1375 = vunpack.c.l.bf16 %v1094
        %v1376 = vunpack.c.h.bf16 %v1094
        %v1377 = vunpack.c.l.bf16 %v1095
        %v1378 = vunpack.c.h.bf16 %v1095
        %v1379 = vunpack.c.l.bf16 %v1096
        %v1380 = vunpack.c.h.bf16 %v1096
        %v1381 = vunpack.c.l.bf16 %v1097
        %v1382 = vunpack.c.h.bf16 %v1097
        %v1383 = vunpack.c.l.bf16 %v1098
        %v1384 = vunpack.c.h.bf16 %v1098
        %v1385 = vunpack.c.l.bf16 %v1099
        %v1386 = vunpack.c.h.bf16 %v1099
        %v1387 = vunpack.c.l.bf16 %v1100
        %v1388 = vunpack.c.h.bf16 %v1100
        %v1389 = vunpack.c.l.bf16 %v1101
        %v1390 = vunpack.c.h.bf16 %v1101
        %v1391 = vunpack.c.l.bf16 %v1102
        %v1392 = vunpack.c.h.bf16 %v1102
        %v1393 = vunpack.c.l.bf16 %v1103
        %v1394 = vunpack.c.h.bf16 %v1103
        %v1395 = vunpack.c.l.bf16 %v1104
        %v1396 = vunpack.c.h.bf16 %v1104
        %v1397 = vunpack.c.l.bf16 %v1105
        %v1398 = vunpack.c.h.bf16 %v1105
        %v1399 = vunpack.c.l.bf16 %v1106
        %v1400 = vunpack.c.h.bf16 %v1106
        %v1401 = vunpack.c.l.bf16 %v1107
        %v1402 = vunpack.c.h.bf16 %v1107
        %v1403 = vunpack.c.l.bf16 %v1108
        %v1404 = vunpack.c.h.bf16 %v1108
        %v1405 = vunpack.c.l.bf16 %v1109
        %v1406 = vunpack.c.h.bf16 %v1109
        %v1407 = vunpack.c.l.bf16 %v1110
        %v1408 = vunpack.c.h.bf16 %v1110
        %v1409 = vunpack.c.l.bf16 %v1111
        %v1410 = vunpack.c.h.bf16 %v1111
        %v1411 = vunpack.c.l.bf16 %v1112
        %v1412 = vunpack.c.h.bf16 %v1112
        %v1413 = vunpack.c.l.bf16 %v1113
        %v1414 = vunpack.c.h.bf16 %v1113
        %v1415 = vunpack.c.l.bf16 %v1114
        %v1416 = vunpack.c.h.bf16 %v1114
        %v1417 = vunpack.c.l.bf16 %v1115
        %v1418 = vunpack.c.h.bf16 %v1115
        %v1419 = vunpack.c.l.bf16 %v1116
        %v1420 = vunpack.c.h.bf16 %v1116
        %v1421 = vunpack.c.l.bf16 %v1117
        %v1422 = vunpack.c.h.bf16 %v1117
        %v1423 = vunpack.c.l.bf16 %v1118
        %v1424 = vunpack.c.h.bf16 %v1118
        %v1425 = vunpack.c.l.bf16 %v1119
        %v1426 = vunpack.c.h.bf16 %v1119
        %v1427 = vunpack.c.l.bf16 %v1120
        %v1428 = vunpack.c.h.bf16 %v1120
        %v1429 = vunpack.c.l.bf16 %v1121
        %v1430 = vunpack.c.h.bf16 %v1121
        %v1431 = vunpack.c.l.bf16 %v1122
        %v1432 = vunpack.c.h.bf16 %v1122
        %v1433 = vunpack.c.l.bf16 %v1123
        %v1434 = vunpack.c.h.bf16 %v1123
        %v1435 = vunpack.c.l.bf16 %v1124
        %v1436 = vunpack.c.h.bf16 %v1124
        %v1437 = vunpack.c.l.bf16 %v1125
        %v1438 = vunpack.c.h.bf16 %v1125
        %v1439 = vunpack.c.l.bf16 %v1126
        %v1440 = vunpack.c.h.bf16 %v1126
        %v1441 = vunpack.c.l.bf16 %v1127
        %v1442 = vunpack.c.h.bf16 %v1127
        %v1443 = vunpack.c.l.bf16 %v1128
        %v1444 = vunpack.c.h.bf16 %v1128
        %v1445 = vunpack.c.l.bf16 %v1129
        %v1446 = vunpack.c.h.bf16 %v1129
        %v1447 = vunpack.c.l.bf16 %v1130
        %v1448 = vunpack.c.h.bf16 %v1130
        %v1449 = vunpack.c.l.bf16 %v1131
        %v1450 = vunpack.c.h.bf16 %v1131
        %v1451 = vunpack.c.l.bf16 %v1132
        %v1452 = vunpack.c.h.bf16 %v1132
        %v1453 = vunpack.c.l.bf16 %v1133
        %v1454 = vunpack.c.h.bf16 %v1133
        %v1455 = vunpack.c.l.bf16 %v1134
        %v1456 = vunpack.c.h.bf16 %v1134
        %v1457 = vunpack.c.l.bf16 %v1135
        %v1458 = vunpack.c.h.bf16 %v1135
        %v1459 = vunpack.c.l.bf16 %v1136
        %v1460 = vunpack.c.h.bf16 %v1136
        %v1461 = vunpack.c.l.bf16 %v1137
        %v1462 = vunpack.c.h.bf16 %v1137
        %v1463 = vunpack.c.l.bf16 %v1138
        %v1464 = vunpack.c.h.bf16 %v1138
        %v1465 = vunpack.c.l.bf16 %v1139
        %v1466 = vunpack.c.h.bf16 %v1139
        %v1467 = vunpack.c.l.bf16 %v1140
        %v1468 = vunpack.c.h.bf16 %v1140
        %v1469 = vunpack.c.l.bf16 %v1141
        %v1470 = vunpack.c.h.bf16 %v1141
        %v1471 = vunpack.c.l.bf16 %v1142
        %v1472 = vunpack.c.h.bf16 %v1142
        %v1473 = vunpack.c.l.bf16 %v1143
        %v1474 = vunpack.c.h.bf16 %v1143
        %v1475 = vunpack.c.l.bf16 %v1144
        %v1476 = vunpack.c.h.bf16 %v1144
        %v1477 = vunpack.c.l.bf16 %v1145
        %v1478 = vunpack.c.h.bf16 %v1145
        %v1479 = vunpack.c.l.bf16 %v1146
        %v1480 = vunpack.c.h.bf16 %v1146
        %v1481 = vunpack.c.l.bf16 %v1147
        %v1482 = vunpack.c.h.bf16 %v1147
        %v1483 = vunpack.c.l.bf16 %v1148
        %v1484 = vunpack.c.h.bf16 %v1148
        %v1485 = vunpack.c.l.bf16 %v1149
        %v1486 = vunpack.c.h.bf16 %v1149
        %v1487 = vunpack.c.l.bf16 %v1150
        %v1488 = vunpack.c.h.bf16 %v1150
        %v1489 = vunpack.c.l.bf16 %v1151
        %v1490 = vunpack.c.h.bf16 %v1151
        %v1491 = vunpack.c.l.bf16 %v1152
        %v1492 = vunpack.c.h.bf16 %v1152
        %v1493 = vunpack.c.l.bf16 %v1153
        %v1494 = vunpack.c.h.bf16 %v1153
        %v1495 = vunpack.c.l.bf16 %v1154
        %v1496 = vunpack.c.h.bf16 %v1154
        %v1497 = vunpack.c.l.bf16 %v1155
        %v1498 = vunpack.c.h.bf16 %v1155
        %v1499 = vunpack.c.l.bf16 %v1156
        %v1500 = vunpack.c.h.bf16 %v1156
        %v1501 = vunpack.c.l.bf16 %v1157
        %v1502 = vunpack.c.h.bf16 %v1157
        %v1503 = vunpack.c.l.bf16 %v1158
        %v1504 = vunpack.c.h.bf16 %v1158
        %v1505 = vunpack.c.l.bf16 %v1159
        %v1506 = vunpack.c.h.bf16 %v1159
        %v1507 = vunpack.c.l.bf16 %v1160
        %v1508 = vunpack.c.h.bf16 %v1160
        %v1509 = vunpack.c.l.bf16 %v1161
        %v1510 = vunpack.c.h.bf16 %v1161
        %v1511 = vunpack.c.l.bf16 %v1162
        %v1512 = vunpack.c.h.bf16 %v1162
        %v1513 = vunpack.c.l.bf16 %v1163
        %v1514 = vunpack.c.h.bf16 %v1163
        %v1515 = vunpack.c.l.bf16 %v1164
        %v1516 = vunpack.c.h.bf16 %v1164
        %v1517 = vunpack.c.l.bf16 %v1165
        %v1518 = vunpack.c.h.bf16 %v1165
        %v1519 = vunpack.c.l.bf16 %v1166
        %v1520 = vunpack.c.h.bf16 %v1166
        %v1521 = vunpack.c.l.bf16 %v1167
        %v1522 = vunpack.c.h.bf16 %v1167
        %v1523 = vunpack.c.l.bf16 %v1168
        %v1524 = vunpack.c.h.bf16 %v1168
        %v1525 = vunpack.c.l.bf16 %v1169
        %v1526 = vunpack.c.h.bf16 %v1169
        %v1527 = vunpack.c.l.bf16 %v1170
        %v1528 = vunpack.c.h.bf16 %v1170
        %v1529 = vunpack.c.l.bf16 %v1171
        %v1530 = vunpack.c.h.bf16 %v1171
        %v1531 = vunpack.c.l.bf16 %v1172
        %v1532 = vunpack.c.h.bf16 %v1172
        %v1533 = vunpack.c.l.bf16 %v1173
        %v1534 = vunpack.c.h.bf16 %v1173
        %v1535 = vunpack.c.l.bf16 %v1174
        %v1536 = vunpack.c.h.bf16 %v1174
        %v1537 = vunpack.c.l.bf16 %v1175
        %v1538 = vunpack.c.h.bf16 %v1175
        %v1539 = vunpack.c.l.bf16 %v1176
        %v1540 = vunpack.c.h.bf16 %v1176
        %v1541 = vunpack.c.l.bf16 %v1177
        %v1542 = vunpack.c.h.bf16 %v1177
        %v1543 = vunpack.c.l.bf16 %v1178
        %v1544 = vunpack.c.h.bf16 %v1178
        %v1545 = vunpack.c.l.bf16 %v1179
        %v1546 = vunpack.c.h.bf16 %v1179
        %v1547 = vunpack.c.l.bf16 %v1180
        %v1548 = vunpack.c.h.bf16 %v1180
        %v1549 = vunpack.c.l.bf16 %v1181
        %v1550 = vunpack.c.h.bf16 %v1181
        %v1551 = vunpack.c.l.bf16 %v1182
        %v1552 = vunpack.c.h.bf16 %v1182
        %v1553 = vunpack.c.l.bf16 %v1183
        %v1554 = vunpack.c.h.bf16 %v1183
        %v1555 = vunpack.c.l.bf16 %v1184
        %v1556 = vunpack.c.h.bf16 %v1184
        %v1557 = vunpack.c.l.bf16 %v1185
        %v1558 = vunpack.c.h.bf16 %v1185
        %v1559 = vunpack.c.l.bf16 %v1186
        %v1560 = vunpack.c.h.bf16 %v1186
        %v1561 = vunpack.c.l.bf16 %v1187
        %v1562 = vunpack.c.h.bf16 %v1187
        %v1563 = vunpack.c.l.bf16 %v1188
        %v1564 = vunpack.c.h.bf16 %v1188
        %v1565 = vunpack.c.l.bf16 %v1189
        %v1566 = vunpack.c.h.bf16 %v1189
        %v1567 = vunpack.c.l.bf16 %v1190
        %v1568 = vunpack.c.h.bf16 %v1190
        %v1569 = vunpack.c.l.bf16 %v1191
        %v1570 = vunpack.c.h.bf16 %v1191
        %v1571 = vunpack.c.l.bf16 %v1192
        %v1572 = vunpack.c.h.bf16 %v1192
        %v1573 = vunpack.c.l.bf16 %v1193
        %v1574 = vunpack.c.h.bf16 %v1193
        %v1575 = vunpack.c.l.bf16 %v1194
        %v1576 = vunpack.c.h.bf16 %v1194
        %v1577 = vunpack.c.l.bf16 %v1195
        %v1578 = vunpack.c.h.bf16 %v1195
        %v1579 = vunpack.c.l.bf16 %v1196
        %v1580 = vunpack.c.h.bf16 %v1196
        %v1581 = vunpack.c.l.bf16 %v1197
        %v1582 = vunpack.c.h.bf16 %v1197
        %v1583 = vunpack.c.l.bf16 %v1198
        %v1584 = vunpack.c.h.bf16 %v1198
        %v1585 = vunpack.c.l.bf16 %v1199
        %v1586 = vunpack.c.h.bf16 %v1199
        %v1587 = vunpack.c.l.bf16 %v1200
        %v1588 = vunpack.c.h.bf16 %v1200
        %v1589 = vunpack.c.l.bf16 %v1201
        %v1590 = vunpack.c.h.bf16 %v1201
        %v1591 = vunpack.c.l.bf16 %v1202
        %v1592 = vunpack.c.h.bf16 %v1202
        %v1593 = vunpack.c.l.bf16 %v1203
        %v1594 = vunpack.c.h.bf16 %v1203
        %v1595 = vunpack.c.l.bf16 %v1204
        %v1596 = vunpack.c.h.bf16 %v1204
        %v1597 = vld [vmem:[%s2] sm:$0xff]
        %1599 = vset.pattern.permute.xlu0 0
        %1600 = vperm.xlu0 %1599, %v1597
        %v1601 = vpop.permute.xlu0 %1600
        %vm1603 = vcmask 261120
        %v1605 = vsel %vm1603, %v1008, 0
        %1607 = vmatprep.subr.mxu0 %v1236
        %1608 = vmatpush1.msra.mxu0 %v1235
        %1609 = vmatprep.subr.mxu0 %v1234
        %1610 = vmatpush1.msra.mxu0 %v1233
        %1611 = vmatprep.subr.mxu0 %v1232
        %1612 = vmatpush1.msra.mxu0 %v1231
        %1613 = vmatprep.subr.mxu0 %v1230
        %1614 = vmatpush1.msra.mxu0 %v1229
        %1615 = vmatprep.subr.mxu0 %v1228
        %1616 = vmatpush1.msra.mxu0 %v1227
        %1617 = vmatprep.subr.mxu0 %v1226
        %1618 = vmatpush1.msra.mxu0 %v1225
        %1619 = vmatprep.subr.mxu0 %v1224
        %1620 = vmatpush1.msra.mxu0 %v1223
        %1621 = vmatprep.subr.mxu0 %v1222
        %1622 = vmatpush1.msra.mxu0 %v1221
        %1623 = vmatprep.subr.mxu0 %v1220
        %1624 = vmatpush1.msra.mxu0 %v1219
        %1625 = vmatprep.subr.mxu0 %v1218
        %1626 = vmatpush1.msra.mxu0 %v1217
        %1627 = vmatprep.subr.mxu0 %v1216
        %1628 = vmatpush1.msra.mxu0 %v1215
        %1629 = vmatprep.subr.mxu0 %v1214
        %1630 = vmatpush1.msra.mxu0 %v1213
        %1631 = vmatprep.subr.mxu0 %v1212
        %1632 = vmatpush1.msra.mxu0 %v1211
        %1633 = vmatprep.subr.mxu0 %v1210
        %1634 = vmatpush1.msra.mxu0 %v1209
        %1635 = vmatprep.subr.mxu0 %v1208
        %1636 = vmatpush1.msra.mxu0 %v1207
        %1637 = vmatprep.subr.mxu0 %v1206
        %1638 = vmatpush1.msra.mxu0 %v1205
        %1639 = vmatprep.subr.mxu0 %v1268
        %1640 = vmatpush2.msra.mxu0 %v1267
        %1641 = vmatprep.subr.mxu0 %v1266
        %1642 = vmatpush2.msra.mxu0 %v1265
        %1643 = vmatprep.subr.mxu0 %v1264
        %1644 = vmatpush2.msra.mxu0 %v1263
        %1645 = vmatprep.subr.mxu0 %v1262
        %1646 = vmatpush2.msra.mxu0 %v1261
        %1647 = vmatprep.subr.mxu0 %v1260
        %1648 = vmatpush2.msra.mxu0 %v1259
        %1649 = vmatprep.subr.mxu0 %v1258
        %1650 = vmatpush2.msra.mxu0 %v1257
        %1651 = vmatprep.subr.mxu0 %v1256
        %1652 = vmatpush2.msra.mxu0 %v1255
        %1653 = vmatprep.subr.mxu0 %v1254
        %1654 = vmatpush2.msra.mxu0 %v1253
        %1655 = vmatprep.subr.mxu0 %v1252
        %1656 = vmatpush2.msra.mxu0 %v1251
        %1657 = vmatprep.subr.mxu0 %v1250
        %1658 = vmatpush2.msra.mxu0 %v1249
        %1659 = vmatprep.subr.mxu0 %v1248
        %1660 = vmatpush2.msra.mxu0 %v1247
        %1661 = vmatprep.subr.mxu0 %v1246
        %1662 = vmatpush2.msra.mxu0 %v1245
        %1663 = vmatprep.subr.mxu0 %v1244
        %1664 = vmatpush2.msra.mxu0 %v1243
        %1665 = vmatprep.subr.mxu0 %v1242
        %1666 = vmatpush2.msra.mxu0 %v1241
        %1667 = vmatprep.subr.mxu0 %v1240
        %1668 = vmatpush2.msra.mxu0 %v1239
        %1669 = vmatprep.subr.mxu0 %v1238
        %1670 = vmatpush2.msra.mxu0 %v1237
        %1671 = vmatprep.mubr.f32.mxu0 %v997
        %1672 = vmatmul.mubr.f32.gmra.mxu0 %v996
        %v1673 = vpop.f32.mrf.mxu0
        %v1674 = vadd.f32 %v1601, %v1673
        %v1675 = vpop.f32.mrf.mxu0
        %v1676 = vadd.f32 %v1601, %v1675
        %1677 = vdwg.mxu0
        %1678 = vmatprep.subr.mxu0 %v1300
        %1679 = vmatpush1.msra.mxu0 %v1299
        %1680 = vmatprep.subr.mxu0 %v1298
        %1681 = vmatpush1.msra.mxu0 %v1297
        %1682 = vmatprep.subr.mxu0 %v1296
        %1683 = vmatpush1.msra.mxu0 %v1295
        %1684 = vmatprep.subr.mxu0 %v1294
        %1685 = vmatpush1.msra.mxu0 %v1293
        %1686 = vmatprep.subr.mxu0 %v1292
        %1687 = vmatpush1.msra.mxu0 %v1291
        %1688 = vmatprep.subr.mxu0 %v1290
        %1689 = vmatpush1.msra.mxu0 %v1289
        %1690 = vmatprep.subr.mxu0 %v1288
        %1691 = vmatpush1.msra.mxu0 %v1287
        %1692 = vmatprep.subr.mxu0 %v1286
        %1693 = vmatpush1.msra.mxu0 %v1285
        %1694 = vmatprep.subr.mxu0 %v1284
        %1695 = vmatpush1.msra.mxu0 %v1283
        %1696 = vmatprep.subr.mxu0 %v1282
        %1697 = vmatpush1.msra.mxu0 %v1281
        %1698 = vmatprep.subr.mxu0 %v1280
        %1699 = vmatpush1.msra.mxu0 %v1279
        %1700 = vmatprep.subr.mxu0 %v1278
        %1701 = vmatpush1.msra.mxu0 %v1277
        %1702 = vmatprep.subr.mxu0 %v1276
        %1703 = vmatpush1.msra.mxu0 %v1275
        %1704 = vmatprep.subr.mxu0 %v1274
        %1705 = vmatpush1.msra.mxu0 %v1273
        %1706 = vmatprep.subr.mxu0 %v1272
        %1707 = vmatpush1.msra.mxu0 %v1271
        %1708 = vmatprep.subr.mxu0 %v1270
        %1709 = vmatpush1.msra.mxu0 %v1269
        %1710 = vmatprep.subr.mxu0 %v1332
        %1711 = vmatpush2.msra.mxu0 %v1331
        %1712 = vmatprep.subr.mxu0 %v1330
        %1713 = vmatpush2.msra.mxu0 %v1329
        %1714 = vmatprep.subr.mxu0 %v1328
        %1715 = vmatpush2.msra.mxu0 %v1327
        %1716 = vmatprep.subr.mxu0 %v1326
        %1717 = vmatpush2.msra.mxu0 %v1325
        %1718 = vmatprep.subr.mxu0 %v1324
        %1719 = vmatpush2.msra.mxu0 %v1323
        %1720 = vmatprep.subr.mxu0 %v1322
        %1721 = vmatpush2.msra.mxu0 %v1321
        %1722 = vmatprep.subr.mxu0 %v1320
        %1723 = vmatpush2.msra.mxu0 %v1319
        %1724 = vmatprep.subr.mxu0 %v1318
        %1725 = vmatpush2.msra.mxu0 %v1317
        %1726 = vmatprep.subr.mxu0 %v1316
        %1727 = vmatpush2.msra.mxu0 %v1315
        %1728 = vmatprep.subr.mxu0 %v1314
        %1729 = vmatpush2.msra.mxu0 %v1313
        %1730 = vmatprep.subr.mxu0 %v1312
        %1731 = vmatpush2.msra.mxu0 %v1311
        %1732 = vmatprep.subr.mxu0 %v1310
        %1733 = vmatpush2.msra.mxu0 %v1309
        %1734 = vmatprep.subr.mxu0 %v1308
        %1735 = vmatpush2.msra.mxu0 %v1307
        %1736 = vmatprep.subr.mxu0 %v1306
        %1737 = vmatpush2.msra.mxu0 %v1305
        %1738 = vmatprep.subr.mxu0 %v1304
        %1739 = vmatpush2.msra.mxu0 %v1303
        %1740 = vmatprep.subr.mxu0 %v1302
        %1741 = vmatpush2.msra.mxu0 %v1301
        %1742 = vmatprep.mubr.f32.mxu0 %v999
        %1743 = vmatmul.mubr.f32.gmra.mxu0 %v998
        %v1744 = vpop.f32.mrf.mxu0
        %v1745 = vadd.f32 %v1674, %v1744
        %v1746 = vpop.f32.mrf.mxu0
        %v1747 = vadd.f32 %v1676, %v1746
        %1748 = vdwg.mxu0
        %1749 = vmatprep.subr.mxu0 %v1364
        %1750 = vmatpush1.msra.mxu0 %v1363
        %1751 = vmatprep.subr.mxu0 %v1362
        %1752 = vmatpush1.msra.mxu0 %v1361
        %1753 = vmatprep.subr.mxu0 %v1360
        %1754 = vmatpush1.msra.mxu0 %v1359
        %1755 = vmatprep.subr.mxu0 %v1358
        %1756 = vmatpush1.msra.mxu0 %v1357
        %1757 = vmatprep.subr.mxu0 %v1356
        %1758 = vmatpush1.msra.mxu0 %v1355
        %1759 = vmatprep.subr.mxu0 %v1354
        %1760 = vmatpush1.msra.mxu0 %v1353
        %1761 = vmatprep.subr.mxu0 %v1352
        %1762 = vmatpush1.msra.mxu0 %v1351
        %1763 = vmatprep.subr.mxu0 %v1350
        %1764 = vmatpush1.msra.mxu0 %v1349
        %1765 = vmatprep.subr.mxu0 %v1348
        %1766 = vmatpush1.msra.mxu0 %v1347
        %1767 = vmatprep.subr.mxu0 %v1346
        %1768 = vmatpush1.msra.mxu0 %v1345
        %1769 = vmatprep.subr.mxu0 %v1344
        %1770 = vmatpush1.msra.mxu0 %v1343
        %1771 = vmatprep.subr.mxu0 %v1342
        %1772 = vmatpush1.msra.mxu0 %v1341
        %1773 = vmatprep.subr.mxu0 %v1340
        %1774 = vmatpush1.msra.mxu0 %v1339
        %1775 = vmatprep.subr.mxu0 %v1338
        %1776 = vmatpush1.msra.mxu0 %v1337
        %1777 = vmatprep.subr.mxu0 %v1336
        %1778 = vmatpush1.msra.mxu0 %v1335
        %1779 = vmatprep.subr.mxu0 %v1334
        %1780 = vmatpush1.msra.mxu0 %v1333
        %1781 = vmatprep.subr.mxu0 %v1396
        %1782 = vmatpush2.msra.mxu0 %v1395
        %1783 = vmatprep.subr.mxu0 %v1394
        %1784 = vmatpush2.msra.mxu0 %v1393
        %1785 = vmatprep.subr.mxu0 %v1392
        %1786 = vmatpush2.msra.mxu0 %v1391
        %1787 = vmatprep.subr.mxu0 %v1390
        %1788 = vmatpush2.msra.mxu0 %v1389
        %1789 = vmatprep.subr.mxu0 %v1388
        %1790 = vmatpush2.msra.mxu0 %v1387
        %1791 = vmatprep.subr.mxu0 %v1386
        %1792 = vmatpush2.msra.mxu0 %v1385
        %1793 = vmatprep.subr.mxu0 %v1384
        %1794 = vmatpush2.msra.mxu0 %v1383
        %1795 = vmatprep.subr.mxu0 %v1382
        %1796 = vmatpush2.msra.mxu0 %v1381
        %1797 = vmatprep.subr.mxu0 %v1380
        %1798 = vmatpush2.msra.mxu0 %v1379
        %1799 = vmatprep.subr.mxu0 %v1378
        %1800 = vmatpush2.msra.mxu0 %v1377
        %1801 = vmatprep.subr.mxu0 %v1376
        %1802 = vmatpush2.msra.mxu0 %v1375
        %1803 = vmatprep.subr.mxu0 %v1374
        %1804 = vmatpush2.msra.mxu0 %v1373
        %1805 = vmatprep.subr.mxu0 %v1372
        %1806 = vmatpush2.msra.mxu0 %v1371
        %1807 = vmatprep.subr.mxu0 %v1370
        %1808 = vmatpush2.msra.mxu0 %v1369
        %1809 = vmatprep.subr.mxu0 %v1368
        %1810 = vmatpush2.msra.mxu0 %v1367
        %1811 = vmatprep.subr.mxu0 %v1366
        %1812 = vmatpush2.msra.mxu0 %v1365
        %1813 = vmatprep.mubr.f32.mxu0 %v1001
        %1814 = vmatmul.mubr.f32.gmra.mxu0 %v1000
        %v1815 = vpop.f32.mrf.mxu0
        %v1816 = vadd.f32 %v1745, %v1815
        %v1817 = vpop.f32.mrf.mxu0
        %v1818 = vadd.f32 %v1747, %v1817
        %1819 = vdwg.mxu0
        %1820 = vmatprep.subr.mxu0 %v1428
        %1821 = vmatpush1.msra.mxu0 %v1427
        %1822 = vmatprep.subr.mxu0 %v1426
        %1823 = vmatpush1.msra.mxu0 %v1425
        %1824 = vmatprep.subr.mxu0 %v1424
        %1825 = vmatpush1.msra.mxu0 %v1423
        %1826 = vmatprep.subr.mxu0 %v1422
        %1827 = vmatpush1.msra.mxu0 %v1421
        %1828 = vmatprep.subr.mxu0 %v1420
        %1829 = vmatpush1.msra.mxu0 %v1419
        %1830 = vmatprep.subr.mxu0 %v1418
        %1831 = vmatpush1.msra.mxu0 %v1417
        %1832 = vmatprep.subr.mxu0 %v1416
        %1833 = vmatpush1.msra.mxu0 %v1415
        %1834 = vmatprep.subr.mxu0 %v1414
        %1835 = vmatpush1.msra.mxu0 %v1413
        %1836 = vmatprep.subr.mxu0 %v1412
        %1837 = vmatpush1.msra.mxu0 %v1411
        %1838 = vmatprep.subr.mxu0 %v1410
        %1839 = vmatpush1.msra.mxu0 %v1409
        %1840 = vmatprep.subr.mxu0 %v1408
        %1841 = vmatpush1.msra.mxu0 %v1407
        %1842 = vmatprep.subr.mxu0 %v1406
        %1843 = vmatpush1.msra.mxu0 %v1405
        %1844 = vmatprep.subr.mxu0 %v1404
        %1845 = vmatpush1.msra.mxu0 %v1403
        %1846 = vmatprep.subr.mxu0 %v1402
        %1847 = vmatpush1.msra.mxu0 %v1401
        %1848 = vmatprep.subr.mxu0 %v1400
        %1849 = vmatpush1.msra.mxu0 %v1399
        %1850 = vmatprep.subr.mxu0 %v1398
        %1851 = vmatpush1.msra.mxu0 %v1397
        %1852 = vmatprep.subr.mxu0 %v1460
        %1853 = vmatpush2.msra.mxu0 %v1459
        %1854 = vmatprep.subr.mxu0 %v1458
        %1855 = vmatpush2.msra.mxu0 %v1457
        %1856 = vmatprep.subr.mxu0 %v1456
        %1857 = vmatpush2.msra.mxu0 %v1455
        %1858 = vmatprep.subr.mxu0 %v1454
        %1859 = vmatpush2.msra.mxu0 %v1453
        %1860 = vmatprep.subr.mxu0 %v1452
        %1861 = vmatpush2.msra.mxu0 %v1451
        %1862 = vmatprep.subr.mxu0 %v1450
        %1863 = vmatpush2.msra.mxu0 %v1449
        %1864 = vmatprep.subr.mxu0 %v1448
        %1865 = vmatpush2.msra.mxu0 %v1447
        %1866 = vmatprep.subr.mxu0 %v1446
        %1867 = vmatpush2.msra.mxu0 %v1445
        %1868 = vmatprep.subr.mxu0 %v1444
        %1869 = vmatpush2.msra.mxu0 %v1443
        %1870 = vmatprep.subr.mxu0 %v1442
        %1871 = vmatpush2.msra.mxu0 %v1441
        %1872 = vmatprep.subr.mxu0 %v1440
        %1873 = vmatpush2.msra.mxu0 %v1439
        %1874 = vmatprep.subr.mxu0 %v1438
        %1875 = vmatpush2.msra.mxu0 %v1437
        %1876 = vmatprep.subr.mxu0 %v1436
        %1877 = vmatpush2.msra.mxu0 %v1435
        %1878 = vmatprep.subr.mxu0 %v1434
        %1879 = vmatpush2.msra.mxu0 %v1433
        %1880 = vmatprep.subr.mxu0 %v1432
        %1881 = vmatpush2.msra.mxu0 %v1431
        %1882 = vmatprep.subr.mxu0 %v1430
        %1883 = vmatpush2.msra.mxu0 %v1429
        %1884 = vmatprep.mubr.f32.mxu0 %v1003
        %1885 = vmatmul.mubr.f32.gmra.mxu0 %v1002
        %v1886 = vpop.f32.mrf.mxu0
        %v1887 = vadd.f32 %v1816, %v1886
        %v1888 = vpop.f32.mrf.mxu0
        %v1889 = vadd.f32 %v1818, %v1888
        %1890 = vdwg.mxu0
        %1891 = vmatprep.subr.mxu0 %v1492
        %1892 = vmatpush1.msra.mxu0 %v1491
        %1893 = vmatprep.subr.mxu0 %v1490
        %1894 = vmatpush1.msra.mxu0 %v1489
        %1895 = vmatprep.subr.mxu0 %v1488
        %1896 = vmatpush1.msra.mxu0 %v1487
        %1897 = vmatprep.subr.mxu0 %v1486
        %1898 = vmatpush1.msra.mxu0 %v1485
        %1899 = vmatprep.subr.mxu0 %v1484
        %1900 = vmatpush1.msra.mxu0 %v1483
        %1901 = vmatprep.subr.mxu0 %v1482
        %1902 = vmatpush1.msra.mxu0 %v1481
        %1903 = vmatprep.subr.mxu0 %v1480
        %1904 = vmatpush1.msra.mxu0 %v1479
        %1905 = vmatprep.subr.mxu0 %v1478
        %1906 = vmatpush1.msra.mxu0 %v1477
        %1907 = vmatprep.subr.mxu0 %v1476
        %1908 = vmatpush1.msra.mxu0 %v1475
        %1909 = vmatprep.subr.mxu0 %v1474
        %1910 = vmatpush1.msra.mxu0 %v1473
        %1911 = vmatprep.subr.mxu0 %v1472
        %1912 = vmatpush1.msra.mxu0 %v1471
        %1913 = vmatprep.subr.mxu0 %v1470
        %1914 = vmatpush1.msra.mxu0 %v1469
        %1915 = vmatprep.subr.mxu0 %v1468
        %1916 = vmatpush1.msra.mxu0 %v1467
        %1917 = vmatprep.subr.mxu0 %v1466
        %1918 = vmatpush1.msra.mxu0 %v1465
        %1919 = vmatprep.subr.mxu0 %v1464
        %1920 = vmatpush1.msra.mxu0 %v1463
        %1921 = vmatprep.subr.mxu0 %v1462
        %1922 = vmatpush1.msra.mxu0 %v1461
        %1923 = vmatprep.subr.mxu0 %v1524
        %1924 = vmatpush2.msra.mxu0 %v1523
        %1925 = vmatprep.subr.mxu0 %v1522
        %1926 = vmatpush2.msra.mxu0 %v1521
        %1927 = vmatprep.subr.mxu0 %v1520
        %1928 = vmatpush2.msra.mxu0 %v1519
        %1929 = vmatprep.subr.mxu0 %v1518
        %1930 = vmatpush2.msra.mxu0 %v1517
        %1931 = vmatprep.subr.mxu0 %v1516
        %1932 = vmatpush2.msra.mxu0 %v1515
        %1933 = vmatprep.subr.mxu0 %v1514
        %1934 = vmatpush2.msra.mxu0 %v1513
        %1935 = vmatprep.subr.mxu0 %v1512
        %1936 = vmatpush2.msra.mxu0 %v1511
        %1937 = vmatprep.subr.mxu0 %v1510
        %1938 = vmatpush2.msra.mxu0 %v1509
        %1939 = vmatprep.subr.mxu0 %v1508
        %1940 = vmatpush2.msra.mxu0 %v1507
        %1941 = vmatprep.subr.mxu0 %v1506
        %1942 = vmatpush2.msra.mxu0 %v1505
        %1943 = vmatprep.subr.mxu0 %v1504
        %1944 = vmatpush2.msra.mxu0 %v1503
        %1945 = vmatprep.subr.mxu0 %v1502
        %1946 = vmatpush2.msra.mxu0 %v1501
        %1947 = vmatprep.subr.mxu0 %v1500
        %1948 = vmatpush2.msra.mxu0 %v1499
        %1949 = vmatprep.subr.mxu0 %v1498
        %1950 = vmatpush2.msra.mxu0 %v1497
        %1951 = vmatprep.subr.mxu0 %v1496
        %1952 = vmatpush2.msra.mxu0 %v1495
        %1953 = vmatprep.subr.mxu0 %v1494
        %1954 = vmatpush2.msra.mxu0 %v1493
        %1955 = vmatprep.mubr.f32.mxu0 %v1005
        %1956 = vmatmul.mubr.f32.gmra.mxu0 %v1004
        %v1957 = vpop.f32.mrf.mxu0
        %v1958 = vadd.f32 %v1887, %v1957
        %v1959 = vpop.f32.mrf.mxu0
        %v1960 = vadd.f32 %v1889, %v1959
        %1961 = vdwg.mxu0
        %1962 = vmatprep.subr.mxu0 %v1556
        %1963 = vmatpush1.msra.mxu0 %v1555
        %1964 = vmatprep.subr.mxu0 %v1554
        %1965 = vmatpush1.msra.mxu0 %v1553
        %1966 = vmatprep.subr.mxu0 %v1552
        %1967 = vmatpush1.msra.mxu0 %v1551
        %1968 = vmatprep.subr.mxu0 %v1550
        %1969 = vmatpush1.msra.mxu0 %v1549
        %1970 = vmatprep.subr.mxu0 %v1548
        %1971 = vmatpush1.msra.mxu0 %v1547
        %1972 = vmatprep.subr.mxu0 %v1546
        %1973 = vmatpush1.msra.mxu0 %v1545
        %1974 = vmatprep.subr.mxu0 %v1544
        %1975 = vmatpush1.msra.mxu0 %v1543
        %1976 = vmatprep.subr.mxu0 %v1542
        %1977 = vmatpush1.msra.mxu0 %v1541
        %1978 = vmatprep.subr.mxu0 %v1540
        %1979 = vmatpush1.msra.mxu0 %v1539
        %1980 = vmatprep.subr.mxu0 %v1538
        %1981 = vmatpush1.msra.mxu0 %v1537
        %1982 = vmatprep.subr.mxu0 %v1536
        %1983 = vmatpush1.msra.mxu0 %v1535
        %1984 = vmatprep.subr.mxu0 %v1534
        %1985 = vmatpush1.msra.mxu0 %v1533
        %1986 = vmatprep.subr.mxu0 %v1532
        %1987 = vmatpush1.msra.mxu0 %v1531
        %1988 = vmatprep.subr.mxu0 %v1530
        %1989 = vmatpush1.msra.mxu0 %v1529
        %1990 = vmatprep.subr.mxu0 %v1528
        %1991 = vmatpush1.msra.mxu0 %v1527
        %1992 = vmatprep.subr.mxu0 %v1526
        %1993 = vmatpush1.msra.mxu0 %v1525
        %1994 = vmatprep.subr.mxu0 %v1588
        %1995 = vmatpush2.msra.mxu0 %v1587
        %1996 = vmatprep.subr.mxu0 %v1586
        %1997 = vmatpush2.msra.mxu0 %v1585
        %1998 = vmatprep.subr.mxu0 %v1584
        %1999 = vmatpush2.msra.mxu0 %v1583
        %2000 = vmatprep.subr.mxu0 %v1582
        %2001 = vmatpush2.msra.mxu0 %v1581
        %2002 = vmatprep.subr.mxu0 %v1580
        %2003 = vmatpush2.msra.mxu0 %v1579
        %2004 = vmatprep.subr.mxu0 %v1578
        %2005 = vmatpush2.msra.mxu0 %v1577
        %2006 = vmatprep.subr.mxu0 %v1576
        %2007 = vmatpush2.msra.mxu0 %v1575
        %2008 = vmatprep.subr.mxu0 %v1574
        %2009 = vmatpush2.msra.mxu0 %v1573
        %2010 = vmatprep.subr.mxu0 %v1572
        %2011 = vmatpush2.msra.mxu0 %v1571
        %2012 = vmatprep.subr.mxu0 %v1570
        %2013 = vmatpush2.msra.mxu0 %v1569
        %2014 = vmatprep.subr.mxu0 %v1568
        %2015 = vmatpush2.msra.mxu0 %v1567
        %2016 = vmatprep.subr.mxu0 %v1566
        %2017 = vmatpush2.msra.mxu0 %v1565
        %2018 = vmatprep.subr.mxu0 %v1564
        %2019 = vmatpush2.msra.mxu0 %v1563
        %2020 = vmatprep.subr.mxu0 %v1562
        %2021 = vmatpush2.msra.mxu0 %v1561
        %2022 = vmatprep.subr.mxu0 %v1560
        %2023 = vmatpush2.msra.mxu0 %v1559
        %2024 = vmatprep.subr.mxu0 %v1558
        %2025 = vmatpush2.msra.mxu0 %v1557
        %2026 = vmatprep.mubr.f32.mxu0 %v1007
        %2027 = vmatmul.mubr.f32.gmra.mxu0 %v1006
        %v2028 = vpop.f32.mrf.mxu0
        %v2029 = vadd.f32 %v1958, %v2028
        %v2030 = vpop.f32.mrf.mxu0
        %v2031 = vadd.f32 %v1960, %v2030
        %2032 = vdwg.mxu0
        %2033 = vmatprep.subr.mxu0 0.0
        %2034 = vmatpush1.msra.mxu0 0.0
        %2035 = vmatprep.subr.mxu0 0.0
        %2036 = vmatpush1.msra.mxu0 0.0
        %2037 = vmatprep.subr.mxu0 0.0
        %2038 = vmatpush1.msra.mxu0 0.0
        %2039 = vmatprep.subr.mxu0 0.0
        %2040 = vmatpush1.msra.mxu0 0.0
        %2041 = vmatprep.subr.mxu0 0.0
        %2042 = vmatpush1.msra.mxu0 0.0
        %2043 = vmatprep.subr.mxu0 0.0
        %2044 = vmatpush1.msra.mxu0 0.0
        %2045 = vmatprep.subr.mxu0 0.0
        %2046 = vmatpush1.msra.mxu0 0.0
        %2047 = vmatprep.subr.mxu0 0.0
        %2048 = vmatpush1.msra.mxu0 0.0
        %2049 = vmatprep.subr.mxu0 0.0
        %2050 = vmatpush1.msra.mxu0 0.0
        %2051 = vmatprep.subr.mxu0 0.0
        %2052 = vmatpush1.msra.mxu0 0.0
        %2053 = vmatprep.subr.mxu0 0.0
        %2054 = vmatpush1.msra.mxu0 0.0
        %2055 = vmatprep.subr.mxu0 0.0
        %2056 = vmatpush1.msra.mxu0 0.0
        %2057 = vmatprep.subr.mxu0 %v1596
        %2058 = vmatpush1.msra.mxu0 %v1595
        %2059 = vmatprep.subr.mxu0 %v1594
        %2060 = vmatpush1.msra.mxu0 %v1593
        %2061 = vmatprep.subr.mxu0 %v1592
        %2062 = vmatpush1.msra.mxu0 %v1591
        %2063 = vmatprep.subr.mxu0 %v1590
        %2064 = vmatpush1.msra.mxu0 %v1589
        %2065 = vmatprep.subr.mxu0 0.0
        %2066 = vmatpush2.msra.mxu0 0.0
        %2067 = vmatprep.subr.mxu0 0.0
        %2068 = vmatpush2.msra.mxu0 0.0
        %2069 = vmatprep.subr.mxu0 0.0
        %2070 = vmatpush2.msra.mxu0 0.0
        %2071 = vmatprep.subr.mxu0 0.0
        %2072 = vmatpush2.msra.mxu0 0.0
        %2073 = vmatprep.subr.mxu0 0.0
        %2074 = vmatpush2.msra.mxu0 0.0
        %2075 = vmatprep.subr.mxu0 0.0
        %2076 = vmatpush2.msra.mxu0 0.0
        %2077 = vmatprep.subr.mxu0 0.0
        %2078 = vmatpush2.msra.mxu0 0.0
        %2079 = vmatprep.subr.mxu0 0.0
        %2080 = vmatpush2.msra.mxu0 0.0
        %2081 = vmatprep.subr.mxu0 0.0
        %2082 = vmatpush2.msra.mxu0 0.0
        %2083 = vmatprep.subr.mxu0 0.0
        %2084 = vmatpush2.msra.mxu0 0.0
        %2085 = vmatprep.subr.mxu0 0.0
        %2086 = vmatpush2.msra.mxu0 0.0
        %2087 = vmatprep.subr.mxu0 0.0
        %2088 = vmatpush2.msra.mxu0 0.0
        %2089 = vmatprep.subr.mxu0 0.0
        %2090 = vmatpush2.msra.mxu0 0.0
        %2091 = vmatprep.subr.mxu0 0.0
        %2092 = vmatpush2.msra.mxu0 0.0
        %2093 = vmatprep.subr.mxu0 0.0
        %2094 = vmatpush2.msra.mxu0 0.0
        %2095 = vmatprep.subr.mxu0 0.0
        %2096 = vmatpush2.msra.mxu0 0.0
        %2097 = vmatprep.mubr.f32.mxu0 0.0
        %2098 = vmatmul.mubr.f32.gmra.mxu0 %v1605
        %v2099 = vpop.f32.mrf.mxu0
        %v2100 = vadd.f32 %v2029, %v2099
        %v2101 = vpop.f32.mrf.mxu0
        %v2102 = vadd.f32 %v2031, %v2101
        %2103 = vdwg.mxu0
        %v2104 = vxor.u32 %v2100, 2147483648
        %v2105 = vxor.u32 %v2102, 2147483648
        %v2106 = vmul.f32 %v2104, 1.442695
        %v2107 = vpow.pop %v2106
        %v2108 = vmul.f32 %v2105, 1.442695
        %v2109 = vpow.pop %v2108
        %v2110 = vadd.f32 %v2107, 1.0
        %v2111 = vadd.f32 %v2109, 1.0
        %v2112 = vrcp.pop %v2110
        %v2113 = vmul.f32 1.0, %v2112
        %v2114 = vrcp.pop %v2111
        %v2115 = vmul.f32 1.0, %v2114
        %2116 = vst [vmem:[%s987] sm:$0xff] %v2113
        %2117 = vst [vmem:[%s987 + $0x8] sm:$0xff] %v2115
        %s2118 = smul.u32 2, %s14
        %p2119 = scmp.lt.s32.totalorder %s2118, 3
        %s2120 = scalar_select %p2119, %s2118, 3
        %s2121 = smul.addr %s2120, 8
        %s2122 = scalar_lea.vmem %s3, %s2121
        // Predicated region
        $region71: #{autoencoder_forward.21} parent=65 // pred_check
          %p2123 = pneg %p100
        $region72: #{autoencoder_forward.21} parent=65 // pred_check_branch
          %2125 = sbr.rel (%p2123) target = $region74
        $region73: #{autoencoder_forward.21} parent=65 // pred_region
          %s2126 = smul.u32 2, %s14
        $region74: #{autoencoder_forward.21} parent=65 // pred_fallthru
          _
      $region66: #{autoencoder_forward.21} parent=5 // pred_fallthru
        _
      %p2127 = scmp.le.s32.totalorder 2, %s9
      // Predicated region
      $region75: #{autoencoder_forward.21} parent=5 // pred_check
        %p2128 = pneg %p2127
      $region76: #{autoencoder_forward.21} parent=5 // pred_check_branch
        %2130 = sbr.rel (%p2128) target = $region78
      $region77: #{autoencoder_forward.21} parent=5 // pred_region
        %s2131 = ssub.s32 %s9, 2
        // Predicated region
        $region79: #{autoencoder_forward.21} parent=77 // pred_check
          %p2132 = pneg %p106
        $region80: #{autoencoder_forward.21} parent=77 // pred_check_branch
          %2134 = sbr.rel (%p2132) target = $region82
        $region81: #{autoencoder_forward.21} parent=77 // pred_region
          %s2135 = smul.u32 2, %s15
          %p2136 = scmp.lt.s32.totalorder %s2135, 3
          %s2137 = scalar_select %p2136, %s2135, 3
          %s2138 = smul.addr %s2137, 8
          %s2139 = scalar_lea.vmem %s3, %s2138
        $region82: #{autoencoder_forward.21} parent=77 // pred_fallthru
          _
      $region78: #{autoencoder_forward.21} parent=5 // pred_fallthru
        _
    $region6: #{autoencoder_forward.21} parent=1 // loop_footer
      %s13 = sadd.s32 1, %s9
    $region7: #{autoencoder_forward.21} parent=1 // loop_footer_branch
      %8 = sbr.rel target = $region3
    $region8: #{autoencoder_forward.21} parent=1 // loop_exit
      _

</llo_original>
